<compile_context>
chip_gen: v7x
topology: tpu7x:2x2x1
jax: 0.10.0
libtpu: 0.0.40
codegen_flags: <defaults>
</compile_context>

<pallas_src>
import jax
import jax.numpy as jnp
from jax.experimental import pallas as pl
from jax.experimental.pallas import tpu as pltpu


# ----------------------------------------------------------------------------
# Model constants
# ----------------------------------------------------------------------------
HIDDEN = 32
NUM_LAYERS = 2
IN_DIM_NODE = 5                    # vel(3) + pos(2)
IN_PAD = 8                         # padded to a sublane multiple
OUT_DIM_NODE = 3                   # 'vel'
OUT_DIM_EDGE = 1                   # 'e'
LANE = 128                         # lane-dense output width
ROW_ALIGN = 128                    # node rows padded to a lane-dense multiple

NMLP1, NMLP2 = HIDDEN // 2, HIDDEN // 4              # node MLPReadout: 32->16->8->3
EMLP1, EMLP2 = (2 * HIDDEN) // 2, (2 * HIDDEN) // 4  # edge MLPReadout: 64->32->16->1


# ----------------------------------------------------------------------------
# Fused node-path kernel (single grid step, everything VMEM-resident):
#   embedding_h -> NUM_LAYERS GCN layers -> node MLP readout
# Output: merged lane-dense bf16 slab, lanes [0,32) = final h, [32,128) = vel.
# ----------------------------------------------------------------------------
def _node_kernel(h0_ref, a_ref, w_emb_ref, b_emb_ref, w_gcn_ref, b_gcn_ref,
                 wn1_ref, bn1_ref, wn2_ref, bn2_ref, wn3_ref, bn3_ref, out_ref):
    # embedding_h (no activation in the reference)
    h = (jnp.dot(h0_ref[...], w_emb_ref[...], preferred_element_type=jnp.float32)
         + b_emb_ref[...])                                     # (n_pad, H) f32

    a = a_ref[...]                                             # (n_pad, n_pad) bf16
    for l in range(NUM_LAYERS):                                # static unroll
        # aggregation: bf16 x bf16 on the MXU, f32 accumulate; h itself stays f32
        agg = jnp.dot(a, h.astype(jnp.bfloat16), preferred_element_type=jnp.float32)
        z = (jnp.dot(agg, w_gcn_ref[l], preferred_element_type=jnp.float32)
             + b_gcn_ref[l])
        h = h + jnp.maximum(z, 0.0)                            # relu + residual, f32

    # node MLPReadout 32 -> 16 -> 8 -> 3 (final weights padded to 96 lanes)
    x = jnp.maximum(jnp.dot(h, wn1_ref[...], preferred_element_type=jnp.float32)
                    + bn1_ref[...], 0.0)
    x = jnp.maximum(jnp.dot(x, wn2_ref[...], preferred_element_type=jnp.float32)
                    + bn2_ref[...], 0.0)
    vel = (jnp.dot(x, wn3_ref[...], preferred_element_type=jnp.float32)
           + bn3_ref[...])                                     # (n_pad, 96) f32

    # merged lane-dense bf16 slab
    out_ref[:, :HIDDEN] = h.astype(out_ref.dtype)
    out_ref[:, HIDDEN:] = vel.astype(out_ref.dtype)


# ----------------------------------------------------------------------------
# Fused edge-head kernel: one stacked one-hot bf16 MXU gather of (src, dst)
# rows of the resident h slab + edge MLP.  grid = (edge_tile,), "parallel".
# ids_ref holds [src tile ; dst tile] stacked along sublanes (2*tile_e, 1).
# ----------------------------------------------------------------------------
def _edge_kernel(ids_ref, slab_ref, we1_ref, be1_ref, we2_ref, be2_ref,
                 we3_ref, be3_ref, out_ref):
    two_te = ids_ref.shape[0]
    tile_e = two_te // 2
    n_pad = slab_ref.shape[0]

    col = jax.lax.broadcasted_iota(jnp.int32, (two_te, n_pad), 1)
    onehot = (col == ids_ref[...]).astype(jnp.bfloat16)        # exact 0/1 selector
    # single bf16 MXU matmul gathers both h_src and h_dst (f32 accumulate = exact)
    g = jnp.dot(onehot, slab_ref[...], preferred_element_type=jnp.float32)
    h_src = g[:tile_e, :HIDDEN]
    h_dst = g[tile_e:, :HIDDEN]

    # edge MLP on cat(h_src, h_dst): first weight split to avoid a lane concat
    x = (jnp.dot(h_src, we1_ref[:HIDDEN, :], preferred_element_type=jnp.float32)
         + jnp.dot(h_dst, we1_ref[HIDDEN:, :], preferred_element_type=jnp.float32)
         + be1_ref[...])
    x = jnp.maximum(x, 0.0)
    x = jnp.maximum(jnp.dot(x, we2_ref[...], preferred_element_type=jnp.float32)
                    + be2_ref[...], 0.0)
    out_ref[...] = (jnp.dot(x, we3_ref[...], preferred_element_type=jnp.float32)
                    + be3_ref[...])


# ----------------------------------------------------------------------------
# Parameter construction (deterministic, synthetic)
# ----------------------------------------------------------------------------
def _init_linear(key, din, dout, scale=0.1):
    kw, kb = jax.random.split(key)
    w = scale * jax.random.normal(kw, (din, dout), jnp.float32)
    b = scale * jax.random.normal(kb, (1, dout), jnp.float32)
    return w, b


def _init_mlp_readout(key, din, dout, L=2):
    """MLPReadout: L halving FC+relu layers, then final FC."""
    dims = [din // (2 ** l) for l in range(L + 1)] + [dout]
    keys = jax.random.split(key, L + 1)
    return [_init_linear(keys[i], dims[i], dims[i + 1]) for i in range(L + 1)]


def init_params(key):
    k_emb, k_layers, k_node, k_edge = jax.random.split(key, 4)
    params = {'embedding_h': _init_linear(k_emb, IN_DIM_NODE, HIDDEN)}
    lk = jax.random.split(k_layers, NUM_LAYERS)
    params['layers'] = [_init_linear(lk[i], HIDDEN, HIDDEN) for i in range(NUM_LAYERS)]
    params['mlp_node_vel'] = _init_mlp_readout(k_node, HIDDEN, OUT_DIM_NODE)
    params['mlp_edge_e'] = _init_mlp_readout(k_edge, 2 * HIDDEN, OUT_DIM_EDGE)
    # residual inside the GCN layer requires in_dim == out_dim == hidden
    assert params['layers'][0][0].shape == (HIDDEN, HIDDEN)
    return params


def _pad2d(x, rows=None, cols=None):
    r = x.shape[0] if rows is None else rows
    c = x.shape[1] if cols is None else cols
    return jnp.zeros((r, c), x.dtype).at[:x.shape[0], :x.shape[1]].set(x)


def prepare_kernel_params(params):
    """Zero-pad / stack parameters into kernel-friendly (lane-dense) layouts."""
    w_emb, b_emb = params['embedding_h']
    kp = {'w_emb': _pad2d(w_emb, rows=IN_PAD),          # (8, 32): padded inputs add 0
          'b_emb': b_emb,
          'w_gcn': jnp.stack([w for (w, _) in params['layers']]),   # (L, 32, 32)
          'b_gcn': jnp.stack([b for (_, b) in params['layers']])}   # (L, 1, 32)
    (wn1, bn1), (wn2, bn2), (wn3, bn3) = params['mlp_node_vel']
    kp.update(wn1=wn1, bn1=bn1, wn2=wn2, bn2=bn2,
              wn3=_pad2d(wn3, cols=LANE - HIDDEN),       # vel lands in slab lanes 32..
              bn3=_pad2d(bn3, cols=LANE - HIDDEN))
    (we1, be1), (we2, be2), (we3, be3) = params['mlp_edge_e']
    kp.update(we1=we1, be1=be1, we2=we2, be2=be2,
              we3=_pad2d(we3, cols=LANE), be3=_pad2d(be3, cols=LANE))
    return kp


# ----------------------------------------------------------------------------
# Graph construction: binary undirected adjacency + exactly one self loop per
# real node, symmetric normalization, built DIRECTLY at padded size in the
# streaming dtype (bf16).  Padded rows/cols are all zero.
# ----------------------------------------------------------------------------
def build_sym_norm_adj(n, n_pad, src, dst, dtype=jnp.bfloat16):
    a = jnp.zeros((n_pad, n_pad), jnp.float32).at[dst, src].add(1.0)
    a = jnp.minimum(a, 1.0)                 # de-duplicate multi-edges (binary adj)
    a = jnp.maximum(a, a.T)                 # undirected (Kipf-style GCN)
    idx = jnp.arange(n)
    a = a.at[idx, idx].set(1.0)             # self-loops only for real nodes
    deg = jnp.sum(a, axis=1)
    d = jax.lax.rsqrt(jnp.maximum(deg, 1e-12))
    return (a * d[:, None] * d[None, :]).astype(dtype)


# ----------------------------------------------------------------------------
# GCNNet forward (2 pallas_calls total)
# ----------------------------------------------------------------------------
def gcn_net_forward(params, h_dict, e_dict, src, dst, *, tile_e=128):
    assert tile_e % 8 == 0
    kp = prepare_kernel_params(params)

    # h = cat(node inputs); pad features 5 -> 8 and rows -> multiple of ROW_ALIGN.
    h0 = jnp.concatenate([h_dict[k] for k in ('vel', 'pos')], axis=-1)
    n = h0.shape[0]
    n_pad = -(-n // ROW_ALIGN) * ROW_ALIGN
    h0 = _pad2d(h0, rows=n_pad, cols=IN_PAD)

    # normalized adjacency built directly at padded size (no extra O(N^2) copy)
    a_pad = build_sym_norm_adj(n, n_pad, src, dst, dtype=jnp.bfloat16)

    # e = cat(edge inputs). embed_edge == False -> carried unchanged by the layers
    # and then overwritten by apply_edges, so it does not affect any output.
    _ = jnp.concatenate([e_dict[k] for k in ('dist',)], axis=-1)

    a_bytes = 2 * n_pad * n_pad
    # TODO(synk): streamed-A multi-stage path for graphs whose bf16 adjacency does
    # not fit VMEM; this A-resident fast path reads A from HBM exactly once.
    assert a_bytes <= 18 * 2**20, "A-resident node path: adjacency too large for VMEM"
    vmem_limit = int(min(48 * 2**20, max(16 * 2**20, 2 * a_bytes + (8 << 20))))

    _c2 = lambda i: (0, 0)
    _c3 = lambda i: (0, 0, 0)

    # --- fused node path: one grid step, everything resident ------------------
    slab = pl.pallas_call(
        _node_kernel,
        out_shape=jax.ShapeDtypeStruct((n_pad, LANE), jnp.bfloat16),
        grid_spec=pltpu.PrefetchScalarGridSpec(
            num_scalar_prefetch=0,
            grid=(1,),
            in_specs=[
                pl.BlockSpec((n_pad, IN_PAD), _c2),
                pl.BlockSpec((n_pad, n_pad), _c2),             # bf16 A, VMEM-resident
                pl.BlockSpec((IN_PAD, HIDDEN), _c2),
                pl.BlockSpec((1, HIDDEN), _c2),
                pl.BlockSpec((NUM_LAYERS, HIDDEN, HIDDEN), _c3),
                pl.BlockSpec((NUM_LAYERS, 1, HIDDEN), _c3),
                pl.BlockSpec((HIDDEN, NMLP1), _c2),
                pl.BlockSpec((1, NMLP1), _c2),
                pl.BlockSpec((NMLP1, NMLP2), _c2),
                pl.BlockSpec((1, NMLP2), _c2),
                pl.BlockSpec((NMLP2, LANE - HIDDEN), _c2),
                pl.BlockSpec((1, LANE - HIDDEN), _c2),
            ],
            out_specs=pl.BlockSpec((n_pad, LANE), _c2),        # merged bf16 slab
        ),
        compiler_params=pltpu.CompilerParams(
            dimension_semantics=("arbitrary",),
            vmem_limit_bytes=vmem_limit),
    )(h0, a_pad, kp['w_emb'], kp['b_emb'], kp['w_gcn'], kp['b_gcn'],
      kp['wn1'], kp['bn1'], kp['wn2'], kp['bn2'], kp['wn3'], kp['bn3'])

    # --- edge readout: stacked one-hot bf16 gather + edge MLP -----------------
    e_n = src.shape[0]
    e_tiles = -(-e_n // tile_e)
    e_pad_n = e_tiles * tile_e
    src_p = jnp.zeros((e_pad_n,), jnp.int32).at[:e_n].set(src.astype(jnp.int32))
    dst_p = jnp.zeros((e_pad_n,), jnp.int32).at[:e_n].set(dst.astype(jnp.int32))
    # per-tile stacked ids: rows [2t*te, 2t*te+te) = src tile t, next te rows = dst tile t
    ids = jnp.concatenate([src_p.reshape(e_tiles, tile_e),
                           dst_p.reshape(e_tiles, tile_e)], axis=1).reshape(-1, 1)

    e_out_pad = pl.pallas_call(
        _edge_kernel,
        out_shape=jax.ShapeDtypeStruct((e_pad_n, LANE), jnp.float32),
        grid_spec=pltpu.PrefetchScalarGridSpec(
            num_scalar_prefetch=0,
            grid=(e_tiles,),
            in_specs=[
                pl.BlockSpec((2 * tile_e, 1), lambda e: (e, 0)),
                pl.BlockSpec((n_pad, LANE), lambda e: (0, 0)),  # bf16 h slab, resident
                pl.BlockSpec((2 * HIDDEN, EMLP1), lambda e: (0, 0)),
                pl.BlockSpec((1, EMLP1), lambda e: (0, 0)),
                pl.BlockSpec((EMLP1, EMLP2), lambda e: (0, 0)),
                pl.BlockSpec((1, EMLP2), lambda e: (0, 0)),
                pl.BlockSpec((EMLP2, LANE), lambda e: (0, 0)),
                pl.BlockSpec((1, LANE), lambda e: (0, 0)),
            ],
            out_specs=pl.BlockSpec((tile_e, LANE), lambda e: (e, 0)),
        ),
        compiler_params=pltpu.CompilerParams(dimension_semantics=("parallel",)),
    )(ids, slab, kp['we1'], kp['be1'], kp['we2'], kp['be2'], kp['we3'], kp['be3'])

    h_out = {'vel': slab[:n, HIDDEN:HIDDEN + OUT_DIM_NODE].astype(jnp.float32)}
    e_out = {'e': e_out_pad[:e_n, :OUT_DIM_EDGE]}
    return h_out, e_out


# ----------------------------------------------------------------------------
# Pure-JAX reference (same math, f32 everywhere) for a sanity check
# ----------------------------------------------------------------------------
def reference_forward(params, a_norm, h_dict, src, dst):
    a = a_norm.astype(jnp.float32)
    h = jnp.concatenate([h_dict['vel'], h_dict['pos']], axis=-1)
    w_emb, b_emb = params['embedding_h']
    h = h @ w_emb + b_emb
    for (w, b) in params['layers']:
        h = h + jnp.maximum((a @ h) @ w + b, 0.0)

    def mlp(ps, x):
        *hid, (wl, bl) = ps
        for (w, b) in hid:
            x = jnp.maximum(x @ w + b, 0.0)
        return x @ wl + bl

    vel = mlp(params['mlp_node_vel'], h)
    ef = jnp.concatenate([h[src], h[dst]], axis=-1)
    return vel, mlp(params['mlp_edge_e'], ef)


if __name__ == "__main__":
    key = jax.random.PRNGKey(0)
    k_vel, k_pos, k_dist, k_src, k_dst, k_params = jax.random.split(key, 6)

    N, E = 48, 96      # small graph; padded to 128 nodes / 1 edge tile
    h_dict = {
        'vel': jax.random.normal(k_vel, (N, 3), jnp.float32),
        'pos': jax.random.normal(k_pos, (N, 2), jnp.float32),
    }
    e_dict = {'dist': jax.random.normal(k_dist, (E, 1), jnp.float32)}
    src = jax.random.randint(k_src, (E,), 0, N)
    dst = jax.random.randint(k_dst, (E,), 0, N)

    params = init_params(k_params)

    fwd = jax.jit(gcn_net_forward)
    h_out, e_out = fwd(params, h_dict, e_dict, src, dst)
    jax.block_until_ready((h_out, e_out))

    assert h_out['vel'].shape == (N, OUT_DIM_NODE)
    assert e_out['e'].shape == (E, OUT_DIM_EDGE)

    # check vs f32 dense reference (kernel uses bf16 A / bf16 MXU operands /
    # bf16 output slab; inter-layer h itself stays f32)
    a_bf = build_sym_norm_adj(N, N, src, dst, dtype=jnp.bfloat16)
    vel_ref, e_ref = reference_forward(params, a_bf, h_dict, src, dst)
    err_v = float(jnp.max(jnp.abs(h_out['vel'] - vel_ref)))
    err_e = float(jnp.max(jnp.abs(e_out['e'] - e_ref)))
    assert err_v < 3e-2 and err_e < 3e-2, (err_v, err_e)

    print("KERNEL_OK")
</pallas_src>

<mosaic_0001>
module attributes {stable_mosaic.version = 11 : i64} {
  func.func private @main(%arg0: i32) attributes {dimension_semantics = [#tpu.dimension_semantics<core_parallel>], iteration_bounds = array<i64: 2>, tpu.core_type = #tpu.core_type<sc_scalar_subcore>, window_params = []} {
    return
  }
}

module attributes {stable_mosaic.version = 11 : i64} {
  func.func private @main(%arg0: i32) attributes {dimension_semantics = [#tpu.dimension_semantics<core_parallel>], iteration_bounds = array<i64: 2>, tpu.core_type = #tpu.core_type<sc_scalar_subcore>, window_params = []} {
    return
  }
}

module attributes {stable_mosaic.version = 11 : i64} {
  func.func @_node_kernel(%arg0: i32, %arg1: memref<128x8xf32, #tpu.memory_space<vmem>>, %arg2: memref<128x128xbf16, #tpu.memory_space<vmem>>, %arg3: memref<8x32xf32, #tpu.memory_space<vmem>>, %arg4: memref<1x32xf32, #tpu.memory_space<vmem>>, %arg5: memref<2x32x32xf32, #tpu.memory_space<vmem>>, %arg6: memref<2x1x32xf32, #tpu.memory_space<vmem>>, %arg7: memref<32x16xf32, #tpu.memory_space<vmem>>, %arg8: memref<1x16xf32, #tpu.memory_space<vmem>>, %arg9: memref<16x8xf32, #tpu.memory_space<vmem>>, %arg10: memref<1x8xf32, #tpu.memory_space<vmem>>, %arg11: memref<8x96xf32, #tpu.memory_space<vmem>>, %arg12: memref<1x96xf32, #tpu.memory_space<vmem>>, %arg13: memref<128x128xbf16, #tpu.memory_space<vmem>>) attributes {dimension_semantics = [#tpu.dimension_semantics<arbitrary>], iteration_bounds = array<i64: 1>, scalar_prefetch = 0 : i64, scratch_operands = 0 : i64, tpu.core_type = #tpu.core_type<tc>, window_params = [{pipeline_mode = #tpu.pipeline_mode<synchronous>, transform_indices = @transform_0, window_bounds = array<i64: 128, 8>}, {pipeline_mode = #tpu.pipeline_mode<synchronous>, transform_indices = @transform_1, window_bounds = array<i64: 128, 128>}, {pipeline_mode = #tpu.pipeline_mode<synchronous>, transform_indices = @transform_2, window_bounds = array<i64: 8, 32>}, {pipeline_mode = #tpu.pipeline_mode<synchronous>, transform_indices = @transform_3, window_bounds = array<i64: 1, 32>}, {pipeline_mode = #tpu.pipeline_mode<synchronous>, transform_indices = @transform_4, window_bounds = array<i64: 2, 32, 32>}, {pipeline_mode = #tpu.pipeline_mode<synchronous>, transform_indices = @transform_5, window_bounds = array<i64: 2, 1, 32>}, {pipeline_mode = #tpu.pipeline_mode<synchronous>, transform_indices = @transform_6, window_bounds = array<i64: 32, 16>}, {pipeline_mode = #tpu.pipeline_mode<synchronous>, transform_indices = @transform_7, window_bounds = array<i64: 1, 16>}, {pipeline_mode = #tpu.pipeline_mode<synchronous>, transform_indices = @transform_8, window_bounds = array<i64: 16, 8>}, {pipeline_mode = #tpu.pipeline_mode<synchronous>, transform_indices = @transform_9, window_bounds = array<i64: 1, 8>}, {pipeline_mode = #tpu.pipeline_mode<synchronous>, transform_indices = @transform_10, window_bounds = array<i64: 8, 96>}, {pipeline_mode = #tpu.pipeline_mode<synchronous>, transform_indices = @transform_11, window_bounds = array<i64: 1, 96>}, {pipeline_mode = #tpu.pipeline_mode<synchronous>, transform_indices = @transform_12, window_bounds = array<i64: 128, 128>}]} {
    %c0 = arith.constant 0 : index
    %c0_0 = arith.constant 0 : index
    %0 = vector.load %arg1[%c0, %c0_0] : memref<128x8xf32, #tpu.memory_space<vmem>>, vector<128x8xf32>
    %c0_1 = arith.constant 0 : index
    %c0_2 = arith.constant 0 : index
    %1 = vector.load %arg3[%c0_1, %c0_2] : memref<8x32xf32, #tpu.memory_space<vmem>>, vector<8x32xf32>
    %cst = arith.constant dense<0.000000e+00> : vector<128x32xf32>
    %2 = tpu.matmul %0, %1, %cst {dimension_numbers = #tpu.dot_dimension_numbers<[1], [0], [0], [1], [0, 0, 1, 1], [], []>} : vector<128x8xf32>, vector<8x32xf32>, vector<128x32xf32> -> vector<128x32xf32>
    %c0_3 = arith.constant 0 : index
    %c0_4 = arith.constant 0 : index
    %3 = vector.load %arg4[%c0_3, %c0_4] : memref<1x32xf32, #tpu.memory_space<vmem>>, vector<1x32xf32>
    %4 = vector.broadcast %3 : vector<1x32xf32> to vector<128x32xf32>
    %5 = arith.addf %2, %4 : vector<128x32xf32>
    %c0_5 = arith.constant 0 : index
    %c0_6 = arith.constant 0 : index
    %6 = vector.load %arg2[%c0_5, %c0_6] : memref<128x128xbf16, #tpu.memory_space<vmem>>, vector<128x128xbf16>
    %7 = arith.truncf %5 : vector<128x32xf32> to vector<128x32xbf16>
    %cst_7 = arith.constant dense<0.000000e+00> : vector<128x32xf32>
    %8 = tpu.matmul %6, %7, %cst_7 {dimension_numbers = #tpu.dot_dimension_numbers<[1], [0], [0], [1], [0, 0, 1, 1], [], []>} : vector<128x128xbf16>, vector<128x32xbf16>, vector<128x32xf32> -> vector<128x32xf32>
    %c0_8 = arith.constant 0 : index
    %c0_9 = arith.constant 0 : index
    %c0_10 = arith.constant 0 : index
    %9 = vector.load %arg5[%c0_8, %c0_9, %c0_10] : memref<2x32x32xf32, #tpu.memory_space<vmem>>, vector<1x32x32xf32>
    %10 = vector.shape_cast %9 : vector<1x32x32xf32> to vector<32x32xf32>
    %cst_11 = arith.constant dense<0.000000e+00> : vector<128x32xf32>
    %11 = tpu.matmul %8, %10, %cst_11 {dimension_numbers = #tpu.dot_dimension_numbers<[1], [0], [0], [1], [0, 0, 1, 1], [], []>} : vector<128x32xf32>, vector<32x32xf32>, vector<128x32xf32> -> vector<128x32xf32>
    %c0_12 = arith.constant 0 : index
    %c0_13 = arith.constant 0 : index
    %c0_14 = arith.constant 0 : index
    %12 = vector.load %arg6[%c0_12, %c0_13, %c0_14] : memref<2x1x32xf32, #tpu.memory_space<vmem>>, vector<1x1x32xf32>
    %13 = vector.shape_cast %12 : vector<1x1x32xf32> to vector<1x32xf32>
    %14 = vector.broadcast %13 : vector<1x32xf32> to vector<128x32xf32>
    %15 = arith.addf %11, %14 : vector<128x32xf32>
    %cst_15 = arith.constant 0.000000e+00 : f32
    %16 = vector.broadcast %cst_15 : f32 to vector<128x32xf32>
    %17 = arith.maximumf %15, %16 : vector<128x32xf32>
    %18 = arith.addf %5, %17 : vector<128x32xf32>
    %19 = arith.truncf %18 : vector<128x32xf32> to vector<128x32xbf16>
    %cst_16 = arith.constant dense<0.000000e+00> : vector<128x32xf32>
    %20 = tpu.matmul %6, %19, %cst_16 {dimension_numbers = #tpu.dot_dimension_numbers<[1], [0], [0], [1], [0, 0, 1, 1], [], []>} : vector<128x128xbf16>, vector<128x32xbf16>, vector<128x32xf32> -> vector<128x32xf32>
    %c1 = arith.constant 1 : index
    %c0_17 = arith.constant 0 : index
    %c0_18 = arith.constant 0 : index
    %21 = vector.load %arg5[%c1, %c0_17, %c0_18] : memref<2x32x32xf32, #tpu.memory_space<vmem>>, vector<1x32x32xf32>
    %22 = vector.shape_cast %21 : vector<1x32x32xf32> to vector<32x32xf32>
    %cst_19 = arith.constant dense<0.000000e+00> : vector<128x32xf32>
    %23 = tpu.matmul %20, %22, %cst_19 {dimension_numbers = #tpu.dot_dimension_numbers<[1], [0], [0], [1], [0, 0, 1, 1], [], []>} : vector<128x32xf32>, vector<32x32xf32>, vector<128x32xf32> -> vector<128x32xf32>
    %c1_20 = arith.constant 1 : index
    %c0_21 = arith.constant 0 : index
    %c0_22 = arith.constant 0 : index
    %24 = vector.load %arg6[%c1_20, %c0_21, %c0_22] : memref<2x1x32xf32, #tpu.memory_space<vmem>>, vector<1x1x32xf32>
    %25 = vector.shape_cast %24 : vector<1x1x32xf32> to vector<1x32xf32>
    %26 = vector.broadcast %25 : vector<1x32xf32> to vector<128x32xf32>
    %27 = arith.addf %23, %26 : vector<128x32xf32>
    %cst_23 = arith.constant 0.000000e+00 : f32
    %28 = vector.broadcast %cst_23 : f32 to vector<128x32xf32>
    %29 = arith.maximumf %27, %28 : vector<128x32xf32>
    %30 = arith.addf %18, %29 : vector<128x32xf32>
    %c0_24 = arith.constant 0 : index
    %c0_25 = arith.constant 0 : index
    %31 = vector.load %arg7[%c0_24, %c0_25] : memref<32x16xf32, #tpu.memory_space<vmem>>, vector<32x16xf32>
    %cst_26 = arith.constant dense<0.000000e+00> : vector<128x16xf32>
    %32 = tpu.matmul %30, %31, %cst_26 {dimension_numbers = #tpu.dot_dimension_numbers<[1], [0], [0], [1], [0, 0, 1, 1], [], []>} : vector<128x32xf32>, vector<32x16xf32>, vector<128x16xf32> -> vector<128x16xf32>
    %c0_27 = arith.constant 0 : index
    %c0_28 = arith.constant 0 : index
    %33 = vector.load %arg8[%c0_27, %c0_28] : memref<1x16xf32, #tpu.memory_space<vmem>>, vector<1x16xf32>
    %34 = vector.broadcast %33 : vector<1x16xf32> to vector<128x16xf32>
    %35 = arith.addf %32, %34 : vector<128x16xf32>
    %cst_29 = arith.constant 0.000000e+00 : f32
    %36 = vector.broadcast %cst_29 : f32 to vector<128x16xf32>
    %37 = arith.maximumf %35, %36 : vector<128x16xf32>
    %c0_30 = arith.constant 0 : index
    %c0_31 = arith.constant 0 : index
    %38 = vector.load %arg9[%c0_30, %c0_31] : memref<16x8xf32, #tpu.memory_space<vmem>>, vector<16x8xf32>
    %cst_32 = arith.constant dense<0.000000e+00> : vector<128x8xf32>
    %39 = tpu.matmul %37, %38, %cst_32 {dimension_numbers = #tpu.dot_dimension_numbers<[1], [0], [0], [1], [0, 0, 1, 1], [], []>} : vector<128x16xf32>, vector<16x8xf32>, vector<128x8xf32> -> vector<128x8xf32>
    %c0_33 = arith.constant 0 : index
    %c0_34 = arith.constant 0 : index
    %40 = vector.load %arg10[%c0_33, %c0_34] : memref<1x8xf32, #tpu.memory_space<vmem>>, vector<1x8xf32>
    %41 = vector.broadcast %40 : vector<1x8xf32> to vector<128x8xf32>
    %42 = arith.addf %39, %41 : vector<128x8xf32>
    %cst_35 = arith.constant 0.000000e+00 : f32
    %43 = vector.broadcast %cst_35 : f32 to vector<128x8xf32>
    %44 = arith.maximumf %42, %43 : vector<128x8xf32>
    %c0_36 = arith.constant 0 : index
    %c0_37 = arith.constant 0 : index
    %45 = vector.load %arg11[%c0_36, %c0_37] : memref<8x96xf32, #tpu.memory_space<vmem>>, vector<8x96xf32>
    %cst_38 = arith.constant dense<0.000000e+00> : vector<128x96xf32>
    %46 = tpu.matmul %44, %45, %cst_38 {dimension_numbers = #tpu.dot_dimension_numbers<[1], [0], [0], [1], [0, 0, 1, 1], [], []>} : vector<128x8xf32>, vector<8x96xf32>, vector<128x96xf32> -> vector<128x96xf32>
    %c0_39 = arith.constant 0 : index
    %c0_40 = arith.constant 0 : index
    %47 = vector.load %arg12[%c0_39, %c0_40] : memref<1x96xf32, #tpu.memory_space<vmem>>, vector<1x96xf32>
    %48 = vector.broadcast %47 : vector<1x96xf32> to vector<128x96xf32>
    %49 = arith.addf %46, %48 : vector<128x96xf32>
    %50 = arith.truncf %30 : vector<128x32xf32> to vector<128x32xbf16>
    %c0_41 = arith.constant 0 : index
    %c0_42 = arith.constant 0 : index
    %51 = vector.load %arg13[%c0_41, %c0_42] : memref<128x128xbf16, #tpu.memory_space<vmem>>, vector<128x32xbf16>
    tpu.vector_store %arg13[%c0_41, %c0_42], %50 {strides = array<i32>} : memref<128x128xbf16, #tpu.memory_space<vmem>>, vector<128x32xbf16>,
    %52 = arith.truncf %49 : vector<128x96xf32> to vector<128x96xbf16>
    %c0_43 = arith.constant 0 : index
    %c32 = arith.constant 32 : index
    %53 = vector.load %arg13[%c0_43, %c32] : memref<128x128xbf16, #tpu.memory_space<vmem>>, vector<128x96xbf16>
    tpu.vector_store %arg13[%c0_43, %c32], %52 {strides = array<i32>} : memref<128x128xbf16, #tpu.memory_space<vmem>>, vector<128x96xbf16>,
    return
  }
  func.func @transform_0(%arg0: i32) -> (i32, i32) {
    %c0_i32 = arith.constant 0 : i32
    %c0_i32_0 = arith.constant 0 : i32
    %c0_i32_1 = arith.constant 0 : i32
    return %c0_i32, %c0_i32_0 : i32, i32
  }
  func.func @transform_1(%arg0: i32) -> (i32, i32) {
    %c0_i32 = arith.constant 0 : i32
    %c0_i32_0 = arith.constant 0 : i32
    %c0_i32_1 = arith.constant 0 : i32
    return %c0_i32, %c0_i32_0 : i32, i32
  }
  func.func @transform_2(%arg0: i32) -> (i32, i32) {
    %c0_i32 = arith.constant 0 : i32
    %c0_i32_0 = arith.constant 0 : i32
    %c0_i32_1 = arith.constant 0 : i32
    return %c0_i32, %c0_i32_0 : i32, i32
  }
  func.func @transform_3(%arg0: i32) -> (i32, i32) {
    %c0_i32 = arith.constant 0 : i32
    %c0_i32_0 = arith.constant 0 : i32
    %c0_i32_1 = arith.constant 0 : i32
    return %c0_i32, %c0_i32_0 : i32, i32
  }
  func.func @transform_4(%arg0: i32) -> (i32, i32, i32) {
    %c0_i32 = arith.constant 0 : i32
    %c0_i32_0 = arith.constant 0 : i32
    %c0_i32_1 = arith.constant 0 : i32
    %c0_i32_2 = arith.constant 0 : i32
    return %c0_i32, %c0_i32_0, %c0_i32_1 : i32, i32, i32
  }
  func.func @transform_5(%arg0: i32) -> (i32, i32, i32) {
    %c0_i32 = arith.constant 0 : i32
    %c0_i32_0 = arith.constant 0 : i32
    %c0_i32_1 = arith.constant 0 : i32
    %c0_i32_2 = arith.constant 0 : i32
    return %c0_i32, %c0_i32_0, %c0_i32_1 : i32, i32, i32
  }
  func.func @transform_6(%arg0: i32) -> (i32, i32) {
    %c0_i32 = arith.constant 0 : i32
    %c0_i32_0 = arith.constant 0 : i32
    %c0_i32_1 = arith.constant 0 : i32
    return %c0_i32, %c0_i32_0 : i32, i32
  }
  func.func @transform_7(%arg0: i32) -> (i32, i32) {
    %c0_i32 = arith.constant 0 : i32
    %c0_i32_0 = arith.constant 0 : i32
    %c0_i32_1 = arith.constant 0 : i32
    return %c0_i32, %c0_i32_0 : i32, i32
  }
  func.func @transform_8(%arg0: i32) -> (i32, i32) {
    %c0_i32 = arith.constant 0 : i32
    %c0_i32_0 = arith.constant 0 : i32
    %c0_i32_1 = arith.constant 0 : i32
    return %c0_i32, %c0_i32_0 : i32, i32
  }
  func.func @transform_9(%arg0: i32) -> (i32, i32) {
    %c0_i32 = arith.constant 0 : i32
    %c0_i32_0 = arith.constant 0 : i32
    %c0_i32_1 = arith.constant 0 : i32
    return %c0_i32, %c0_i32_0 : i32, i32
  }
  func.func @transform_10(%arg0: i32) -> (i32, i32) {
    %c0_i32 = arith.constant 0 : i32
    %c0_i32_0 = arith.constant 0 : i32
    %c0_i32_1 = arith.constant 0 : i32
    return %c0_i32, %c0_i32_0 : i32, i32
  }
  func.func @transform_11(%arg0: i32) -> (i32, i32) {
    %c0_i32 = arith.constant 0 : i32
    %c0_i32_0 = arith.constant 0 : i32
    %c0_i32_1 = arith.constant 0 : i32
    return %c0_i32, %c0_i32_0 : i32, i32
  }
  func.func @transform_12(%arg0: i32) -> (i32, i32) {
    %c0_i32 = arith.constant 0 : i32
    %c0_i32_0 = arith.constant 0 : i32
    %c0_i32_1 = arith.constant 0 : i32
    return %c0_i32, %c0_i32_0 : i32, i32
  }
}

module attributes {stable_mosaic.version = 11 : i64} {
  func.func @_edge_kernel(%arg0: i32, %arg1: memref<256x1xi32, #tpu.memory_space<vmem>>, %arg2: memref<128x128xbf16, #tpu.memory_space<vmem>>, %arg3: memref<64x32xf32, #tpu.memory_space<vmem>>, %arg4: memref<1x32xf32, #tpu.memory_space<vmem>>, %arg5: memref<32x16xf32, #tpu.memory_space<vmem>>, %arg6: memref<1x16xf32, #tpu.memory_space<vmem>>, %arg7: memref<16x128xf32, #tpu.memory_space<vmem>>, %arg8: memref<1x128xf32, #tpu.memory_space<vmem>>, %arg9: memref<128x128xf32, #tpu.memory_space<vmem>>) attributes {dimension_semantics = [#tpu.dimension_semantics<parallel>], iteration_bounds = array<i64: 1>, scalar_prefetch = 0 : i64, scratch_operands = 0 : i64, tpu.core_type = #tpu.core_type<tc>, window_params = [{transform_indices = @transform_0, window_bounds = array<i64: 256, 1>}, {pipeline_mode = #tpu.pipeline_mode<synchronous>, transform_indices = @transform_1, window_bounds = array<i64: 128, 128>}, {pipeline_mode = #tpu.pipeline_mode<synchronous>, transform_indices = @transform_2, window_bounds = array<i64: 64, 32>}, {pipeline_mode = #tpu.pipeline_mode<synchronous>, transform_indices = @transform_3, window_bounds = array<i64: 1, 32>}, {pipeline_mode = #tpu.pipeline_mode<synchronous>, transform_indices = @transform_4, window_bounds = array<i64: 32, 16>}, {pipeline_mode = #tpu.pipeline_mode<synchronous>, transform_indices = @transform_5, window_bounds = array<i64: 1, 16>}, {pipeline_mode = #tpu.pipeline_mode<synchronous>, transform_indices = @transform_6, window_bounds = array<i64: 16, 128>}, {pipeline_mode = #tpu.pipeline_mode<synchronous>, transform_indices = @transform_7, window_bounds = array<i64: 1, 128>}, {transform_indices = @transform_8, window_bounds = array<i64: 128, 128>}]} {
    %0 = tpu.iota {dimensions = array<i32: 1>} : vector<256x128xi32>
    %c0 = arith.constant 0 : index
    %c0_0 = arith.constant 0 : index
    %1 = vector.load %arg1[%c0, %c0_0] : memref<256x1xi32, #tpu.memory_space<vmem>>, vector<256x1xi32>
    %2 = vector.broadcast %1 : vector<256x1xi32> to vector<256x128xi32>
    %3 = arith.cmpi eq, %0, %2 : vector<256x128xi32>
    %4 = arith.extui %3 : vector<256x128xi1> to vector<256x128xi32>
    %5 = arith.sitofp %4 : vector<256x128xi32> to vector<256x128xf32>
    %6 = arith.truncf %5 : vector<256x128xf32> to vector<256x128xbf16>
    %c0_1 = arith.constant 0 : index
    %c0_2 = arith.constant 0 : index
    %7 = vector.load %arg2[%c0_1, %c0_2] : memref<128x128xbf16, #tpu.memory_space<vmem>>, vector<128x128xbf16>
    %cst = arith.constant dense<0.000000e+00> : vector<256x128xf32>
    %8 = tpu.matmul %6, %7, %cst {dimension_numbers = #tpu.dot_dimension_numbers<[1], [0], [0], [1], [0, 0, 1, 1], [], []>} : vector<256x128xbf16>, vector<128x128xbf16>, vector<256x128xf32> -> vector<256x128xf32>
    %9 = vector.extract_strided_slice %8 {offsets = [0, 0], sizes = [128, 32], strides = [1, 1]} : vector<256x128xf32> to vector<128x32xf32>
    %10 = vector.extract_strided_slice %8 {offsets = [128, 0], sizes = [128, 32], strides = [1, 1]} : vector<256x128xf32> to vector<128x32xf32>
    %c0_3 = arith.constant 0 : index
    %c0_4 = arith.constant 0 : index
    %11 = vector.load %arg3[%c0_3, %c0_4] : memref<64x32xf32, #tpu.memory_space<vmem>>, vector<32x32xf32>
    %cst_5 = arith.constant dense<0.000000e+00> : vector<128x32xf32>
    %12 = tpu.matmul %9, %11, %cst_5 {dimension_numbers = #tpu.dot_dimension_numbers<[1], [0], [0], [1], [0, 0, 1, 1], [], []>} : vector<128x32xf32>, vector<32x32xf32>, vector<128x32xf32> -> vector<128x32xf32>
    %c32 = arith.constant 32 : index
    %c0_6 = arith.constant 0 : index
    %13 = vector.load %arg3[%c32, %c0_6] : memref<64x32xf32, #tpu.memory_space<vmem>>, vector<32x32xf32>
    %cst_7 = arith.constant dense<0.000000e+00> : vector<128x32xf32>
    %14 = tpu.matmul %10, %13, %cst_7 {dimension_numbers = #tpu.dot_dimension_numbers<[1], [0], [0], [1], [0, 0, 1, 1], [], []>} : vector<128x32xf32>, vector<32x32xf32>, vector<128x32xf32> -> vector<128x32xf32>
    %15 = arith.addf %12, %14 : vector<128x32xf32>
    %c0_8 = arith.constant 0 : index
    %c0_9 = arith.constant 0 : index
    %16 = vector.load %arg4[%c0_8, %c0_9] : memref<1x32xf32, #tpu.memory_space<vmem>>, vector<1x32xf32>
    %17 = vector.broadcast %16 : vector<1x32xf32> to vector<128x32xf32>
    %18 = arith.addf %15, %17 : vector<128x32xf32>
    %cst_10 = arith.constant 0.000000e+00 : f32
    %19 = vector.broadcast %cst_10 : f32 to vector<128x32xf32>
    %20 = arith.maximumf %18, %19 : vector<128x32xf32>
    %c0_11 = arith.constant 0 : index
    %c0_12 = arith.constant 0 : index
    %21 = vector.load %arg5[%c0_11, %c0_12] : memref<32x16xf32, #tpu.memory_space<vmem>>, vector<32x16xf32>
    %cst_13 = arith.constant dense<0.000000e+00> : vector<128x16xf32>
    %22 = tpu.matmul %20, %21, %cst_13 {dimension_numbers = #tpu.dot_dimension_numbers<[1], [0], [0], [1], [0, 0, 1, 1], [], []>} : vector<128x32xf32>, vector<32x16xf32>, vector<128x16xf32> -> vector<128x16xf32>
    %c0_14 = arith.constant 0 : index
    %c0_15 = arith.constant 0 : index
    %23 = vector.load %arg6[%c0_14, %c0_15] : memref<1x16xf32, #tpu.memory_space<vmem>>, vector<1x16xf32>
    %24 = vector.broadcast %23 : vector<1x16xf32> to vector<128x16xf32>
    %25 = arith.addf %22, %24 : vector<128x16xf32>
    %cst_16 = arith.constant 0.000000e+00 : f32
    %26 = vector.broadcast %cst_16 : f32 to vector<128x16xf32>
    %27 = arith.maximumf %25, %26 : vector<128x16xf32>
    %c0_17 = arith.constant 0 : index
    %c0_18 = arith.constant 0 : index
    %28 = vector.load %arg7[%c0_17, %c0_18] : memref<16x128xf32, #tpu.memory_space<vmem>>, vector<16x128xf32>
    %cst_19 = arith.constant dense<0.000000e+00> : vector<128x128xf32>
    %29 = tpu.matmul %27, %28, %cst_19 {dimension_numbers = #tpu.dot_dimension_numbers<[1], [0], [0], [1], [0, 0, 1, 1], [], []>} : vector<128x16xf32>, vector<16x128xf32>, vector<128x128xf32> -> vector<128x128xf32>
    %c0_20 = arith.constant 0 : index
    %c0_21 = arith.constant 0 : index
    %30 = vector.load %arg8[%c0_20, %c0_21] : memref<1x128xf32, #tpu.memory_space<vmem>>, vector<1x128xf32>
    %31 = vector.broadcast %30 : vector<1x128xf32> to vector<128x128xf32>
    %32 = arith.addf %29, %31 : vector<128x128xf32>
    %c0_22 = arith.constant 0 : index
    %c0_23 = arith.constant 0 : index
    %33 = vector.load %arg9[%c0_22, %c0_23] : memref<128x128xf32, #tpu.memory_space<vmem>>, vector<128x128xf32>
    tpu.vector_store %arg9[%c0_22, %c0_23], %32 {strides = array<i32>} : memref<128x128xf32, #tpu.memory_space<vmem>>, vector<128x128xf32>,
    return
  }
  func.func @transform_0(%arg0: i32) -> (i32, i32) {
    %c0_i32 = arith.constant 0 : i32
    %c0_i32_0 = arith.constant 0 : i32
    return %arg0, %c0_i32 : i32, i32
  }
  func.func @transform_1(%arg0: i32) -> (i32, i32) {
    %c0_i32 = arith.constant 0 : i32
    %c0_i32_0 = arith.constant 0 : i32
    %c0_i32_1 = arith.constant 0 : i32
    return %c0_i32, %c0_i32_0 : i32, i32
  }
  func.func @transform_2(%arg0: i32) -> (i32, i32) {
    %c0_i32 = arith.constant 0 : i32
    %c0_i32_0 = arith.constant 0 : i32
    %c0_i32_1 = arith.constant 0 : i32
    return %c0_i32, %c0_i32_0 : i32, i32
  }
  func.func @transform_3(%arg0: i32) -> (i32, i32) {
    %c0_i32 = arith.constant 0 : i32
    %c0_i32_0 = arith.constant 0 : i32
    %c0_i32_1 = arith.constant 0 : i32
    return %c0_i32, %c0_i32_0 : i32, i32
  }
  func.func @transform_4(%arg0: i32) -> (i32, i32) {
    %c0_i32 = arith.constant 0 : i32
    %c0_i32_0 = arith.constant 0 : i32
    %c0_i32_1 = arith.constant 0 : i32
    return %c0_i32, %c0_i32_0 : i32, i32
  }
  func.func @transform_5(%arg0: i32) -> (i32, i32) {
    %c0_i32 = arith.constant 0 : i32
    %c0_i32_0 = arith.constant 0 : i32
    %c0_i32_1 = arith.constant 0 : i32
    return %c0_i32, %c0_i32_0 : i32, i32
  }
  func.func @transform_6(%arg0: i32) -> (i32, i32) {
    %c0_i32 = arith.constant 0 : i32
    %c0_i32_0 = arith.constant 0 : i32
    %c0_i32_1 = arith.constant 0 : i32
    return %c0_i32, %c0_i32_0 : i32, i32
  }
  func.func @transform_7(%arg0: i32) -> (i32, i32) {
    %c0_i32 = arith.constant 0 : i32
    %c0_i32_0 = arith.constant 0 : i32
    %c0_i32_1 = arith.constant 0 : i32
    return %c0_i32, %c0_i32_0 : i32, i32
  }
  func.func @transform_8(%arg0: i32) -> (i32, i32) {
    %c0_i32 = arith.constant 0 : i32
    %c0_i32_0 = arith.constant 0 : i32
    return %arg0, %c0_i32 : i32, i32
  }
}

</mosaic_0001>

<llo_original>
// kernel: gcn_net_forward.3
$region0: #{gcn_net_forward.3}
  #allocation0 [shape = 'u32[]', space=smem, size = 0x4, offset = 0x4, fixed_abs, tag = 'smem constant byte address 0x4 - core index']
  #allocation1 [shape = 'u32[144,128]{1,0:T(1,128)}', space=vmem, size = 0x12000, scoped, tag = 'internal scratch']
  %s0 = inlined_call_operand.vmem [shape: s32[256,1], index: 0, kind: input, shape index: {}]
  %s1 = inlined_call_operand.vmem [shape: bf16[128,128], index: 1, kind: input, shape index: {}]
  %s2 = inlined_call_operand.vmem [shape: f32[64,32], index: 2, kind: input, shape index: {}]
  %s3 = inlined_call_operand.vmem [shape: f32[1,32], index: 3, kind: input, shape index: {}]
  %s4 = inlined_call_operand.vmem [shape: f32[32,16], index: 4, kind: input, shape index: {}]
  %s5 = inlined_call_operand.vmem [shape: f32[1,16], index: 5, kind: input, shape index: {}]
  %s6 = inlined_call_operand.vmem [shape: f32[16,128], index: 6, kind: input, shape index: {}]
  %s7 = inlined_call_operand.vmem [shape: f32[1,128], index: 7, kind: input, shape index: {}]
  %s8 = inlined_call_operand.vmem [shape: f32[128,128], index: 8, kind: output, shape index: {}]
  %s9 = sld [smem:[#allocation0]]
  $region42: #{gcn_net_forward.3} parent=0
    _
  %s11 = ssub.s32 1, %s9
  %s12 = scalar_select 0, %s11, %s9
  // Predicated region
  $region2: #{gcn_net_forward.3} parent=0 // pred_check
    _
  $region3: #{gcn_net_forward.3} parent=0 // pred_check_branch
    %14 = sbr.rel (0) target = $region5
  $region4: #{gcn_net_forward.3} parent=0 // pred_region
    _
  $region5: #{gcn_net_forward.3} parent=0 // pred_fallthru
    _
  // Predicated region
  $region6: #{gcn_net_forward.3} parent=0 // pred_check
    _
  $region7: #{gcn_net_forward.3} parent=0 // pred_check_branch
    %16 = sbr.rel (0) target = $region9
  $region8: #{gcn_net_forward.3} parent=0 // pred_region
    _
  $region9: #{gcn_net_forward.3} parent=0 // pred_fallthru
    _
  // Predicated region
  $region10: #{gcn_net_forward.3} parent=0 // pred_check
    _
  $region11: #{gcn_net_forward.3} parent=0 // pred_check_branch
    %18 = sbr.rel (0) target = $region13
  $region12: #{gcn_net_forward.3} parent=0 // pred_region
    _
  $region13: #{gcn_net_forward.3} parent=0 // pred_fallthru
    _
  // Predicated region
  $region14: #{gcn_net_forward.3} parent=0 // pred_check
    _
  $region15: #{gcn_net_forward.3} parent=0 // pred_check_branch
    %20 = sbr.rel (0) target = $region17
  $region16: #{gcn_net_forward.3} parent=0 // pred_region
    _
  $region17: #{gcn_net_forward.3} parent=0 // pred_fallthru
    _
  // Predicated region
  $region18: #{gcn_net_forward.3} parent=0 // pred_check
    _
  $region19: #{gcn_net_forward.3} parent=0 // pred_check_branch
    %22 = sbr.rel (0) target = $region21
  $region20: #{gcn_net_forward.3} parent=0 // pred_region
    _
  $region21: #{gcn_net_forward.3} parent=0 // pred_fallthru
    _
  // Predicated region
  $region22: #{gcn_net_forward.3} parent=0 // pred_check
    _
  $region23: #{gcn_net_forward.3} parent=0 // pred_check_branch
    %24 = sbr.rel (0) target = $region25
  $region24: #{gcn_net_forward.3} parent=0 // pred_region
    _
  $region25: #{gcn_net_forward.3} parent=0 // pred_fallthru
    _
  // Predicated region
  $region26: #{gcn_net_forward.3} parent=0 // pred_check
    _
  $region27: #{gcn_net_forward.3} parent=0 // pred_check_branch
    %26 = sbr.rel (0) target = $region29
  $region28: #{gcn_net_forward.3} parent=0 // pred_region
    _
  $region29: #{gcn_net_forward.3} parent=0 // pred_fallthru
    _
  // Predicated region
  $region30: #{gcn_net_forward.3} parent=0 // pred_check
    _
  $region31: #{gcn_net_forward.3} parent=0 // pred_check_branch
    %28 = sbr.rel (0) target = $region33
  $region32: #{gcn_net_forward.3} parent=0 // pred_region
    _
  $region33: #{gcn_net_forward.3} parent=0 // pred_fallthru
    _
  %v30 = vlaneseq
  %v31 = vand.u32 %v30, 127
  %v32 = vld [vmem:[%s0] sm:$0xff]
  %v33 = vld [vmem:[%s0 + $0x8] sm:$0xff]
  %v34 = vld [vmem:[%s0 + $0x10] sm:$0xff]
  %v35 = vld [vmem:[%s0 + $0x18] sm:$0xff]
  %v36 = vld [vmem:[%s0 + $0x20] sm:$0xff]
  %v37 = vld [vmem:[%s0 + $0x28] sm:$0xff]
  %v38 = vld [vmem:[%s0 + $0x30] sm:$0xff]
  %v39 = vld [vmem:[%s0 + $0x38] sm:$0xff]
  %v40 = vld [vmem:[%s0 + $0x40] sm:$0xff]
  %v41 = vld [vmem:[%s0 + $0x48] sm:$0xff]
  %v42 = vld [vmem:[%s0 + $0x50] sm:$0xff]
  %v43 = vld [vmem:[%s0 + $0x58] sm:$0xff]
  %v44 = vld [vmem:[%s0 + $0x60] sm:$0xff]
  %v45 = vld [vmem:[%s0 + $0x68] sm:$0xff]
  %v46 = vld [vmem:[%s0 + $0x70] sm:$0xff]
  %v47 = vld [vmem:[%s0 + $0x78] sm:$0xff]
  %v48 = vld [vmem:[%s0 + $0x80] sm:$0xff]
  %v49 = vld [vmem:[%s0 + $0x88] sm:$0xff]
  %v50 = vld [vmem:[%s0 + $0x90] sm:$0xff]
  %v51 = vld [vmem:[%s0 + $0x98] sm:$0xff]
  %v52 = vld [vmem:[%s0 + $0xa0] sm:$0xff]
  %v53 = vld [vmem:[%s0 + $0xa8] sm:$0xff]
  %v54 = vld [vmem:[%s0 + $0xb0] sm:$0xff]
  %v55 = vld [vmem:[%s0 + $0xb8] sm:$0xff]
  %v56 = vld [vmem:[%s0 + $0xc0] sm:$0xff]
  %v57 = vld [vmem:[%s0 + $0xc8] sm:$0xff]
  %v58 = vld [vmem:[%s0 + $0xd0] sm:$0xff]
  %v59 = vld [vmem:[%s0 + $0xd8] sm:$0xff]
  %v60 = vld [vmem:[%s0 + $0xe0] sm:$0xff]
  %v61 = vld [vmem:[%s0 + $0xe8] sm:$0xff]
  %v62 = vld [vmem:[%s0 + $0xf0] sm:$0xff]
  %v63 = vld [vmem:[%s0 + $0xf8] sm:$0xff]
  %64 = vset.pattern.permute.xlu0 0
  %65 = vperm.xlu0 %64, %v32
  %v66 = vpop.permute.xlu0 %65
  %67 = vset.pattern.permute.xlu0 0
  %68 = vperm.xlu0 %67, %v33
  %v69 = vpop.permute.xlu0 %68
  %70 = vset.pattern.permute.xlu0 0
  %71 = vperm.xlu0 %70, %v34
  %v72 = vpop.permute.xlu0 %71
  %73 = vset.pattern.permute.xlu0 0
  %74 = vperm.xlu0 %73, %v35
  %v75 = vpop.permute.xlu0 %74
  %76 = vset.pattern.permute.xlu0 0
  %77 = vperm.xlu0 %76, %v36
  %v78 = vpop.permute.xlu0 %77
  %79 = vset.pattern.permute.xlu0 0
  %80 = vperm.xlu0 %79, %v37
  %v81 = vpop.permute.xlu0 %80
  %82 = vset.pattern.permute.xlu0 0
  %83 = vperm.xlu0 %82, %v38
  %v84 = vpop.permute.xlu0 %83
  %85 = vset.pattern.permute.xlu0 0
  %86 = vperm.xlu0 %85, %v39
  %v87 = vpop.permute.xlu0 %86
  %88 = vset.pattern.permute.xlu0 0
  %89 = vperm.xlu0 %88, %v40
  %v90 = vpop.permute.xlu0 %89
  %91 = vset.pattern.permute.xlu0 0
  %92 = vperm.xlu0 %91, %v41
  %v93 = vpop.permute.xlu0 %92
  %94 = vset.pattern.permute.xlu0 0
  %95 = vperm.xlu0 %94, %v42
  %v96 = vpop.permute.xlu0 %95
  %97 = vset.pattern.permute.xlu0 0
  %98 = vperm.xlu0 %97, %v43
  %v99 = vpop.permute.xlu0 %98
  %100 = vset.pattern.permute.xlu0 0
  %101 = vperm.xlu0 %100, %v44
  %v102 = vpop.permute.xlu0 %101
  %103 = vset.pattern.permute.xlu0 0
  %104 = vperm.xlu0 %103, %v45
  %v105 = vpop.permute.xlu0 %104
  %106 = vset.pattern.permute.xlu0 0
  %107 = vperm.xlu0 %106, %v46
  %v108 = vpop.permute.xlu0 %107
  %109 = vset.pattern.permute.xlu0 0
  %110 = vperm.xlu0 %109, %v47
  %v111 = vpop.permute.xlu0 %110
  %112 = vset.pattern.permute.xlu0 0
  %113 = vperm.xlu0 %112, %v48
  %v114 = vpop.permute.xlu0 %113
  %115 = vset.pattern.permute.xlu0 0
  %116 = vperm.xlu0 %115, %v49
  %v117 = vpop.permute.xlu0 %116
  %118 = vset.pattern.permute.xlu0 0
  %119 = vperm.xlu0 %118, %v50
  %v120 = vpop.permute.xlu0 %119
  %121 = vset.pattern.permute.xlu0 0
  %122 = vperm.xlu0 %121, %v51
  %v123 = vpop.permute.xlu0 %122
  %124 = vset.pattern.permute.xlu0 0
  %125 = vperm.xlu0 %124, %v52
  %v126 = vpop.permute.xlu0 %125
  %127 = vset.pattern.permute.xlu0 0
  %128 = vperm.xlu0 %127, %v53
  %v129 = vpop.permute.xlu0 %128
  %130 = vset.pattern.permute.xlu0 0
  %131 = vperm.xlu0 %130, %v54
  %v132 = vpop.permute.xlu0 %131
  %133 = vset.pattern.permute.xlu0 0
  %134 = vperm.xlu0 %133, %v55
  %v135 = vpop.permute.xlu0 %134
  %136 = vset.pattern.permute.xlu0 0
  %137 = vperm.xlu0 %136, %v56
  %v138 = vpop.permute.xlu0 %137
  %139 = vset.pattern.permute.xlu0 0
  %140 = vperm.xlu0 %139, %v57
  %v141 = vpop.permute.xlu0 %140
  %142 = vset.pattern.permute.xlu0 0
  %143 = vperm.xlu0 %142, %v58
  %v144 = vpop.permute.xlu0 %143
  %145 = vset.pattern.permute.xlu0 0
  %146 = vperm.xlu0 %145, %v59
  %v147 = vpop.permute.xlu0 %146
  %148 = vset.pattern.permute.xlu0 0
  %149 = vperm.xlu0 %148, %v60
  %v150 = vpop.permute.xlu0 %149
  %151 = vset.pattern.permute.xlu0 0
  %152 = vperm.xlu0 %151, %v61
  %v153 = vpop.permute.xlu0 %152
  %154 = vset.pattern.permute.xlu0 0
  %155 = vperm.xlu0 %154, %v62
  %v156 = vpop.permute.xlu0 %155
  %157 = vset.pattern.permute.xlu0 0
  %158 = vperm.xlu0 %157, %v63
  %v159 = vpop.permute.xlu0 %158
  %vm160 = vcmp.eq.s32.totalorder %v31, %v66
  %vm161 = vcmp.eq.s32.totalorder %v31, %v69
  %vm162 = vcmp.eq.s32.totalorder %v31, %v72
  %vm163 = vcmp.eq.s32.totalorder %v31, %v75
  %vm164 = vcmp.eq.s32.totalorder %v31, %v78
  %vm165 = vcmp.eq.s32.totalorder %v31, %v81
  %vm166 = vcmp.eq.s32.totalorder %v31, %v84
  %vm167 = vcmp.eq.s32.totalorder %v31, %v87
  %vm168 = vcmp.eq.s32.totalorder %v31, %v90
  %vm169 = vcmp.eq.s32.totalorder %v31, %v93
  %vm170 = vcmp.eq.s32.totalorder %v31, %v96
  %vm171 = vcmp.eq.s32.totalorder %v31, %v99
  %vm172 = vcmp.eq.s32.totalorder %v31, %v102
  %vm173 = vcmp.eq.s32.totalorder %v31, %v105
  %vm174 = vcmp.eq.s32.totalorder %v31, %v108
  %vm175 = vcmp.eq.s32.totalorder %v31, %v111
  %vm176 = vcmp.eq.s32.totalorder %v31, %v114
  %vm177 = vcmp.eq.s32.totalorder %v31, %v117
  %vm178 = vcmp.eq.s32.totalorder %v31, %v120
  %vm179 = vcmp.eq.s32.totalorder %v31, %v123
  %vm180 = vcmp.eq.s32.totalorder %v31, %v126
  %vm181 = vcmp.eq.s32.totalorder %v31, %v129
  %vm182 = vcmp.eq.s32.totalorder %v31, %v132
  %vm183 = vcmp.eq.s32.totalorder %v31, %v135
  %vm184 = vcmp.eq.s32.totalorder %v31, %v138
  %vm185 = vcmp.eq.s32.totalorder %v31, %v141
  %vm186 = vcmp.eq.s32.totalorder %v31, %v144
  %vm187 = vcmp.eq.s32.totalorder %v31, %v147
  %vm188 = vcmp.eq.s32.totalorder %v31, %v150
  %vm189 = vcmp.eq.s32.totalorder %v31, %v153
  %vm190 = vcmp.eq.s32.totalorder %v31, %v156
  %vm191 = vcmp.eq.s32.totalorder %v31, %v159
  %v192 = vsel %vm160, 1, 0
  %v193 = vsel %vm161, 1, 0
  %v194 = vsel %vm162, 1, 0
  %v195 = vsel %vm163, 1, 0
  %v196 = vsel %vm164, 1, 0
  %v197 = vsel %vm165, 1, 0
  %v198 = vsel %vm166, 1, 0
  %v199 = vsel %vm167, 1, 0
  %v200 = vsel %vm168, 1, 0
  %v201 = vsel %vm169, 1, 0
  %v202 = vsel %vm170, 1, 0
  %v203 = vsel %vm171, 1, 0
  %v204 = vsel %vm172, 1, 0
  %v205 = vsel %vm173, 1, 0
  %v206 = vsel %vm174, 1, 0
  %v207 = vsel %vm175, 1, 0
  %v208 = vsel %vm176, 1, 0
  %v209 = vsel %vm177, 1, 0
  %v210 = vsel %vm178, 1, 0
  %v211 = vsel %vm179, 1, 0
  %v212 = vsel %vm180, 1, 0
  %v213 = vsel %vm181, 1, 0
  %v214 = vsel %vm182, 1, 0
  %v215 = vsel %vm183, 1, 0
  %v216 = vsel %vm184, 1, 0
  %v217 = vsel %vm185, 1, 0
  %v218 = vsel %vm186, 1, 0
  %v219 = vsel %vm187, 1, 0
  %v220 = vsel %vm188, 1, 0
  %v221 = vsel %vm189, 1, 0
  %v222 = vsel %vm190, 1, 0
  %v223 = vsel %vm191, 1, 0
  %v224 = vcvt.s32.f32 %v192
  %v225 = vcvt.s32.f32 %v193
  %v226 = vcvt.s32.f32 %v194
  %v227 = vcvt.s32.f32 %v195
  %v228 = vcvt.s32.f32 %v196
  %v229 = vcvt.s32.f32 %v197
  %v230 = vcvt.s32.f32 %v198
  %v231 = vcvt.s32.f32 %v199
  %v232 = vcvt.s32.f32 %v200
  %v233 = vcvt.s32.f32 %v201
  %v234 = vcvt.s32.f32 %v202
  %v235 = vcvt.s32.f32 %v203
  %v236 = vcvt.s32.f32 %v204
  %v237 = vcvt.s32.f32 %v205
  %v238 = vcvt.s32.f32 %v206
  %v239 = vcvt.s32.f32 %v207
  %v240 = vcvt.s32.f32 %v208
  %v241 = vcvt.s32.f32 %v209
  %v242 = vcvt.s32.f32 %v210
  %v243 = vcvt.s32.f32 %v211
  %v244 = vcvt.s32.f32 %v212
  %v245 = vcvt.s32.f32 %v213
  %v246 = vcvt.s32.f32 %v214
  %v247 = vcvt.s32.f32 %v215
  %v248 = vcvt.s32.f32 %v216
  %v249 = vcvt.s32.f32 %v217
  %v250 = vcvt.s32.f32 %v218
  %v251 = vcvt.s32.f32 %v219
  %v252 = vcvt.s32.f32 %v220
  %v253 = vcvt.s32.f32 %v221
  %v254 = vcvt.s32.f32 %v222
  %v255 = vcvt.s32.f32 %v223
  %v256 = vpack.c.bf16 %v225, %v224
  %v257 = vpack.c.bf16 %v227, %v226
  %v258 = vpack.c.bf16 %v229, %v228
  %v259 = vpack.c.bf16 %v231, %v230
  %v260 = vpack.c.bf16 %v233, %v232
  %v261 = vpack.c.bf16 %v235, %v234
  %v262 = vpack.c.bf16 %v237, %v236
  %v263 = vpack.c.bf16 %v239, %v238
  %v264 = vpack.c.bf16 %v241, %v240
  %v265 = vpack.c.bf16 %v243, %v242
  %v266 = vpack.c.bf16 %v245, %v244
  %v267 = vpack.c.bf16 %v247, %v246
  %v268 = vpack.c.bf16 %v249, %v248
  %v269 = vpack.c.bf16 %v251, %v250
  %v270 = vpack.c.bf16 %v253, %v252
  %v271 = vpack.c.bf16 %v255, %v254
  %v272 = vld [vmem:[%s1] sm:$0xf]
  %v273 = vld [vmem:[%s1 + $0x4] sm:$0xf]
  %v274 = vld [vmem:[%s1 + $0x8] sm:$0xf]
  %v275 = vld [vmem:[%s1 + $0xc] sm:$0xf]
  %v276 = vld [vmem:[%s1 + $0x10] sm:$0xf]
  %v277 = vld [vmem:[%s1 + $0x14] sm:$0xf]
  %v278 = vld [vmem:[%s1 + $0x18] sm:$0xf]
  %v279 = vld [vmem:[%s1 + $0x1c] sm:$0xf]
  %v280 = vld [vmem:[%s1 + $0x20] sm:$0xf]
  %v281 = vld [vmem:[%s1 + $0x24] sm:$0xf]
  %v282 = vld [vmem:[%s1 + $0x28] sm:$0xf]
  %v283 = vld [vmem:[%s1 + $0x2c] sm:$0xf]
  %v284 = vld [vmem:[%s1 + $0x30] sm:$0xf]
  %v285 = vld [vmem:[%s1 + $0x34] sm:$0xf]
  %v286 = vld [vmem:[%s1 + $0x38] sm:$0xf]
  %v287 = vld [vmem:[%s1 + $0x3c] sm:$0xf]
  %v304 = vunpack.c.l.b16 %v272
  %v305 = vunpack.c.l.b16 %v273
  %v306 = vunpack.c.l.b16 %v274
  %v307 = vunpack.c.l.b16 %v275
  %v308 = vunpack.c.l.b16 %v276
  %v309 = vunpack.c.l.b16 %v277
  %v310 = vunpack.c.l.b16 %v278
  %v311 = vunpack.c.l.b16 %v279
  %v312 = vunpack.c.l.b16 %v280
  %v313 = vunpack.c.l.b16 %v281
  %v314 = vunpack.c.l.b16 %v282
  %v315 = vunpack.c.l.b16 %v283
  %v316 = vunpack.c.l.b16 %v284
  %v317 = vunpack.c.l.b16 %v285
  %v318 = vunpack.c.l.b16 %v286
  %v319 = vunpack.c.l.b16 %v287
  %v320 = vpack.c.b16 %v305, %v304
  %v321 = vpack.c.b16 %v307, %v306
  %v322 = vpack.c.b16 %v309, %v308
  %v323 = vpack.c.b16 %v311, %v310
  %v324 = vpack.c.b16 %v313, %v312
  %v325 = vpack.c.b16 %v315, %v314
  %v326 = vpack.c.b16 %v317, %v316
  %v327 = vpack.c.b16 %v319, %v318
  %336 = vmatprep.subr.bf16.mxu0 0
  %337 = vmatpush1.bf16.msra.mxu0 %v320
  %338 = vmatprep.subr.bf16.mxu0 0
  %339 = vmatpush1.bf16.msra.mxu0 %v321
  %340 = vmatprep.subr.bf16.mxu0 0
  %341 = vmatpush1.bf16.msra.mxu0 %v322
  %342 = vmatprep.subr.bf16.mxu0 0
  %343 = vmatpush1.bf16.msra.mxu0 %v323
  %344 = vmatprep.subr.bf16.mxu0 0
  %345 = vmatpush1.bf16.msra.mxu0 %v324
  %346 = vmatprep.subr.bf16.mxu0 0
  %347 = vmatpush1.bf16.msra.mxu0 %v325
  %348 = vmatprep.subr.bf16.mxu0 0
  %349 = vmatpush1.bf16.msra.mxu0 %v326
  %350 = vmatprep.subr.bf16.mxu0 0
  %351 = vmatpush1.bf16.msra.mxu0 %v327
  %352 = vmatprep.subr.bf16.mxu0 0
  %353 = vmatpush1.bf16.msra.mxu0 0
  %354 = vmatprep.subr.bf16.mxu0 0
  %355 = vmatpush1.bf16.msra.mxu0 0
  %356 = vmatprep.subr.bf16.mxu0 0
  %357 = vmatpush1.bf16.msra.mxu0 0
  %358 = vmatprep.subr.bf16.mxu0 0
  %359 = vmatpush1.bf16.msra.mxu0 0
  %360 = vmatprep.subr.bf16.mxu0 0
  %361 = vmatpush1.bf16.msra.mxu0 0
  %362 = vmatprep.subr.bf16.mxu0 0
  %363 = vmatpush1.bf16.msra.mxu0 0
  %364 = vmatprep.subr.bf16.mxu0 0
  %365 = vmatpush1.bf16.msra.mxu0 0
  %366 = vmatprep.subr.bf16.mxu0 0
  %367 = vmatpush1.bf16.msra.mxu0 0
  %368 = vmatprep.mubr.bf16.mxu0 0
  %369 = vmatmul.mubr.bf16.gmra.mrb[0].mxu0 %v256
  %v370 = vpop.f32.mrb[0].mxu0
  %v371 = vadd.f32 0.0, %v370
  %v372 = vpop.f32.mrb[0].mxu0
  %v373 = vpop.f32.mrb[0].mxu0
  %v374 = vadd.f32 0.0, %v373
  %v375 = vpop.f32.mrb[0].mxu0
  %376 = vmatprep.mubr.bf16.mxu0 0
  %377 = vmatmul.mubr.bf16.gmra.mrb[0].mxu0 %v257
  %v378 = vpop.f32.mrb[0].mxu0
  %v379 = vadd.f32 0.0, %v378
  %v380 = vpop.f32.mrb[0].mxu0
  %v381 = vpop.f32.mrb[0].mxu0
  %v382 = vadd.f32 0.0, %v381
  %v383 = vpop.f32.mrb[0].mxu0
  %384 = vmatprep.mubr.bf16.mxu0 0
  %385 = vmatmul.mubr.bf16.gmra.mrb[0].mxu0 %v258
  %v386 = vpop.f32.mrb[0].mxu0
  %v387 = vadd.f32 0.0, %v386
  %v388 = vpop.f32.mrb[0].mxu0
  %v389 = vpop.f32.mrb[0].mxu0
  %v390 = vadd.f32 0.0, %v389
  %v391 = vpop.f32.mrb[0].mxu0
  %392 = vmatprep.mubr.bf16.mxu0 0
  %393 = vmatmul.mubr.bf16.gmra.mrb[0].mxu0 %v259
  %v394 = vpop.f32.mrb[0].mxu0
  %v395 = vadd.f32 0.0, %v394
  %v396 = vpop.f32.mrb[0].mxu0
  %v397 = vpop.f32.mrb[0].mxu0
  %v398 = vadd.f32 0.0, %v397
  %v399 = vpop.f32.mrb[0].mxu0
  %400 = vmatprep.mubr.bf16.mxu0 0
  %401 = vmatmul.mubr.bf16.gmra.mrb[0].mxu0 %v260
  %v402 = vpop.f32.mrb[0].mxu0
  %v403 = vadd.f32 0.0, %v402
  %v404 = vpop.f32.mrb[0].mxu0
  %v405 = vpop.f32.mrb[0].mxu0
  %v406 = vadd.f32 0.0, %v405
  %v407 = vpop.f32.mrb[0].mxu0
  %408 = vmatprep.mubr.bf16.mxu0 0
  %409 = vmatmul.mubr.bf16.gmra.mrb[0].mxu0 %v261
  %v410 = vpop.f32.mrb[0].mxu0
  %v411 = vadd.f32 0.0, %v410
  %v412 = vpop.f32.mrb[0].mxu0
  %v413 = vpop.f32.mrb[0].mxu0
  %v414 = vadd.f32 0.0, %v413
  %v415 = vpop.f32.mrb[0].mxu0
  %416 = vmatprep.mubr.bf16.mxu0 0
  %417 = vmatmul.mubr.bf16.gmra.mrb[0].mxu0 %v262
  %v418 = vpop.f32.mrb[0].mxu0
  %v419 = vadd.f32 0.0, %v418
  %v420 = vpop.f32.mrb[0].mxu0
  %v421 = vpop.f32.mrb[0].mxu0
  %v422 = vadd.f32 0.0, %v421
  %v423 = vpop.f32.mrb[0].mxu0
  %424 = vmatprep.mubr.bf16.mxu0 0
  %425 = vmatmul.mubr.bf16.gmra.mrb[0].mxu0 %v263
  %v426 = vpop.f32.mrb[0].mxu0
  %v427 = vadd.f32 0.0, %v426
  %v428 = vpop.f32.mrb[0].mxu0
  %v429 = vpop.f32.mrb[0].mxu0
  %v430 = vadd.f32 0.0, %v429
  %v431 = vpop.f32.mrb[0].mxu0
  %432 = vmatprep.mubr.bf16.mxu0 0
  %433 = vmatmul.mubr.bf16.gmra.mrb[0].mxu0 %v264
  %v434 = vpop.f32.mrb[0].mxu0
  %v435 = vadd.f32 0.0, %v434
  %v436 = vpop.f32.mrb[0].mxu0
  %v437 = vpop.f32.mrb[0].mxu0
  %v438 = vadd.f32 0.0, %v437
  %v439 = vpop.f32.mrb[0].mxu0
  %440 = vmatprep.mubr.bf16.mxu0 0
  %441 = vmatmul.mubr.bf16.gmra.mrb[0].mxu0 %v265
  %v442 = vpop.f32.mrb[0].mxu0
  %v443 = vadd.f32 0.0, %v442
  %v444 = vpop.f32.mrb[0].mxu0
  %v445 = vpop.f32.mrb[0].mxu0
  %v446 = vadd.f32 0.0, %v445
  %v447 = vpop.f32.mrb[0].mxu0
  %448 = vmatprep.mubr.bf16.mxu0 0
  %449 = vmatmul.mubr.bf16.gmra.mrb[0].mxu0 %v266
  %v450 = vpop.f32.mrb[0].mxu0
  %v451 = vadd.f32 0.0, %v450
  %v452 = vpop.f32.mrb[0].mxu0
  %v453 = vpop.f32.mrb[0].mxu0
  %v454 = vadd.f32 0.0, %v453
  %v455 = vpop.f32.mrb[0].mxu0
  %456 = vmatprep.mubr.bf16.mxu0 0
  %457 = vmatmul.mubr.bf16.gmra.mrb[0].mxu0 %v267
  %v458 = vpop.f32.mrb[0].mxu0
  %v459 = vadd.f32 0.0, %v458
  %v460 = vpop.f32.mrb[0].mxu0
  %v461 = vpop.f32.mrb[0].mxu0
  %v462 = vadd.f32 0.0, %v461
  %v463 = vpop.f32.mrb[0].mxu0
  %464 = vmatprep.mubr.bf16.mxu0 0
  %465 = vmatmul.mubr.bf16.gmra.mrb[0].mxu0 %v268
  %v466 = vpop.f32.mrb[0].mxu0
  %v467 = vadd.f32 0.0, %v466
  %v468 = vpop.f32.mrb[0].mxu0
  %v469 = vpop.f32.mrb[0].mxu0
  %v470 = vadd.f32 0.0, %v469
  %v471 = vpop.f32.mrb[0].mxu0
  %472 = vmatprep.mubr.bf16.mxu0 0
  %473 = vmatmul.mubr.bf16.gmra.mrb[0].mxu0 %v269
  %v474 = vpop.f32.mrb[0].mxu0
  %v475 = vadd.f32 0.0, %v474
  %v476 = vpop.f32.mrb[0].mxu0
  %v477 = vpop.f32.mrb[0].mxu0
  %v478 = vadd.f32 0.0, %v477
  %v479 = vpop.f32.mrb[0].mxu0
  %480 = vmatprep.mubr.bf16.mxu0 0
  %481 = vmatmul.mubr.bf16.gmra.mrb[0].mxu0 %v270
  %v482 = vpop.f32.mrb[0].mxu0
  %v483 = vadd.f32 0.0, %v482
  %v484 = vpop.f32.mrb[0].mxu0
  %v485 = vpop.f32.mrb[0].mxu0
  %v486 = vadd.f32 0.0, %v485
  %v487 = vpop.f32.mrb[0].mxu0
  %488 = vmatprep.mubr.bf16.mxu0 0
  %489 = vmatmul.mubr.bf16.gmra.mrb[0].mxu0 %v271
  %v490 = vpop.f32.mrb[0].mxu0
  %v491 = vadd.f32 0.0, %v490
  %v492 = vpop.f32.mrb[0].mxu0
  %v493 = vpop.f32.mrb[0].mxu0
  %v494 = vadd.f32 0.0, %v493
  %v495 = vpop.f32.mrb[0].mxu0
  %496 = vdwg.mxu0
  %v497 = vld [vmem:[%s2] sm:$0xff]
  %v498 = vld [vmem:[%s2 + $0x8] sm:$0xff]
  %v499 = vld [vmem:[%s2 + $0x10] sm:$0xff]
  %v500 = vld [vmem:[%s2 + $0x18] sm:$0xff]
  %v501 = vld [vmem:[%s2 + $0x20] sm:$0xff]
  %v502 = vld [vmem:[%s2 + $0x28] sm:$0xff]
  %v503 = vld [vmem:[%s2 + $0x30] sm:$0xff]
  %v504 = vld [vmem:[%s2 + $0x38] sm:$0xff]
  %vm505 = vcmask 261120
  %v507 = vsel %vm505, %v435, 0
  %v510 = vsel %vm505, %v438, 0
  %v513 = vsel %vm505, %v443, 0
  %v516 = vsel %vm505, %v446, 0
  %v519 = vsel %vm505, %v451, 0
  %v522 = vsel %vm505, %v454, 0
  %v525 = vsel %vm505, %v459, 0
  %v528 = vsel %vm505, %v462, 0
  %v531 = vsel %vm505, %v467, 0
  %v534 = vsel %vm505, %v470, 0
  %v537 = vsel %vm505, %v475, 0
  %v540 = vsel %vm505, %v478, 0
  %v543 = vsel %vm505, %v483, 0
  %v546 = vsel %vm505, %v486, 0
  %v549 = vsel %vm505, %v491, 0
  %v552 = vsel %vm505, %v494, 0
  %554 = vmatprep.subr.mxu0 0.0
  %555 = vmatpush1.msra.mxu0 %v501
  %556 = vmatprep.subr.mxu0 0.0
  %557 = vmatpush1.msra.mxu0 %v502
  %558 = vmatprep.subr.mxu0 0.0
  %559 = vmatpush1.msra.mxu0 %v503
  %560 = vmatprep.subr.mxu0 0.0
  %561 = vmatpush1.msra.mxu0 %v504
  %562 = vmatprep.subr.mxu0 0.0
  %563 = vmatpush1.msra.mxu0 0.0
  %564 = vmatprep.subr.mxu0 0.0
  %565 = vmatpush1.msra.mxu0 0.0
  %566 = vmatprep.subr.mxu0 0.0
  %567 = vmatpush1.msra.mxu0 0.0
  %568 = vmatprep.subr.mxu0 0.0
  %569 = vmatpush1.msra.mxu0 0.0
  %570 = vmatprep.subr.mxu0 0.0
  %571 = vmatpush1.msra.mxu0 0.0
  %572 = vmatprep.subr.mxu0 0.0
  %573 = vmatpush1.msra.mxu0 0.0
  %574 = vmatprep.subr.mxu0 0.0
  %575 = vmatpush1.msra.mxu0 0.0
  %576 = vmatprep.subr.mxu0 0.0
  %577 = vmatpush1.msra.mxu0 0.0
  %578 = vmatprep.subr.mxu0 0.0
  %579 = vmatpush1.msra.mxu0 0.0
  %580 = vmatprep.subr.mxu0 0.0
  %581 = vmatpush1.msra.mxu0 0.0
  %582 = vmatprep.subr.mxu0 0.0
  %583 = vmatpush1.msra.mxu0 0.0
  %584 = vmatprep.subr.mxu0 0.0
  %585 = vmatpush1.msra.mxu0 0.0
  %586 = vmatprep.subr.mxu0 0.0
  %587 = vmatpush1.msra.mxu0 0.0
  %588 = vmatprep.subr.mxu0 0.0
  %589 = vmatpush1.msra.mxu0 0.0
  %590 = vmatprep.subr.mxu0 0.0
  %591 = vmatpush1.msra.mxu0 0.0
  %592 = vmatprep.subr.mxu0 0.0
  %593 = vmatpush1.msra.mxu0 0.0
  %594 = vmatprep.subr.mxu0 0.0
  %595 = vmatpush1.msra.mxu0 0.0
  %596 = vmatprep.subr.mxu0 0.0
  %597 = vmatpush1.msra.mxu0 0.0
  %598 = vmatprep.subr.mxu0 0.0
  %599 = vmatpush1.msra.mxu0 0.0
  %600 = vmatprep.subr.mxu0 0.0
  %601 = vmatpush1.msra.mxu0 0.0
  %602 = vmatprep.subr.mxu0 0.0
  %603 = vmatpush1.msra.mxu0 0.0
  %604 = vmatprep.subr.mxu0 0.0
  %605 = vmatpush1.msra.mxu0 0.0
  %606 = vmatprep.subr.mxu0 0.0
  %607 = vmatpush1.msra.mxu0 0.0
  %608 = vmatprep.subr.mxu0 0.0
  %609 = vmatpush1.msra.mxu0 0.0
  %610 = vmatprep.subr.mxu0 0.0
  %611 = vmatpush1.msra.mxu0 0.0
  %612 = vmatprep.subr.mxu0 0.0
  %613 = vmatpush1.msra.mxu0 0.0
  %614 = vmatprep.subr.mxu0 0.0
  %615 = vmatpush1.msra.mxu0 0.0
  %616 = vmatprep.subr.mxu0 0.0
  %617 = vmatpush1.msra.mxu0 0.0
  %618 = vmatprep.mubr.f32.mxu0 0.0
  %619 = vmatmul.mubr.f32.gmra.mrb[0].mxu0 %v507
  %v620 = vpop.f32.mrb[0].mxu0
  %v621 = vadd.f32 0.0, %v620
  %v622 = vpop.f32.mrb[0].mxu0
  %623 = vmatprep.mubr.f32.mxu0 0.0
  %624 = vmatmul.mubr.f32.gmra.mrb[0].mxu0 %v510
  %v625 = vpop.f32.mrb[0].mxu0
  %v626 = vadd.f32 0.0, %v625
  %v627 = vpop.f32.mrb[0].mxu0
  %628 = vmatprep.mubr.f32.mxu0 0.0
  %629 = vmatmul.mubr.f32.gmra.mrb[0].mxu0 %v513
  %v630 = vpop.f32.mrb[0].mxu0
  %v631 = vadd.f32 0.0, %v630
  %v632 = vpop.f32.mrb[0].mxu0
  %633 = vmatprep.mubr.f32.mxu0 0.0
  %634 = vmatmul.mubr.f32.gmra.mrb[0].mxu0 %v516
  %v635 = vpop.f32.mrb[0].mxu0
  %v636 = vadd.f32 0.0, %v635
  %v637 = vpop.f32.mrb[0].mxu0
  %638 = vmatprep.mubr.f32.mxu0 0.0
  %639 = vmatmul.mubr.f32.gmra.mrb[0].mxu0 %v519
  %v640 = vpop.f32.mrb[0].mxu0
  %v641 = vadd.f32 0.0, %v640
  %v642 = vpop.f32.mrb[0].mxu0
  %643 = vmatprep.mubr.f32.mxu0 0.0
  %644 = vmatmul.mubr.f32.gmra.mrb[0].mxu0 %v522
  %v645 = vpop.f32.mrb[0].mxu0
  %v646 = vadd.f32 0.0, %v645
  %v647 = vpop.f32.mrb[0].mxu0
  %648 = vmatprep.mubr.f32.mxu0 0.0
  %649 = vmatmul.mubr.f32.gmra.mrb[0].mxu0 %v525
  %v650 = vpop.f32.mrb[0].mxu0
  %v651 = vadd.f32 0.0, %v650
  %v652 = vpop.f32.mrb[0].mxu0
  %653 = vmatprep.mubr.f32.mxu0 0.0
  %654 = vmatmul.mubr.f32.gmra.mrb[0].mxu0 %v528
  %v655 = vpop.f32.mrb[0].mxu0
  %v656 = vadd.f32 0.0, %v655
  %v657 = vpop.f32.mrb[0].mxu0
  %658 = vmatprep.mubr.f32.mxu0 0.0
  %659 = vmatmul.mubr.f32.gmra.mrb[0].mxu0 %v531
  %v660 = vpop.f32.mrb[0].mxu0
  %v661 = vadd.f32 0.0, %v660
  %v662 = vpop.f32.mrb[0].mxu0
  %663 = vmatprep.mubr.f32.mxu0 0.0
  %664 = vmatmul.mubr.f32.gmra.mrb[0].mxu0 %v534
  %v665 = vpop.f32.mrb[0].mxu0
  %v666 = vadd.f32 0.0, %v665
  %v667 = vpop.f32.mrb[0].mxu0
  %668 = vmatprep.mubr.f32.mxu0 0.0
  %669 = vmatmul.mubr.f32.gmra.mrb[0].mxu0 %v537
  %v670 = vpop.f32.mrb[0].mxu0
  %v671 = vadd.f32 0.0, %v670
  %v672 = vpop.f32.mrb[0].mxu0
  %673 = vmatprep.mubr.f32.mxu0 0.0
  %674 = vmatmul.mubr.f32.gmra.mrb[0].mxu0 %v540
  %v675 = vpop.f32.mrb[0].mxu0
  %v676 = vadd.f32 0.0, %v675
  %v677 = vpop.f32.mrb[0].mxu0
  %678 = vmatprep.mubr.f32.mxu0 0.0
  %679 = vmatmul.mubr.f32.gmra.mrb[0].mxu0 %v543
  %v680 = vpop.f32.mrb[0].mxu0
  %v681 = vadd.f32 0.0, %v680
  %v682 = vpop.f32.mrb[0].mxu0
  %683 = vmatprep.mubr.f32.mxu0 0.0
  %684 = vmatmul.mubr.f32.gmra.mrb[0].mxu0 %v546
  %v685 = vpop.f32.mrb[0].mxu0
  %v686 = vadd.f32 0.0, %v685
  %v687 = vpop.f32.mrb[0].mxu0
  %688 = vmatprep.mubr.f32.mxu0 0.0
  %689 = vmatmul.mubr.f32.gmra.mrb[0].mxu0 %v549
  %v690 = vpop.f32.mrb[0].mxu0
  %v691 = vadd.f32 0.0, %v690
  %v692 = vpop.f32.mrb[0].mxu0
  %693 = vmatprep.mubr.f32.mxu0 0.0
  %694 = vmatmul.mubr.f32.gmra.mrb[0].mxu0 %v552
  %v695 = vpop.f32.mrb[0].mxu0
  %v696 = vadd.f32 0.0, %v695
  %v697 = vpop.f32.mrb[0].mxu0
  %698 = vdwg.mxu0
  %v700 = vsel %vm505, %v371, 0
  %v703 = vsel %vm505, %v374, 0
  %v706 = vsel %vm505, %v379, 0
  %v709 = vsel %vm505, %v382, 0
  %v712 = vsel %vm505, %v387, 0
  %v715 = vsel %vm505, %v390, 0
  %v718 = vsel %vm505, %v395, 0
  %v721 = vsel %vm505, %v398, 0
  %v724 = vsel %vm505, %v403, 0
  %v727 = vsel %vm505, %v406, 0
  %v730 = vsel %vm505, %v411, 0
  %v733 = vsel %vm505, %v414, 0
  %v736 = vsel %vm505, %v419, 0
  %v739 = vsel %vm505, %v422, 0
  %v742 = vsel %vm505, %v427, 0
  %v745 = vsel %vm505, %v430, 0
  %747 = vmatprep.subr.mxu0 0.0
  %748 = vmatpush1.msra.mxu0 %v497
  %749 = vmatprep.subr.mxu0 0.0
  %750 = vmatpush1.msra.mxu0 %v498
  %751 = vmatprep.subr.mxu0 0.0
  %752 = vmatpush1.msra.mxu0 %v499
  %753 = vmatprep.subr.mxu0 0.0
  %754 = vmatpush1.msra.mxu0 %v500
  %755 = vmatprep.subr.mxu0 0.0
  %756 = vmatpush1.msra.mxu0 0.0
  %757 = vmatprep.subr.mxu0 0.0
  %758 = vmatpush1.msra.mxu0 0.0
  %759 = vmatprep.subr.mxu0 0.0
  %760 = vmatpush1.msra.mxu0 0.0
  %761 = vmatprep.subr.mxu0 0.0
  %762 = vmatpush1.msra.mxu0 0.0
  %763 = vmatprep.subr.mxu0 0.0
  %764 = vmatpush1.msra.mxu0 0.0
  %765 = vmatprep.subr.mxu0 0.0
  %766 = vmatpush1.msra.mxu0 0.0
  %767 = vmatprep.subr.mxu0 0.0
  %768 = vmatpush1.msra.mxu0 0.0
  %769 = vmatprep.subr.mxu0 0.0
  %770 = vmatpush1.msra.mxu0 0.0
  %771 = vmatprep.subr.mxu0 0.0
  %772 = vmatpush1.msra.mxu0 0.0
  %773 = vmatprep.subr.mxu0 0.0
  %774 = vmatpush1.msra.mxu0 0.0
  %775 = vmatprep.subr.mxu0 0.0
  %776 = vmatpush1.msra.mxu0 0.0
  %777 = vmatprep.subr.mxu0 0.0
  %778 = vmatpush1.msra.mxu0 0.0
  %779 = vmatprep.subr.mxu0 0.0
  %780 = vmatpush1.msra.mxu0 0.0
  %781 = vmatprep.subr.mxu0 0.0
  %782 = vmatpush1.msra.mxu0 0.0
  %783 = vmatprep.subr.mxu0 0.0
  %784 = vmatpush1.msra.mxu0 0.0
  %785 = vmatprep.subr.mxu0 0.0
  %786 = vmatpush1.msra.mxu0 0.0
  %787 = vmatprep.subr.mxu0 0.0
  %788 = vmatpush1.msra.mxu0 0.0
  %789 = vmatprep.subr.mxu0 0.0
  %790 = vmatpush1.msra.mxu0 0.0
  %791 = vmatprep.subr.mxu0 0.0
  %792 = vmatpush1.msra.mxu0 0.0
  %793 = vmatprep.subr.mxu0 0.0
  %794 = vmatpush1.msra.mxu0 0.0
  %795 = vmatprep.subr.mxu0 0.0
  %796 = vmatpush1.msra.mxu0 0.0
  %797 = vmatprep.subr.mxu0 0.0
  %798 = vmatpush1.msra.mxu0 0.0
  %799 = vmatprep.subr.mxu0 0.0
  %800 = vmatpush1.msra.mxu0 0.0
  %801 = vmatprep.subr.mxu0 0.0
  %802 = vmatpush1.msra.mxu0 0.0
  %803 = vmatprep.subr.mxu0 0.0
  %804 = vmatpush1.msra.mxu0 0.0
  %805 = vmatprep.subr.mxu0 0.0
  %806 = vmatpush1.msra.mxu0 0.0
  %807 = vmatprep.subr.mxu0 0.0
  %808 = vmatpush1.msra.mxu0 0.0
  %809 = vmatprep.subr.mxu0 0.0
  %810 = vmatpush1.msra.mxu0 0.0
  %811 = vmatprep.mubr.f32.mxu0 0.0
  %812 = vmatmul.mubr.f32.gmra.mrb[0].mxu0 %v700
  %v813 = vpop.f32.mrb[0].mxu0
  %v814 = vadd.f32 %v621, %v813
  %v815 = vpop.f32.mrb[0].mxu0
  %816 = vmatprep.mubr.f32.mxu0 0.0
  %817 = vmatmul.mubr.f32.gmra.mrb[0].mxu0 %v703
  %v818 = vpop.f32.mrb[0].mxu0
  %v819 = vadd.f32 %v626, %v818
  %v820 = vpop.f32.mrb[0].mxu0
  %821 = vmatprep.mubr.f32.mxu0 0.0
  %822 = vmatmul.mubr.f32.gmra.mrb[0].mxu0 %v706
  %v823 = vpop.f32.mrb[0].mxu0
  %v824 = vadd.f32 %v631, %v823
  %v825 = vpop.f32.mrb[0].mxu0
  %826 = vmatprep.mubr.f32.mxu0 0.0
  %827 = vmatmul.mubr.f32.gmra.mrb[0].mxu0 %v709
  %v828 = vpop.f32.mrb[0].mxu0
  %v829 = vadd.f32 %v636, %v828
  %v830 = vpop.f32.mrb[0].mxu0
  %831 = vmatprep.mubr.f32.mxu0 0.0
  %832 = vmatmul.mubr.f32.gmra.mrb[0].mxu0 %v712
  %v833 = vpop.f32.mrb[0].mxu0
  %v834 = vadd.f32 %v641, %v833
  %v835 = vpop.f32.mrb[0].mxu0
  %836 = vmatprep.mubr.f32.mxu0 0.0
  %837 = vmatmul.mubr.f32.gmra.mrb[0].mxu0 %v715
  %v838 = vpop.f32.mrb[0].mxu0
  %v839 = vadd.f32 %v646, %v838
  %v840 = vpop.f32.mrb[0].mxu0
  %841 = vmatprep.mubr.f32.mxu0 0.0
  %842 = vmatmul.mubr.f32.gmra.mrb[0].mxu0 %v718
  %v843 = vpop.f32.mrb[0].mxu0
  %v844 = vadd.f32 %v651, %v843
  %v845 = vpop.f32.mrb[0].mxu0
  %846 = vmatprep.mubr.f32.mxu0 0.0
  %847 = vmatmul.mubr.f32.gmra.mrb[0].mxu0 %v721
  %v848 = vpop.f32.mrb[0].mxu0
  %v849 = vadd.f32 %v656, %v848
  %v850 = vpop.f32.mrb[0].mxu0
  %851 = vmatprep.mubr.f32.mxu0 0.0
  %852 = vmatmul.mubr.f32.gmra.mrb[0].mxu0 %v724
  %v853 = vpop.f32.mrb[0].mxu0
  %v854 = vadd.f32 %v661, %v853
  %v855 = vpop.f32.mrb[0].mxu0
  %856 = vmatprep.mubr.f32.mxu0 0.0
  %857 = vmatmul.mubr.f32.gmra.mrb[0].mxu0 %v727
  %v858 = vpop.f32.mrb[0].mxu0
  %v859 = vadd.f32 %v666, %v858
  %v860 = vpop.f32.mrb[0].mxu0
  %861 = vmatprep.mubr.f32.mxu0 0.0
  %862 = vmatmul.mubr.f32.gmra.mrb[0].mxu0 %v730
  %v863 = vpop.f32.mrb[0].mxu0
  %v864 = vadd.f32 %v671, %v863
  %v865 = vpop.f32.mrb[0].mxu0
  %866 = vmatprep.mubr.f32.mxu0 0.0
  %867 = vmatmul.mubr.f32.gmra.mrb[0].mxu0 %v733
  %v868 = vpop.f32.mrb[0].mxu0
  %v869 = vadd.f32 %v676, %v868
  %v870 = vpop.f32.mrb[0].mxu0
  %871 = vmatprep.mubr.f32.mxu0 0.0
  %872 = vmatmul.mubr.f32.gmra.mrb[0].mxu0 %v736
  %v873 = vpop.f32.mrb[0].mxu0
  %v874 = vadd.f32 %v681, %v873
  %v875 = vpop.f32.mrb[0].mxu0
  %876 = vmatprep.mubr.f32.mxu0 0.0
  %877 = vmatmul.mubr.f32.gmra.mrb[0].mxu0 %v739
  %v878 = vpop.f32.mrb[0].mxu0
  %v879 = vadd.f32 %v686, %v878
  %v880 = vpop.f32.mrb[0].mxu0
  %881 = vmatprep.mubr.f32.mxu0 0.0
  %882 = vmatmul.mubr.f32.gmra.mrb[0].mxu0 %v742
  %v883 = vpop.f32.mrb[0].mxu0
  %v884 = vadd.f32 %v691, %v883
  %v885 = vpop.f32.mrb[0].mxu0
  %886 = vmatprep.mubr.f32.mxu0 0.0
  %887 = vmatmul.mubr.f32.gmra.mrb[0].mxu0 %v745
  %v888 = vpop.f32.mrb[0].mxu0
  %v889 = vadd.f32 %v696, %v888
  %v890 = vpop.f32.mrb[0].mxu0
  %891 = vdwg.mxu0
  %v892 = vld [vmem:[%s3] sm:$0x1]
  %v894 = vlaneseq
  %v895 = vshrl.u32 %v894, 7
  %v896 = vsub.s32 0, %v895
  %v897 = vrot.slane %v892, %v896
  %v899 = vadd.f32 %v814, %v897
  %v900 = vadd.f32 %v819, %v897
  %v901 = vadd.f32 %v824, %v897
  %v902 = vadd.f32 %v829, %v897
  %v903 = vadd.f32 %v834, %v897
  %v904 = vadd.f32 %v839, %v897
  %v905 = vadd.f32 %v844, %v897
  %v906 = vadd.f32 %v849, %v897
  %v907 = vadd.f32 %v854, %v897
  %v908 = vadd.f32 %v859, %v897
  %v909 = vadd.f32 %v864, %v897
  %v910 = vadd.f32 %v869, %v897
  %v911 = vadd.f32 %v874, %v897
  %v912 = vadd.f32 %v879, %v897
  %v913 = vadd.f32 %v884, %v897
  %v914 = vadd.f32 %v889, %v897
  %v915 = vmax.f32 %v899, 0.0
  %v916 = vmax.f32 %v900, 0.0
  %v917 = vmax.f32 %v901, 0.0
  %v918 = vmax.f32 %v902, 0.0
  %v919 = vmax.f32 %v903, 0.0
  %v920 = vmax.f32 %v904, 0.0
  %v921 = vmax.f32 %v905, 0.0
  %v922 = vmax.f32 %v906, 0.0
  %v923 = vmax.f32 %v907, 0.0
  %v924 = vmax.f32 %v908, 0.0
  %v925 = vmax.f32 %v909, 0.0
  %v926 = vmax.f32 %v910, 0.0
  %v927 = vmax.f32 %v911, 0.0
  %v928 = vmax.f32 %v912, 0.0
  %v929 = vmax.f32 %v913, 0.0
  %v930 = vmax.f32 %v914, 0.0
  %v931 = vld [vmem:[%s4] sm:$0xff]
  %v932 = vld [vmem:[%s4 + $0x8] sm:$0xff]
  %v933 = vld [vmem:[%s4 + $0x10] sm:$0xff]
  %v934 = vld [vmem:[%s4 + $0x18] sm:$0xff]
  %v935 = vld [vmem:[%s5] sm:$0x1]
  %v937 = vlaneseq
  %v938 = vshrl.u32 %v937, 7
  %v939 = vsub.s32 0, %v938
  %v940 = vrot.slane %v935, %v939
  %v943 = vsel %vm505, %v915, 0
  %v946 = vsel %vm505, %v916, 0
  %v949 = vsel %vm505, %v917, 0
  %v952 = vsel %vm505, %v918, 0
  %v955 = vsel %vm505, %v919, 0
  %v958 = vsel %vm505, %v920, 0
  %v961 = vsel %vm505, %v921, 0
  %v964 = vsel %vm505, %v922, 0
  %v967 = vsel %vm505, %v923, 0
  %v970 = vsel %vm505, %v924, 0
  %v973 = vsel %vm505, %v925, 0
  %v976 = vsel %vm505, %v926, 0
  %v979 = vsel %vm505, %v927, 0
  %v982 = vsel %vm505, %v928, 0
  %v985 = vsel %vm505, %v929, 0
  %v988 = vsel %vm505, %v930, 0
  %990 = vmatprep.subr.mxu0 0.0
  %991 = vmatpush1.msra.mxu0 %v931
  %992 = vmatprep.subr.mxu0 0.0
  %993 = vmatpush1.msra.mxu0 %v932
  %994 = vmatprep.subr.mxu0 0.0
  %995 = vmatpush1.msra.mxu0 %v933
  %996 = vmatprep.subr.mxu0 0.0
  %997 = vmatpush1.msra.mxu0 %v934
  %998 = vmatprep.subr.mxu0 0.0
  %999 = vmatpush1.msra.mxu0 0.0
  %1000 = vmatprep.subr.mxu0 0.0
  %1001 = vmatpush1.msra.mxu0 0.0
  %1002 = vmatprep.subr.mxu0 0.0
  %1003 = vmatpush1.msra.mxu0 0.0
  %1004 = vmatprep.subr.mxu0 0.0
  %1005 = vmatpush1.msra.mxu0 0.0
  %1006 = vmatprep.subr.mxu0 0.0
  %1007 = vmatpush1.msra.mxu0 0.0
  %1008 = vmatprep.subr.mxu0 0.0
  %1009 = vmatpush1.msra.mxu0 0.0
  %1010 = vmatprep.subr.mxu0 0.0
  %1011 = vmatpush1.msra.mxu0 0.0
  %1012 = vmatprep.subr.mxu0 0.0
  %1013 = vmatpush1.msra.mxu0 0.0
  %1014 = vmatprep.subr.mxu0 0.0
  %1015 = vmatpush1.msra.mxu0 0.0
  %1016 = vmatprep.subr.mxu0 0.0
  %1017 = vmatpush1.msra.mxu0 0.0
  %1018 = vmatprep.subr.mxu0 0.0
  %1019 = vmatpush1.msra.mxu0 0.0
  %1020 = vmatprep.subr.mxu0 0.0
  %1021 = vmatpush1.msra.mxu0 0.0
  %1022 = vmatprep.subr.mxu0 0.0
  %1023 = vmatpush1.msra.mxu0 0.0
  %1024 = vmatprep.subr.mxu0 0.0
  %1025 = vmatpush1.msra.mxu0 0.0
  %1026 = vmatprep.subr.mxu0 0.0
  %1027 = vmatpush1.msra.mxu0 0.0
  %1028 = vmatprep.subr.mxu0 0.0
  %1029 = vmatpush1.msra.mxu0 0.0
  %1030 = vmatprep.subr.mxu0 0.0
  %1031 = vmatpush1.msra.mxu0 0.0
  %1032 = vmatprep.subr.mxu0 0.0
  %1033 = vmatpush1.msra.mxu0 0.0
  %1034 = vmatprep.subr.mxu0 0.0
  %1035 = vmatpush1.msra.mxu0 0.0
  %1036 = vmatprep.subr.mxu0 0.0
  %1037 = vmatpush1.msra.mxu0 0.0
  %1038 = vmatprep.subr.mxu0 0.0
  %1039 = vmatpush1.msra.mxu0 0.0
  %1040 = vmatprep.subr.mxu0 0.0
  %1041 = vmatpush1.msra.mxu0 0.0
  %1042 = vmatprep.subr.mxu0 0.0
  %1043 = vmatpush1.msra.mxu0 0.0
  %1044 = vmatprep.subr.mxu0 0.0
  %1045 = vmatpush1.msra.mxu0 0.0
  %1046 = vmatprep.subr.mxu0 0.0
  %1047 = vmatpush1.msra.mxu0 0.0
  %1048 = vmatprep.subr.mxu0 0.0
  %1049 = vmatpush1.msra.mxu0 0.0
  %1050 = vmatprep.subr.mxu0 0.0
  %1051 = vmatpush1.msra.mxu0 0.0
  %1052 = vmatprep.subr.mxu0 0.0
  %1053 = vmatpush1.msra.mxu0 0.0
  %1054 = vmatprep.mubr.f32.mxu0 0.0
  %1055 = vmatmul.mubr.f32.gmra.mrb[0].mxu0 %v943
  %v1056 = vpop.f32.mrb[0].mxu0
  %v1057 = vadd.f32 %v940, %v1056
  %v1058 = vpop.f32.mrb[0].mxu0
  %1059 = vmatprep.mubr.f32.mxu0 0.0
  %1060 = vmatmul.mubr.f32.gmra.mrb[0].mxu0 %v946
  %v1061 = vpop.f32.mrb[0].mxu0
  %v1062 = vadd.f32 %v940, %v1061
  %v1063 = vpop.f32.mrb[0].mxu0
  %1064 = vmatprep.mubr.f32.mxu0 0.0
  %1065 = vmatmul.mubr.f32.gmra.mrb[0].mxu0 %v949
  %v1066 = vpop.f32.mrb[0].mxu0
  %v1067 = vadd.f32 %v940, %v1066
  %v1068 = vpop.f32.mrb[0].mxu0
  %1069 = vmatprep.mubr.f32.mxu0 0.0
  %1070 = vmatmul.mubr.f32.gmra.mrb[0].mxu0 %v952
  %v1071 = vpop.f32.mrb[0].mxu0
  %v1072 = vadd.f32 %v940, %v1071
  %v1073 = vpop.f32.mrb[0].mxu0
  %1074 = vmatprep.mubr.f32.mxu0 0.0
  %1075 = vmatmul.mubr.f32.gmra.mrb[0].mxu0 %v955
  %v1076 = vpop.f32.mrb[0].mxu0
  %v1077 = vadd.f32 %v940, %v1076
  %v1078 = vpop.f32.mrb[0].mxu0
  %1079 = vmatprep.mubr.f32.mxu0 0.0
  %1080 = vmatmul.mubr.f32.gmra.mrb[0].mxu0 %v958
  %v1081 = vpop.f32.mrb[0].mxu0
  %v1082 = vadd.f32 %v940, %v1081
  %v1083 = vpop.f32.mrb[0].mxu0
  %1084 = vmatprep.mubr.f32.mxu0 0.0
  %1085 = vmatmul.mubr.f32.gmra.mrb[0].mxu0 %v961
  %v1086 = vpop.f32.mrb[0].mxu0
  %v1087 = vadd.f32 %v940, %v1086
  %v1088 = vpop.f32.mrb[0].mxu0
  %1089 = vmatprep.mubr.f32.mxu0 0.0
  %1090 = vmatmul.mubr.f32.gmra.mrb[0].mxu0 %v964
  %v1091 = vpop.f32.mrb[0].mxu0
  %v1092 = vadd.f32 %v940, %v1091
  %v1093 = vpop.f32.mrb[0].mxu0
  %1094 = vmatprep.mubr.f32.mxu0 0.0
  %1095 = vmatmul.mubr.f32.gmra.mrb[0].mxu0 %v967
  %v1096 = vpop.f32.mrb[0].mxu0
  %v1097 = vadd.f32 %v940, %v1096
  %v1098 = vpop.f32.mrb[0].mxu0
  %1099 = vmatprep.mubr.f32.mxu0 0.0
  %1100 = vmatmul.mubr.f32.gmra.mrb[0].mxu0 %v970
  %v1101 = vpop.f32.mrb[0].mxu0
  %v1102 = vadd.f32 %v940, %v1101
  %v1103 = vpop.f32.mrb[0].mxu0
  %1104 = vmatprep.mubr.f32.mxu0 0.0
  %1105 = vmatmul.mubr.f32.gmra.mrb[0].mxu0 %v973
  %v1106 = vpop.f32.mrb[0].mxu0
  %v1107 = vadd.f32 %v940, %v1106
  %v1108 = vpop.f32.mrb[0].mxu0
  %1109 = vmatprep.mubr.f32.mxu0 0.0
  %1110 = vmatmul.mubr.f32.gmra.mrb[0].mxu0 %v976
  %v1111 = vpop.f32.mrb[0].mxu0
  %v1112 = vadd.f32 %v940, %v1111
  %v1113 = vpop.f32.mrb[0].mxu0
  %1114 = vmatprep.mubr.f32.mxu0 0.0
  %1115 = vmatmul.mubr.f32.gmra.mrb[0].mxu0 %v979
  %v1116 = vpop.f32.mrb[0].mxu0
  %v1117 = vadd.f32 %v940, %v1116
  %v1118 = vpop.f32.mrb[0].mxu0
  %1119 = vmatprep.mubr.f32.mxu0 0.0
  %1120 = vmatmul.mubr.f32.gmra.mrb[0].mxu0 %v982
  %v1121 = vpop.f32.mrb[0].mxu0
  %v1122 = vadd.f32 %v940, %v1121
  %v1123 = vpop.f32.mrb[0].mxu0
  %1124 = vmatprep.mubr.f32.mxu0 0.0
  %1125 = vmatmul.mubr.f32.gmra.mrb[0].mxu0 %v985
  %v1126 = vpop.f32.mrb[0].mxu0
  %v1127 = vadd.f32 %v940, %v1126
  %v1128 = vpop.f32.mrb[0].mxu0
  %1129 = vmatprep.mubr.f32.mxu0 0.0
  %1130 = vmatmul.mubr.f32.gmra.mrb[0].mxu0 %v988
  %v1131 = vpop.f32.mrb[0].mxu0
  %v1132 = vadd.f32 %v940, %v1131
  %v1133 = vpop.f32.mrb[0].mxu0
  %1134 = vdwg.mxu0
  %v1135 = vmax.f32 %v1057, 0.0
  %v1136 = vmax.f32 %v1062, 0.0
  %v1137 = vmax.f32 %v1067, 0.0
  %v1138 = vmax.f32 %v1072, 0.0
  %v1139 = vmax.f32 %v1077, 0.0
  %v1140 = vmax.f32 %v1082, 0.0
  %v1141 = vmax.f32 %v1087, 0.0
  %v1142 = vmax.f32 %v1092, 0.0
  %v1143 = vmax.f32 %v1097, 0.0
  %v1144 = vmax.f32 %v1102, 0.0
  %v1145 = vmax.f32 %v1107, 0.0
  %v1146 = vmax.f32 %v1112, 0.0
  %v1147 = vmax.f32 %v1117, 0.0
  %v1148 = vmax.f32 %v1122, 0.0
  %v1149 = vmax.f32 %v1127, 0.0
  %v1150 = vmax.f32 %v1132, 0.0
  %v1151 = vld [vmem:[%s6] sm:$0xff]
  %v1152 = vld [vmem:[%s6 + $0x8] sm:$0xff]
  %v1153 = vld [vmem:[%s7] sm:$0x1]
  %v1155 = vlaneseq
  %v1156 = vshrl.u32 %v1155, 7
  %v1157 = vsub.s32 0, %v1156
  %v1158 = vrot.slane %v1153, %v1157
  %vm1160 = vcmask 130048
  %v1162 = vsel %vm1160, %v1135, 0
  %v1165 = vsel %vm1160, %v1136, 0
  %v1168 = vsel %vm1160, %v1137, 0
  %v1171 = vsel %vm1160, %v1138, 0
  %v1174 = vsel %vm1160, %v1139, 0
  %v1177 = vsel %vm1160, %v1140, 0
  %v1180 = vsel %vm1160, %v1141, 0
  %v1183 = vsel %vm1160, %v1142, 0
  %v1186 = vsel %vm1160, %v1143, 0
  %v1189 = vsel %vm1160, %v1144, 0
  %v1192 = vsel %vm1160, %v1145, 0
  %v1195 = vsel %vm1160, %v1146, 0
  %v1198 = vsel %vm1160, %v1147, 0
  %v1201 = vsel %vm1160, %v1148, 0
  %v1204 = vsel %vm1160, %v1149, 0
  %v1207 = vsel %vm1160, %v1150, 0
  %1209 = vmatprep.subr.mxu0 0.0
  %1210 = vmatpush1.msra.mxu0 %v1151
  %1211 = vmatprep.subr.mxu0 0.0
  %1212 = vmatpush1.msra.mxu0 %v1152
  %1213 = vmatprep.subr.mxu0 0.0
  %1214 = vmatpush1.msra.mxu0 0.0
  %1215 = vmatprep.subr.mxu0 0.0
  %1216 = vmatpush1.msra.mxu0 0.0
  %1217 = vmatprep.subr.mxu0 0.0
  %1218 = vmatpush1.msra.mxu0 0.0
  %1219 = vmatprep.subr.mxu0 0.0
  %1220 = vmatpush1.msra.mxu0 0.0
  %1221 = vmatprep.subr.mxu0 0.0
  %1222 = vmatpush1.msra.mxu0 0.0
  %1223 = vmatprep.subr.mxu0 0.0
  %1224 = vmatpush1.msra.mxu0 0.0
  %1225 = vmatprep.subr.mxu0 0.0
  %1226 = vmatpush1.msra.mxu0 0.0
  %1227 = vmatprep.subr.mxu0 0.0
  %1228 = vmatpush1.msra.mxu0 0.0
  %1229 = vmatprep.subr.mxu0 0.0
  %1230 = vmatpush1.msra.mxu0 0.0
  %1231 = vmatprep.subr.mxu0 0.0
  %1232 = vmatpush1.msra.mxu0 0.0
  %1233 = vmatprep.subr.mxu0 0.0
  %1234 = vmatpush1.msra.mxu0 0.0
  %1235 = vmatprep.subr.mxu0 0.0
  %1236 = vmatpush1.msra.mxu0 0.0
  %1237 = vmatprep.subr.mxu0 0.0
  %1238 = vmatpush1.msra.mxu0 0.0
  %1239 = vmatprep.subr.mxu0 0.0
  %1240 = vmatpush1.msra.mxu0 0.0
  %1241 = vmatprep.subr.mxu0 0.0
  %1242 = vmatpush1.msra.mxu0 0.0
  %1243 = vmatprep.subr.mxu0 0.0
  %1244 = vmatpush1.msra.mxu0 0.0
  %1245 = vmatprep.subr.mxu0 0.0
  %1246 = vmatpush1.msra.mxu0 0.0
  %1247 = vmatprep.subr.mxu0 0.0
  %1248 = vmatpush1.msra.mxu0 0.0
  %1249 = vmatprep.subr.mxu0 0.0
  %1250 = vmatpush1.msra.mxu0 0.0
  %1251 = vmatprep.subr.mxu0 0.0
  %1252 = vmatpush1.msra.mxu0 0.0
  %1253 = vmatprep.subr.mxu0 0.0
  %1254 = vmatpush1.msra.mxu0 0.0
  %1255 = vmatprep.subr.mxu0 0.0
  %1256 = vmatpush1.msra.mxu0 0.0
  %1257 = vmatprep.subr.mxu0 0.0
  %1258 = vmatpush1.msra.mxu0 0.0
  %1259 = vmatprep.subr.mxu0 0.0
  %1260 = vmatpush1.msra.mxu0 0.0
  %1261 = vmatprep.subr.mxu0 0.0
  %1262 = vmatpush1.msra.mxu0 0.0
  %1263 = vmatprep.subr.mxu0 0.0
  %1264 = vmatpush1.msra.mxu0 0.0
  %1265 = vmatprep.subr.mxu0 0.0
  %1266 = vmatpush1.msra.mxu0 0.0
  %1267 = vmatprep.subr.mxu0 0.0
  %1268 = vmatpush1.msra.mxu0 0.0
  %1269 = vmatprep.subr.mxu0 0.0
  %1270 = vmatpush1.msra.mxu0 0.0
  %1271 = vmatprep.subr.mxu0 0.0
  %1272 = vmatpush1.msra.mxu0 0.0
  %1273 = vmatprep.mubr.f32.mxu0 0.0
  %1274 = vmatmul.mubr.f32.gmra.mrb[0].mxu0 %v1162
  %v1275 = vpop.f32.mrb[0].mxu0
  %v1276 = vadd.f32 %v1158, %v1275
  %v1277 = vpop.f32.mrb[0].mxu0
  %1278 = vmatprep.mubr.f32.mxu0 0.0
  %1279 = vmatmul.mubr.f32.gmra.mrb[0].mxu0 %v1165
  %v1280 = vpop.f32.mrb[0].mxu0
  %v1281 = vadd.f32 %v1158, %v1280
  %v1282 = vpop.f32.mrb[0].mxu0
  %1283 = vmatprep.mubr.f32.mxu0 0.0
  %1284 = vmatmul.mubr.f32.gmra.mrb[0].mxu0 %v1168
  %v1285 = vpop.f32.mrb[0].mxu0
  %v1286 = vadd.f32 %v1158, %v1285
  %v1287 = vpop.f32.mrb[0].mxu0
  %1288 = vmatprep.mubr.f32.mxu0 0.0
  %1289 = vmatmul.mubr.f32.gmra.mrb[0].mxu0 %v1171
  %v1290 = vpop.f32.mrb[0].mxu0
  %v1291 = vadd.f32 %v1158, %v1290
  %v1292 = vpop.f32.mrb[0].mxu0
  %1293 = vmatprep.mubr.f32.mxu0 0.0
  %1294 = vmatmul.mubr.f32.gmra.mrb[0].mxu0 %v1174
  %v1295 = vpop.f32.mrb[0].mxu0
  %v1296 = vadd.f32 %v1158, %v1295
  %v1297 = vpop.f32.mrb[0].mxu0
  %1298 = vmatprep.mubr.f32.mxu0 0.0
  %1299 = vmatmul.mubr.f32.gmra.mrb[0].mxu0 %v1177
  %v1300 = vpop.f32.mrb[0].mxu0
  %v1301 = vadd.f32 %v1158, %v1300
  %v1302 = vpop.f32.mrb[0].mxu0
  %1303 = vmatprep.mubr.f32.mxu0 0.0
  %1304 = vmatmul.mubr.f32.gmra.mrb[0].mxu0 %v1180
  %v1305 = vpop.f32.mrb[0].mxu0
  %v1306 = vadd.f32 %v1158, %v1305
  %v1307 = vpop.f32.mrb[0].mxu0
  %1308 = vmatprep.mubr.f32.mxu0 0.0
  %1309 = vmatmul.mubr.f32.gmra.mrb[0].mxu0 %v1183
  %v1310 = vpop.f32.mrb[0].mxu0
  %v1311 = vadd.f32 %v1158, %v1310
  %v1312 = vpop.f32.mrb[0].mxu0
  %1313 = vmatprep.mubr.f32.mxu0 0.0
  %1314 = vmatmul.mubr.f32.gmra.mrb[0].mxu0 %v1186
  %v1315 = vpop.f32.mrb[0].mxu0
  %v1316 = vadd.f32 %v1158, %v1315
  %v1317 = vpop.f32.mrb[0].mxu0
  %1318 = vmatprep.mubr.f32.mxu0 0.0
  %1319 = vmatmul.mubr.f32.gmra.mrb[0].mxu0 %v1189
  %v1320 = vpop.f32.mrb[0].mxu0
  %v1321 = vadd.f32 %v1158, %v1320
  %v1322 = vpop.f32.mrb[0].mxu0
  %1323 = vmatprep.mubr.f32.mxu0 0.0
  %1324 = vmatmul.mubr.f32.gmra.mrb[0].mxu0 %v1192
  %v1325 = vpop.f32.mrb[0].mxu0
  %v1326 = vadd.f32 %v1158, %v1325
  %v1327 = vpop.f32.mrb[0].mxu0
  %1328 = vmatprep.mubr.f32.mxu0 0.0
  %1329 = vmatmul.mubr.f32.gmra.mrb[0].mxu0 %v1195
  %v1330 = vpop.f32.mrb[0].mxu0
  %v1331 = vadd.f32 %v1158, %v1330
  %v1332 = vpop.f32.mrb[0].mxu0
  %1333 = vmatprep.mubr.f32.mxu0 0.0
  %1334 = vmatmul.mubr.f32.gmra.mrb[0].mxu0 %v1198
  %v1335 = vpop.f32.mrb[0].mxu0
  %v1336 = vadd.f32 %v1158, %v1335
  %v1337 = vpop.f32.mrb[0].mxu0
  %1338 = vmatprep.mubr.f32.mxu0 0.0
  %1339 = vmatmul.mubr.f32.gmra.mrb[0].mxu0 %v1201
  %v1340 = vpop.f32.mrb[0].mxu0
  %v1341 = vadd.f32 %v1158, %v1340
  %v1342 = vpop.f32.mrb[0].mxu0
  %1343 = vmatprep.mubr.f32.mxu0 0.0
  %1344 = vmatmul.mubr.f32.gmra.mrb[0].mxu0 %v1204
  %v1345 = vpop.f32.mrb[0].mxu0
  %v1346 = vadd.f32 %v1158, %v1345
  %v1347 = vpop.f32.mrb[0].mxu0
  %1348 = vmatprep.mubr.f32.mxu0 0.0
  %1349 = vmatmul.mubr.f32.gmra.mrb[0].mxu0 %v1207
  %v1350 = vpop.f32.mrb[0].mxu0
  %v1351 = vadd.f32 %v1158, %v1350
  %v1352 = vpop.f32.mrb[0].mxu0
  %1353 = vdwg.mxu0
  %1354 = vst [vmem:[%s8] sm:$0xff] %v1276
  %1355 = vst [vmem:[%s8 + $0x8] sm:$0xff] %v1281
  %1356 = vst [vmem:[%s8 + $0x10] sm:$0xff] %v1286
  %1357 = vst [vmem:[%s8 + $0x18] sm:$0xff] %v1291
  %1358 = vst [vmem:[%s8 + $0x20] sm:$0xff] %v1296
  %1359 = vst [vmem:[%s8 + $0x28] sm:$0xff] %v1301
  %1360 = vst [vmem:[%s8 + $0x30] sm:$0xff] %v1306
  %1361 = vst [vmem:[%s8 + $0x38] sm:$0xff] %v1311
  %1362 = vst [vmem:[%s8 + $0x40] sm:$0xff] %v1316
  %1363 = vst [vmem:[%s8 + $0x48] sm:$0xff] %v1321
  %1364 = vst [vmem:[%s8 + $0x50] sm:$0xff] %v1326
  %1365 = vst [vmem:[%s8 + $0x58] sm:$0xff] %v1331
  %1366 = vst [vmem:[%s8 + $0x60] sm:$0xff] %v1336
  %1367 = vst [vmem:[%s8 + $0x68] sm:$0xff] %v1341
  %1368 = vst [vmem:[%s8 + $0x70] sm:$0xff] %v1346
  %1369 = vst [vmem:[%s8 + $0x78] sm:$0xff] %v1351
  // Predicated region
  $region34: #{gcn_net_forward.3} parent=0 // pred_check
    _
  $region35: #{gcn_net_forward.3} parent=0 // pred_check_branch
    %1371 = sbr.rel (0) target = $region37
  $region36: #{gcn_net_forward.3} parent=0 // pred_region
    _
  $region37: #{gcn_net_forward.3} parent=0 // pred_fallthru
    _
  // Predicated region
  $region38: #{gcn_net_forward.3} parent=0 // pred_check
    _
  $region39: #{gcn_net_forward.3} parent=0 // pred_check_branch
    %1373 = sbr.rel (0) target = $region41
  $region40: #{gcn_net_forward.3} parent=0 // pred_region
    _
  $region41: #{gcn_net_forward.3} parent=0 // pred_fallthru
    _

// kernel: gcn_net_forward.2
$region0: #{gcn_net_forward.2}
  #allocation0 [shape = 'u32[]', space=smem, size = 0x4, offset = 0x4, fixed_abs, tag = 'smem constant byte address 0x4 - core index']
  #allocation1 [shape = 'u32[144,128]{1,0:T(1,128)}', space=vmem, size = 0x12000, scoped, tag = 'internal scratch']
  %s0 = inlined_call_operand.vmem [shape: f32[128,8], index: 0, kind: input, shape index: {}]
  %s1 = inlined_call_operand.vmem [shape: bf16[128,128], index: 1, kind: input, shape index: {}]
  %s2 = inlined_call_operand.vmem [shape: f32[8,32], index: 2, kind: input, shape index: {}]
  %s3 = inlined_call_operand.vmem [shape: f32[1,32], index: 3, kind: input, shape index: {}]
  %s4 = inlined_call_operand.vmem [shape: f32[2,32,32], index: 4, kind: input, shape index: {}]
  %s5 = inlined_call_operand.vmem [shape: f32[2,1,32], index: 5, kind: input, shape index: {}]
  %s6 = inlined_call_operand.vmem [shape: f32[32,16], index: 6, kind: input, shape index: {}]
  %s7 = inlined_call_operand.vmem [shape: f32[1,16], index: 7, kind: input, shape index: {}]
  %s8 = inlined_call_operand.vmem [shape: f32[16,8], index: 8, kind: input, shape index: {}]
  %s9 = inlined_call_operand.vmem [shape: f32[1,8], index: 9, kind: input, shape index: {}]
  %s10 = inlined_call_operand.vmem [shape: f32[8,96], index: 10, kind: input, shape index: {}]
  %s11 = inlined_call_operand.vmem [shape: f32[1,96], index: 11, kind: input, shape index: {}]
  %s12 = inlined_call_operand.vmem [shape: bf16[128,128], index: 12, kind: output, shape index: {}]
  %s13 = sld [smem:[#allocation0]]
  $region58: #{gcn_net_forward.2} parent=0
    _
  %s15 = ssub.s32 1, %s13
  %s16 = scalar_select 0, %s15, %s13
  // Predicated region
  $region2: #{gcn_net_forward.2} parent=0 // pred_check
    _
  $region3: #{gcn_net_forward.2} parent=0 // pred_check_branch
    %18 = sbr.rel (0) target = $region5
  $region4: #{gcn_net_forward.2} parent=0 // pred_region
    _
  $region5: #{gcn_net_forward.2} parent=0 // pred_fallthru
    _
  // Predicated region
  $region6: #{gcn_net_forward.2} parent=0 // pred_check
    _
  $region7: #{gcn_net_forward.2} parent=0 // pred_check_branch
    %20 = sbr.rel (0) target = $region9
  $region8: #{gcn_net_forward.2} parent=0 // pred_region
    _
  $region9: #{gcn_net_forward.2} parent=0 // pred_fallthru
    _
  // Predicated region
  $region10: #{gcn_net_forward.2} parent=0 // pred_check
    _
  $region11: #{gcn_net_forward.2} parent=0 // pred_check_branch
    %22 = sbr.rel (0) target = $region13
  $region12: #{gcn_net_forward.2} parent=0 // pred_region
    _
  $region13: #{gcn_net_forward.2} parent=0 // pred_fallthru
    _
  // Predicated region
  $region14: #{gcn_net_forward.2} parent=0 // pred_check
    _
  $region15: #{gcn_net_forward.2} parent=0 // pred_check_branch
    %24 = sbr.rel (0) target = $region17
  $region16: #{gcn_net_forward.2} parent=0 // pred_region
    _
  $region17: #{gcn_net_forward.2} parent=0 // pred_fallthru
    _
  // Predicated region
  $region18: #{gcn_net_forward.2} parent=0 // pred_check
    _
  $region19: #{gcn_net_forward.2} parent=0 // pred_check_branch
    %26 = sbr.rel (0) target = $region21
  $region20: #{gcn_net_forward.2} parent=0 // pred_region
    _
  $region21: #{gcn_net_forward.2} parent=0 // pred_fallthru
    _
  // Predicated region
  $region22: #{gcn_net_forward.2} parent=0 // pred_check
    _
  $region23: #{gcn_net_forward.2} parent=0 // pred_check_branch
    %28 = sbr.rel (0) target = $region25
  $region24: #{gcn_net_forward.2} parent=0 // pred_region
    _
  $region25: #{gcn_net_forward.2} parent=0 // pred_fallthru
    _
  // Predicated region
  $region26: #{gcn_net_forward.2} parent=0 // pred_check
    _
  $region27: #{gcn_net_forward.2} parent=0 // pred_check_branch
    %30 = sbr.rel (0) target = $region29
  $region28: #{gcn_net_forward.2} parent=0 // pred_region
    _
  $region29: #{gcn_net_forward.2} parent=0 // pred_fallthru
    _
  // Predicated region
  $region30: #{gcn_net_forward.2} parent=0 // pred_check
    _
  $region31: #{gcn_net_forward.2} parent=0 // pred_check_branch
    %32 = sbr.rel (0) target = $region33
  $region32: #{gcn_net_forward.2} parent=0 // pred_region
    _
  $region33: #{gcn_net_forward.2} parent=0 // pred_fallthru
    _
  // Predicated region
  $region34: #{gcn_net_forward.2} parent=0 // pred_check
    _
  $region35: #{gcn_net_forward.2} parent=0 // pred_check_branch
    %34 = sbr.rel (0) target = $region37
  $region36: #{gcn_net_forward.2} parent=0 // pred_region
    _
  $region37: #{gcn_net_forward.2} parent=0 // pred_fallthru
    _
  // Predicated region
  $region38: #{gcn_net_forward.2} parent=0 // pred_check
    _
  $region39: #{gcn_net_forward.2} parent=0 // pred_check_branch
    %36 = sbr.rel (0) target = $region41
  $region40: #{gcn_net_forward.2} parent=0 // pred_region
    _
  $region41: #{gcn_net_forward.2} parent=0 // pred_fallthru
    _
  // Predicated region
  $region42: #{gcn_net_forward.2} parent=0 // pred_check
    _
  $region43: #{gcn_net_forward.2} parent=0 // pred_check_branch
    %38 = sbr.rel (0) target = $region45
  $region44: #{gcn_net_forward.2} parent=0 // pred_region
    _
  $region45: #{gcn_net_forward.2} parent=0 // pred_fallthru
    _
  // Predicated region
  $region46: #{gcn_net_forward.2} parent=0 // pred_check
    _
  $region47: #{gcn_net_forward.2} parent=0 // pred_check_branch
    %40 = sbr.rel (0) target = $region49
  $region48: #{gcn_net_forward.2} parent=0 // pred_region
    _
  $region49: #{gcn_net_forward.2} parent=0 // pred_fallthru
    _
  %v42 = vld [vmem:[%s0] sm:$0xff]
  %v43 = vld [vmem:[%s0 + $0x8] sm:$0xff]
  %v44 = vld [vmem:[%s0 + $0x10] sm:$0xff]
  %v45 = vld [vmem:[%s0 + $0x18] sm:$0xff]
  %v46 = vld [vmem:[%s0 + $0x20] sm:$0xff]
  %v47 = vld [vmem:[%s0 + $0x28] sm:$0xff]
  %v48 = vld [vmem:[%s0 + $0x30] sm:$0xff]
  %v49 = vld [vmem:[%s0 + $0x38] sm:$0xff]
  %v50 = vld [vmem:[%s0 + $0x40] sm:$0xff]
  %v51 = vld [vmem:[%s0 + $0x48] sm:$0xff]
  %v52 = vld [vmem:[%s0 + $0x50] sm:$0xff]
  %v53 = vld [vmem:[%s0 + $0x58] sm:$0xff]
  %v54 = vld [vmem:[%s0 + $0x60] sm:$0xff]
  %v55 = vld [vmem:[%s0 + $0x68] sm:$0xff]
  %v56 = vld [vmem:[%s0 + $0x70] sm:$0xff]
  %v57 = vld [vmem:[%s0 + $0x78] sm:$0xff]
  %v58 = vld [vmem:[%s2] sm:$0xff]
  %v59 = vld [vmem:[%s3] sm:$0x1]
  %v61 = vlaneseq
  %v62 = vshrl.u32 %v61, 7
  %v63 = vsub.s32 0, %v62
  %v64 = vrot.slane %v59, %v63
  %vm66 = vcmask 64512
  %v68 = vsel %vm66, %v42, 0
  %v71 = vsel %vm66, %v43, 0
  %v74 = vsel %vm66, %v44, 0
  %v77 = vsel %vm66, %v45, 0
  %v80 = vsel %vm66, %v46, 0
  %v83 = vsel %vm66, %v47, 0
  %v86 = vsel %vm66, %v48, 0
  %v89 = vsel %vm66, %v49, 0
  %v92 = vsel %vm66, %v50, 0
  %v95 = vsel %vm66, %v51, 0
  %v98 = vsel %vm66, %v52, 0
  %v101 = vsel %vm66, %v53, 0
  %v104 = vsel %vm66, %v54, 0
  %v107 = vsel %vm66, %v55, 0
  %v110 = vsel %vm66, %v56, 0
  %v113 = vsel %vm66, %v57, 0
  %115 = vmatprep.subr.mxu0 0.0
  %116 = vmatpush1.msra.mxu0 %v58
  %117 = vmatprep.subr.mxu0 0.0
  %118 = vmatpush1.msra.mxu0 0.0
  %119 = vmatprep.subr.mxu0 0.0
  %120 = vmatpush1.msra.mxu0 0.0
  %121 = vmatprep.subr.mxu0 0.0
  %122 = vmatpush1.msra.mxu0 0.0
  %123 = vmatprep.subr.mxu0 0.0
  %124 = vmatpush1.msra.mxu0 0.0
  %125 = vmatprep.subr.mxu0 0.0
  %126 = vmatpush1.msra.mxu0 0.0
  %127 = vmatprep.subr.mxu0 0.0
  %128 = vmatpush1.msra.mxu0 0.0
  %129 = vmatprep.subr.mxu0 0.0
  %130 = vmatpush1.msra.mxu0 0.0
  %131 = vmatprep.subr.mxu0 0.0
  %132 = vmatpush1.msra.mxu0 0.0
  %133 = vmatprep.subr.mxu0 0.0
  %134 = vmatpush1.msra.mxu0 0.0
  %135 = vmatprep.subr.mxu0 0.0
  %136 = vmatpush1.msra.mxu0 0.0
  %137 = vmatprep.subr.mxu0 0.0
  %138 = vmatpush1.msra.mxu0 0.0
  %139 = vmatprep.subr.mxu0 0.0
  %140 = vmatpush1.msra.mxu0 0.0
  %141 = vmatprep.subr.mxu0 0.0
  %142 = vmatpush1.msra.mxu0 0.0
  %143 = vmatprep.subr.mxu0 0.0
  %144 = vmatpush1.msra.mxu0 0.0
  %145 = vmatprep.subr.mxu0 0.0
  %146 = vmatpush1.msra.mxu0 0.0
  %147 = vmatprep.subr.mxu0 0.0
  %148 = vmatpush1.msra.mxu0 0.0
  %149 = vmatprep.subr.mxu0 0.0
  %150 = vmatpush1.msra.mxu0 0.0
  %151 = vmatprep.subr.mxu0 0.0
  %152 = vmatpush1.msra.mxu0 0.0
  %153 = vmatprep.subr.mxu0 0.0
  %154 = vmatpush1.msra.mxu0 0.0
  %155 = vmatprep.subr.mxu0 0.0
  %156 = vmatpush1.msra.mxu0 0.0
  %157 = vmatprep.subr.mxu0 0.0
  %158 = vmatpush1.msra.mxu0 0.0
  %159 = vmatprep.subr.mxu0 0.0
  %160 = vmatpush1.msra.mxu0 0.0
  %161 = vmatprep.subr.mxu0 0.0
  %162 = vmatpush1.msra.mxu0 0.0
  %163 = vmatprep.subr.mxu0 0.0
  %164 = vmatpush1.msra.mxu0 0.0
  %165 = vmatprep.subr.mxu0 0.0
  %166 = vmatpush1.msra.mxu0 0.0
  %167 = vmatprep.subr.mxu0 0.0
  %168 = vmatpush1.msra.mxu0 0.0
  %169 = vmatprep.subr.mxu0 0.0
  %170 = vmatpush1.msra.mxu0 0.0
  %171 = vmatprep.subr.mxu0 0.0
  %172 = vmatpush1.msra.mxu0 0.0
  %173 = vmatprep.subr.mxu0 0.0
  %174 = vmatpush1.msra.mxu0 0.0
  %175 = vmatprep.subr.mxu0 0.0
  %176 = vmatpush1.msra.mxu0 0.0
  %177 = vmatprep.subr.mxu0 0.0
  %178 = vmatpush1.msra.mxu0 0.0
  %179 = vmatprep.mubr.f32.mxu0 0.0
  %180 = vmatmul.mubr.f32.gmra.mrb[0].mxu0 %v68
  %v181 = vpop.f32.mrb[0].mxu0
  %v182 = vadd.f32 %v64, %v181
  %v183 = vpop.f32.mrb[0].mxu0
  %184 = vmatprep.mubr.f32.mxu0 0.0
  %185 = vmatmul.mubr.f32.gmra.mrb[0].mxu0 %v71
  %v186 = vpop.f32.mrb[0].mxu0
  %v187 = vadd.f32 %v64, %v186
  %v188 = vpop.f32.mrb[0].mxu0
  %189 = vmatprep.mubr.f32.mxu0 0.0
  %190 = vmatmul.mubr.f32.gmra.mrb[0].mxu0 %v74
  %v191 = vpop.f32.mrb[0].mxu0
  %v192 = vadd.f32 %v64, %v191
  %v193 = vpop.f32.mrb[0].mxu0
  %194 = vmatprep.mubr.f32.mxu0 0.0
  %195 = vmatmul.mubr.f32.gmra.mrb[0].mxu0 %v77
  %v196 = vpop.f32.mrb[0].mxu0
  %v197 = vadd.f32 %v64, %v196
  %v198 = vpop.f32.mrb[0].mxu0
  %199 = vmatprep.mubr.f32.mxu0 0.0
  %200 = vmatmul.mubr.f32.gmra.mrb[0].mxu0 %v80
  %v201 = vpop.f32.mrb[0].mxu0
  %v202 = vadd.f32 %v64, %v201
  %v203 = vpop.f32.mrb[0].mxu0
  %204 = vmatprep.mubr.f32.mxu0 0.0
  %205 = vmatmul.mubr.f32.gmra.mrb[0].mxu0 %v83
  %v206 = vpop.f32.mrb[0].mxu0
  %v207 = vadd.f32 %v64, %v206
  %v208 = vpop.f32.mrb[0].mxu0
  %209 = vmatprep.mubr.f32.mxu0 0.0
  %210 = vmatmul.mubr.f32.gmra.mrb[0].mxu0 %v86
  %v211 = vpop.f32.mrb[0].mxu0
  %v212 = vadd.f32 %v64, %v211
  %v213 = vpop.f32.mrb[0].mxu0
  %214 = vmatprep.mubr.f32.mxu0 0.0
  %215 = vmatmul.mubr.f32.gmra.mrb[0].mxu0 %v89
  %v216 = vpop.f32.mrb[0].mxu0
  %v217 = vadd.f32 %v64, %v216
  %v218 = vpop.f32.mrb[0].mxu0
  %219 = vmatprep.mubr.f32.mxu0 0.0
  %220 = vmatmul.mubr.f32.gmra.mrb[0].mxu0 %v92
  %v221 = vpop.f32.mrb[0].mxu0
  %v222 = vadd.f32 %v64, %v221
  %v223 = vpop.f32.mrb[0].mxu0
  %224 = vmatprep.mubr.f32.mxu0 0.0
  %225 = vmatmul.mubr.f32.gmra.mrb[0].mxu0 %v95
  %v226 = vpop.f32.mrb[0].mxu0
  %v227 = vadd.f32 %v64, %v226
  %v228 = vpop.f32.mrb[0].mxu0
  %229 = vmatprep.mubr.f32.mxu0 0.0
  %230 = vmatmul.mubr.f32.gmra.mrb[0].mxu0 %v98
  %v231 = vpop.f32.mrb[0].mxu0
  %v232 = vadd.f32 %v64, %v231
  %v233 = vpop.f32.mrb[0].mxu0
  %234 = vmatprep.mubr.f32.mxu0 0.0
  %235 = vmatmul.mubr.f32.gmra.mrb[0].mxu0 %v101
  %v236 = vpop.f32.mrb[0].mxu0
  %v237 = vadd.f32 %v64, %v236
  %v238 = vpop.f32.mrb[0].mxu0
  %239 = vmatprep.mubr.f32.mxu0 0.0
  %240 = vmatmul.mubr.f32.gmra.mrb[0].mxu0 %v104
  %v241 = vpop.f32.mrb[0].mxu0
  %v242 = vadd.f32 %v64, %v241
  %v243 = vpop.f32.mrb[0].mxu0
  %244 = vmatprep.mubr.f32.mxu0 0.0
  %245 = vmatmul.mubr.f32.gmra.mrb[0].mxu0 %v107
  %v246 = vpop.f32.mrb[0].mxu0
  %v247 = vadd.f32 %v64, %v246
  %v248 = vpop.f32.mrb[0].mxu0
  %249 = vmatprep.mubr.f32.mxu0 0.0
  %250 = vmatmul.mubr.f32.gmra.mrb[0].mxu0 %v110
  %v251 = vpop.f32.mrb[0].mxu0
  %v252 = vadd.f32 %v64, %v251
  %v253 = vpop.f32.mrb[0].mxu0
  %254 = vmatprep.mubr.f32.mxu0 0.0
  %255 = vmatmul.mubr.f32.gmra.mrb[0].mxu0 %v113
  %v256 = vpop.f32.mrb[0].mxu0
  %v257 = vadd.f32 %v64, %v256
  %v258 = vpop.f32.mrb[0].mxu0
  %259 = vdwg.mxu0
  %v260 = vld [vmem:[%s1] sm:$0xf]
  %v261 = vld [vmem:[%s1 + $0x4] sm:$0xf]
  %v262 = vld [vmem:[%s1 + $0x8] sm:$0xf]
  %v263 = vld [vmem:[%s1 + $0xc] sm:$0xf]
  %v264 = vld [vmem:[%s1 + $0x10] sm:$0xf]
  %v265 = vld [vmem:[%s1 + $0x14] sm:$0xf]
  %v266 = vld [vmem:[%s1 + $0x18] sm:$0xf]
  %v267 = vld [vmem:[%s1 + $0x1c] sm:$0xf]
  %v268 = vld [vmem:[%s1 + $0x20] sm:$0xf]
  %v269 = vld [vmem:[%s1 + $0x24] sm:$0xf]
  %v270 = vld [vmem:[%s1 + $0x28] sm:$0xf]
  %v271 = vld [vmem:[%s1 + $0x2c] sm:$0xf]
  %v272 = vld [vmem:[%s1 + $0x30] sm:$0xf]
  %v273 = vld [vmem:[%s1 + $0x34] sm:$0xf]
  %v274 = vld [vmem:[%s1 + $0x38] sm:$0xf]
  %v275 = vld [vmem:[%s1 + $0x3c] sm:$0xf]
  %v276 = vpack.c.bf16 %v187, %v182
  %v277 = vpack.c.bf16 %v197, %v192
  %v278 = vpack.c.bf16 %v207, %v202
  %v279 = vpack.c.bf16 %v217, %v212
  %v280 = vpack.c.bf16 %v227, %v222
  %v281 = vpack.c.bf16 %v237, %v232
  %v282 = vpack.c.bf16 %v247, %v242
  %v283 = vpack.c.bf16 %v257, %v252
  %v300 = vunpack.c.l.b16 %v260
  %v301 = vunpack.c.l.b16 %v261
  %v302 = vunpack.c.l.b16 %v262
  %v303 = vunpack.c.l.b16 %v263
  %v304 = vunpack.c.l.b16 %v264
  %v305 = vunpack.c.l.b16 %v265
  %v306 = vunpack.c.l.b16 %v266
  %v307 = vunpack.c.l.b16 %v267
  %v308 = vunpack.c.l.b16 %v268
  %v309 = vunpack.c.l.b16 %v269
  %v310 = vunpack.c.l.b16 %v270
  %v311 = vunpack.c.l.b16 %v271
  %v312 = vunpack.c.l.b16 %v272
  %v313 = vunpack.c.l.b16 %v273
  %v314 = vunpack.c.l.b16 %v274
  %v315 = vunpack.c.l.b16 %v275
  %v316 = vpack.c.b16 %v301, %v300
  %v317 = vpack.c.b16 %v303, %v302
  %v318 = vpack.c.b16 %v305, %v304
  %v319 = vpack.c.b16 %v307, %v306
  %v320 = vpack.c.b16 %v309, %v308
  %v321 = vpack.c.b16 %v311, %v310
  %v322 = vpack.c.b16 %v313, %v312
  %v323 = vpack.c.b16 %v315, %v314
  %332 = vmatprep.subr.bf16.mxu0 0
  %333 = vmatpush1.bf16.msra.mxu0 %v276
  %334 = vmatprep.subr.bf16.mxu0 0
  %335 = vmatpush1.bf16.msra.mxu0 %v277
  %336 = vmatprep.subr.bf16.mxu0 0
  %337 = vmatpush1.bf16.msra.mxu0 %v278
  %338 = vmatprep.subr.bf16.mxu0 0
  %339 = vmatpush1.bf16.msra.mxu0 %v279
  %340 = vmatprep.subr.bf16.mxu0 0
  %341 = vmatpush1.bf16.msra.mxu0 %v280
  %342 = vmatprep.subr.bf16.mxu0 0
  %343 = vmatpush1.bf16.msra.mxu0 %v281
  %344 = vmatprep.subr.bf16.mxu0 0
  %345 = vmatpush1.bf16.msra.mxu0 %v282
  %346 = vmatprep.subr.bf16.mxu0 0
  %347 = vmatpush1.bf16.msra.mxu0 %v283
  %348 = vmatprep.subr.bf16.mxu0 0
  %349 = vmatpush1.bf16.msra.mxu0 0
  %350 = vmatprep.subr.bf16.mxu0 0
  %351 = vmatpush1.bf16.msra.mxu0 0
  %352 = vmatprep.subr.bf16.mxu0 0
  %353 = vmatpush1.bf16.msra.mxu0 0
  %354 = vmatprep.subr.bf16.mxu0 0
  %355 = vmatpush1.bf16.msra.mxu0 0
  %356 = vmatprep.subr.bf16.mxu0 0
  %357 = vmatpush1.bf16.msra.mxu0 0
  %358 = vmatprep.subr.bf16.mxu0 0
  %359 = vmatpush1.bf16.msra.mxu0 0
  %360 = vmatprep.subr.bf16.mxu0 0
  %361 = vmatpush1.bf16.msra.mxu0 0
  %362 = vmatprep.subr.bf16.mxu0 0
  %363 = vmatpush1.bf16.msra.mxu0 0
  %364 = vmatprep.mubr.bf16.mxu0 0
  %365 = vmatmul.mubr.bf16.gmra.mrb[0].mxu0 %v316
  %v366 = vpop.f32.mrb[0].mxu0
  %v367 = vadd.f32 0.0, %v366
  %v368 = vpop.f32.mrb[0].mxu0
  %v369 = vpop.f32.mrb[0].mxu0
  %v370 = vadd.f32 0.0, %v369
  %v371 = vpop.f32.mrb[0].mxu0
  %372 = vmatprep.mubr.bf16.mxu0 0
  %373 = vmatmul.mubr.bf16.gmra.mrb[0].mxu0 %v317
  %v374 = vpop.f32.mrb[0].mxu0
  %v375 = vadd.f32 0.0, %v374
  %v376 = vpop.f32.mrb[0].mxu0
  %v377 = vpop.f32.mrb[0].mxu0
  %v378 = vadd.f32 0.0, %v377
  %v379 = vpop.f32.mrb[0].mxu0
  %380 = vmatprep.mubr.bf16.mxu0 0
  %381 = vmatmul.mubr.bf16.gmra.mrb[0].mxu0 %v318
  %v382 = vpop.f32.mrb[0].mxu0
  %v383 = vadd.f32 0.0, %v382
  %v384 = vpop.f32.mrb[0].mxu0
  %v385 = vpop.f32.mrb[0].mxu0
  %v386 = vadd.f32 0.0, %v385
  %v387 = vpop.f32.mrb[0].mxu0
  %388 = vmatprep.mubr.bf16.mxu0 0
  %389 = vmatmul.mubr.bf16.gmra.mrb[0].mxu0 %v319
  %v390 = vpop.f32.mrb[0].mxu0
  %v391 = vadd.f32 0.0, %v390
  %v392 = vpop.f32.mrb[0].mxu0
  %v393 = vpop.f32.mrb[0].mxu0
  %v394 = vadd.f32 0.0, %v393
  %v395 = vpop.f32.mrb[0].mxu0
  %396 = vmatprep.mubr.bf16.mxu0 0
  %397 = vmatmul.mubr.bf16.gmra.mrb[0].mxu0 %v320
  %v398 = vpop.f32.mrb[0].mxu0
  %v399 = vadd.f32 0.0, %v398
  %v400 = vpop.f32.mrb[0].mxu0
  %v401 = vpop.f32.mrb[0].mxu0
  %v402 = vadd.f32 0.0, %v401
  %v403 = vpop.f32.mrb[0].mxu0
  %404 = vmatprep.mubr.bf16.mxu0 0
  %405 = vmatmul.mubr.bf16.gmra.mrb[0].mxu0 %v321
  %v406 = vpop.f32.mrb[0].mxu0
  %v407 = vadd.f32 0.0, %v406
  %v408 = vpop.f32.mrb[0].mxu0
  %v409 = vpop.f32.mrb[0].mxu0
  %v410 = vadd.f32 0.0, %v409
  %v411 = vpop.f32.mrb[0].mxu0
  %412 = vmatprep.mubr.bf16.mxu0 0
  %413 = vmatmul.mubr.bf16.gmra.mrb[0].mxu0 %v322
  %v414 = vpop.f32.mrb[0].mxu0
  %v415 = vadd.f32 0.0, %v414
  %v416 = vpop.f32.mrb[0].mxu0
  %v417 = vpop.f32.mrb[0].mxu0
  %v418 = vadd.f32 0.0, %v417
  %v419 = vpop.f32.mrb[0].mxu0
  %420 = vmatprep.mubr.bf16.mxu0 0
  %421 = vmatmul.mubr.bf16.gmra.mrb[0].mxu0 %v323
  %v422 = vpop.f32.mrb[0].mxu0
  %v423 = vadd.f32 0.0, %v422
  %v424 = vpop.f32.mrb[0].mxu0
  %v425 = vpop.f32.mrb[0].mxu0
  %v426 = vadd.f32 0.0, %v425
  %v427 = vpop.f32.mrb[0].mxu0
  %428 = vdwg.mxu0
  %v429 = vld [vmem:[%s4] sm:$0xff]
  %v430 = vld [vmem:[%s4 + $0x8] sm:$0xff]
  %v431 = vld [vmem:[%s4 + $0x10] sm:$0xff]
  %v432 = vld [vmem:[%s4 + $0x18] sm:$0xff]
  %v433 = vld [vmem:[%s5] sm:$0x1]
  %v435 = vlaneseq
  %v436 = vshrl.u32 %v435, 7
  %v437 = vsub.s32 0, %v436
  %v438 = vrot.slane %v433, %v437
  %vm440 = vcmask 261120
  %v442 = vsel %vm440, %v367, 0
  %v445 = vsel %vm440, %v370, 0
  %v448 = vsel %vm440, %v375, 0
  %v451 = vsel %vm440, %v378, 0
  %v454 = vsel %vm440, %v383, 0
  %v457 = vsel %vm440, %v386, 0
  %v460 = vsel %vm440, %v391, 0
  %v463 = vsel %vm440, %v394, 0
  %v466 = vsel %vm440, %v399, 0
  %v469 = vsel %vm440, %v402, 0
  %v472 = vsel %vm440, %v407, 0
  %v475 = vsel %vm440, %v410, 0
  %v478 = vsel %vm440, %v415, 0
  %v481 = vsel %vm440, %v418, 0
  %v484 = vsel %vm440, %v423, 0
  %v487 = vsel %vm440, %v426, 0
  %489 = vmatprep.subr.mxu0 0.0
  %490 = vmatpush1.msra.mxu0 %v429
  %491 = vmatprep.subr.mxu0 0.0
  %492 = vmatpush1.msra.mxu0 %v430
  %493 = vmatprep.subr.mxu0 0.0
  %494 = vmatpush1.msra.mxu0 %v431
  %495 = vmatprep.subr.mxu0 0.0
  %496 = vmatpush1.msra.mxu0 %v432
  %497 = vmatprep.subr.mxu0 0.0
  %498 = vmatpush1.msra.mxu0 0.0
  %499 = vmatprep.subr.mxu0 0.0
  %500 = vmatpush1.msra.mxu0 0.0
  %501 = vmatprep.subr.mxu0 0.0
  %502 = vmatpush1.msra.mxu0 0.0
  %503 = vmatprep.subr.mxu0 0.0
  %504 = vmatpush1.msra.mxu0 0.0
  %505 = vmatprep.subr.mxu0 0.0
  %506 = vmatpush1.msra.mxu0 0.0
  %507 = vmatprep.subr.mxu0 0.0
  %508 = vmatpush1.msra.mxu0 0.0
  %509 = vmatprep.subr.mxu0 0.0
  %510 = vmatpush1.msra.mxu0 0.0
  %511 = vmatprep.subr.mxu0 0.0
  %512 = vmatpush1.msra.mxu0 0.0
  %513 = vmatprep.subr.mxu0 0.0
  %514 = vmatpush1.msra.mxu0 0.0
  %515 = vmatprep.subr.mxu0 0.0
  %516 = vmatpush1.msra.mxu0 0.0
  %517 = vmatprep.subr.mxu0 0.0
  %518 = vmatpush1.msra.mxu0 0.0
  %519 = vmatprep.subr.mxu0 0.0
  %520 = vmatpush1.msra.mxu0 0.0
  %521 = vmatprep.subr.mxu0 0.0
  %522 = vmatpush1.msra.mxu0 0.0
  %523 = vmatprep.subr.mxu0 0.0
  %524 = vmatpush1.msra.mxu0 0.0
  %525 = vmatprep.subr.mxu0 0.0
  %526 = vmatpush1.msra.mxu0 0.0
  %527 = vmatprep.subr.mxu0 0.0
  %528 = vmatpush1.msra.mxu0 0.0
  %529 = vmatprep.subr.mxu0 0.0
  %530 = vmatpush1.msra.mxu0 0.0
  %531 = vmatprep.subr.mxu0 0.0
  %532 = vmatpush1.msra.mxu0 0.0
  %533 = vmatprep.subr.mxu0 0.0
  %534 = vmatpush1.msra.mxu0 0.0
  %535 = vmatprep.subr.mxu0 0.0
  %536 = vmatpush1.msra.mxu0 0.0
  %537 = vmatprep.subr.mxu0 0.0
  %538 = vmatpush1.msra.mxu0 0.0
  %539 = vmatprep.subr.mxu0 0.0
  %540 = vmatpush1.msra.mxu0 0.0
  %541 = vmatprep.subr.mxu0 0.0
  %542 = vmatpush1.msra.mxu0 0.0
  %543 = vmatprep.subr.mxu0 0.0
  %544 = vmatpush1.msra.mxu0 0.0
  %545 = vmatprep.subr.mxu0 0.0
  %546 = vmatpush1.msra.mxu0 0.0
  %547 = vmatprep.subr.mxu0 0.0
  %548 = vmatpush1.msra.mxu0 0.0
  %549 = vmatprep.subr.mxu0 0.0
  %550 = vmatpush1.msra.mxu0 0.0
  %551 = vmatprep.subr.mxu0 0.0
  %552 = vmatpush1.msra.mxu0 0.0
  %553 = vmatprep.mubr.f32.mxu0 0.0
  %554 = vmatmul.mubr.f32.gmra.mrb[0].mxu0 %v442
  %v555 = vpop.f32.mrb[0].mxu0
  %v556 = vadd.f32 %v438, %v555
  %v557 = vpop.f32.mrb[0].mxu0
  %558 = vmatprep.mubr.f32.mxu0 0.0
  %559 = vmatmul.mubr.f32.gmra.mrb[0].mxu0 %v445
  %v560 = vpop.f32.mrb[0].mxu0
  %v561 = vadd.f32 %v438, %v560
  %v562 = vpop.f32.mrb[0].mxu0
  %563 = vmatprep.mubr.f32.mxu0 0.0
  %564 = vmatmul.mubr.f32.gmra.mrb[0].mxu0 %v448
  %v565 = vpop.f32.mrb[0].mxu0
  %v566 = vadd.f32 %v438, %v565
  %v567 = vpop.f32.mrb[0].mxu0
  %568 = vmatprep.mubr.f32.mxu0 0.0
  %569 = vmatmul.mubr.f32.gmra.mrb[0].mxu0 %v451
  %v570 = vpop.f32.mrb[0].mxu0
  %v571 = vadd.f32 %v438, %v570
  %v572 = vpop.f32.mrb[0].mxu0
  %573 = vmatprep.mubr.f32.mxu0 0.0
  %574 = vmatmul.mubr.f32.gmra.mrb[0].mxu0 %v454
  %v575 = vpop.f32.mrb[0].mxu0
  %v576 = vadd.f32 %v438, %v575
  %v577 = vpop.f32.mrb[0].mxu0
  %578 = vmatprep.mubr.f32.mxu0 0.0
  %579 = vmatmul.mubr.f32.gmra.mrb[0].mxu0 %v457
  %v580 = vpop.f32.mrb[0].mxu0
  %v581 = vadd.f32 %v438, %v580
  %v582 = vpop.f32.mrb[0].mxu0
  %583 = vmatprep.mubr.f32.mxu0 0.0
  %584 = vmatmul.mubr.f32.gmra.mrb[0].mxu0 %v460
  %v585 = vpop.f32.mrb[0].mxu0
  %v586 = vadd.f32 %v438, %v585
  %v587 = vpop.f32.mrb[0].mxu0
  %588 = vmatprep.mubr.f32.mxu0 0.0
  %589 = vmatmul.mubr.f32.gmra.mrb[0].mxu0 %v463
  %v590 = vpop.f32.mrb[0].mxu0
  %v591 = vadd.f32 %v438, %v590
  %v592 = vpop.f32.mrb[0].mxu0
  %593 = vmatprep.mubr.f32.mxu0 0.0
  %594 = vmatmul.mubr.f32.gmra.mrb[0].mxu0 %v466
  %v595 = vpop.f32.mrb[0].mxu0
  %v596 = vadd.f32 %v438, %v595
  %v597 = vpop.f32.mrb[0].mxu0
  %598 = vmatprep.mubr.f32.mxu0 0.0
  %599 = vmatmul.mubr.f32.gmra.mrb[0].mxu0 %v469
  %v600 = vpop.f32.mrb[0].mxu0
  %v601 = vadd.f32 %v438, %v600
  %v602 = vpop.f32.mrb[0].mxu0
  %603 = vmatprep.mubr.f32.mxu0 0.0
  %604 = vmatmul.mubr.f32.gmra.mrb[0].mxu0 %v472
  %v605 = vpop.f32.mrb[0].mxu0
  %v606 = vadd.f32 %v438, %v605
  %v607 = vpop.f32.mrb[0].mxu0
  %608 = vmatprep.mubr.f32.mxu0 0.0
  %609 = vmatmul.mubr.f32.gmra.mrb[0].mxu0 %v475
  %v610 = vpop.f32.mrb[0].mxu0
  %v611 = vadd.f32 %v438, %v610
  %v612 = vpop.f32.mrb[0].mxu0
  %613 = vmatprep.mubr.f32.mxu0 0.0
  %614 = vmatmul.mubr.f32.gmra.mrb[0].mxu0 %v478
  %v615 = vpop.f32.mrb[0].mxu0
  %v616 = vadd.f32 %v438, %v615
  %v617 = vpop.f32.mrb[0].mxu0
  %618 = vmatprep.mubr.f32.mxu0 0.0
  %619 = vmatmul.mubr.f32.gmra.mrb[0].mxu0 %v481
  %v620 = vpop.f32.mrb[0].mxu0
  %v621 = vadd.f32 %v438, %v620
  %v622 = vpop.f32.mrb[0].mxu0
  %623 = vmatprep.mubr.f32.mxu0 0.0
  %624 = vmatmul.mubr.f32.gmra.mrb[0].mxu0 %v484
  %v625 = vpop.f32.mrb[0].mxu0
  %v626 = vadd.f32 %v438, %v625
  %v627 = vpop.f32.mrb[0].mxu0
  %628 = vmatprep.mubr.f32.mxu0 0.0
  %629 = vmatmul.mubr.f32.gmra.mrb[0].mxu0 %v487
  %v630 = vpop.f32.mrb[0].mxu0
  %v631 = vadd.f32 %v438, %v630
  %v632 = vpop.f32.mrb[0].mxu0
  %633 = vdwg.mxu0
  %v634 = vmax.f32 %v556, 0.0
  %v635 = vmax.f32 %v561, 0.0
  %v636 = vmax.f32 %v566, 0.0
  %v637 = vmax.f32 %v571, 0.0
  %v638 = vmax.f32 %v576, 0.0
  %v639 = vmax.f32 %v581, 0.0
  %v640 = vmax.f32 %v586, 0.0
  %v641 = vmax.f32 %v591, 0.0
  %v642 = vmax.f32 %v596, 0.0
  %v643 = vmax.f32 %v601, 0.0
  %v644 = vmax.f32 %v606, 0.0
  %v645 = vmax.f32 %v611, 0.0
  %v646 = vmax.f32 %v616, 0.0
  %v647 = vmax.f32 %v621, 0.0
  %v648 = vmax.f32 %v626, 0.0
  %v649 = vmax.f32 %v631, 0.0
  %v650 = vadd.f32 %v182, %v634
  %v651 = vadd.f32 %v187, %v635
  %v652 = vadd.f32 %v192, %v636
  %v653 = vadd.f32 %v197, %v637
  %v654 = vadd.f32 %v202, %v638
  %v655 = vadd.f32 %v207, %v639
  %v656 = vadd.f32 %v212, %v640
  %v657 = vadd.f32 %v217, %v641
  %v658 = vadd.f32 %v222, %v642
  %v659 = vadd.f32 %v227, %v643
  %v660 = vadd.f32 %v232, %v644
  %v661 = vadd.f32 %v237, %v645
  %v662 = vadd.f32 %v242, %v646
  %v663 = vadd.f32 %v247, %v647
  %v664 = vadd.f32 %v252, %v648
  %v665 = vadd.f32 %v257, %v649
  %v666 = vpack.c.bf16 %v651, %v650
  %v667 = vpack.c.bf16 %v653, %v652
  %v668 = vpack.c.bf16 %v655, %v654
  %v669 = vpack.c.bf16 %v657, %v656
  %v670 = vpack.c.bf16 %v659, %v658
  %v671 = vpack.c.bf16 %v661, %v660
  %v672 = vpack.c.bf16 %v663, %v662
  %v673 = vpack.c.bf16 %v665, %v664
  %674 = vmatprep.subr.bf16.mxu0 0
  %675 = vmatpush1.bf16.msra.mxu0 %v666
  %676 = vmatprep.subr.bf16.mxu0 0
  %677 = vmatpush1.bf16.msra.mxu0 %v667
  %678 = vmatprep.subr.bf16.mxu0 0
  %679 = vmatpush1.bf16.msra.mxu0 %v668
  %680 = vmatprep.subr.bf16.mxu0 0
  %681 = vmatpush1.bf16.msra.mxu0 %v669
  %682 = vmatprep.subr.bf16.mxu0 0
  %683 = vmatpush1.bf16.msra.mxu0 %v670
  %684 = vmatprep.subr.bf16.mxu0 0
  %685 = vmatpush1.bf16.msra.mxu0 %v671
  %686 = vmatprep.subr.bf16.mxu0 0
  %687 = vmatpush1.bf16.msra.mxu0 %v672
  %688 = vmatprep.subr.bf16.mxu0 0
  %689 = vmatpush1.bf16.msra.mxu0 %v673
  %690 = vmatprep.subr.bf16.mxu0 0
  %691 = vmatpush1.bf16.msra.mxu0 0
  %692 = vmatprep.subr.bf16.mxu0 0
  %693 = vmatpush1.bf16.msra.mxu0 0
  %694 = vmatprep.subr.bf16.mxu0 0
  %695 = vmatpush1.bf16.msra.mxu0 0
  %696 = vmatprep.subr.bf16.mxu0 0
  %697 = vmatpush1.bf16.msra.mxu0 0
  %698 = vmatprep.subr.bf16.mxu0 0
  %699 = vmatpush1.bf16.msra.mxu0 0
  %700 = vmatprep.subr.bf16.mxu0 0
  %701 = vmatpush1.bf16.msra.mxu0 0
  %702 = vmatprep.subr.bf16.mxu0 0
  %703 = vmatpush1.bf16.msra.mxu0 0
  %704 = vmatprep.subr.bf16.mxu0 0
  %705 = vmatpush1.bf16.msra.mxu0 0
  %706 = vmatprep.mubr.bf16.mxu0 0
  %707 = vmatmul.mubr.bf16.gmra.mrb[0].mxu0 %v316
  %v708 = vpop.f32.mrb[0].mxu0
  %v709 = vadd.f32 0.0, %v708
  %v710 = vpop.f32.mrb[0].mxu0
  %v711 = vpop.f32.mrb[0].mxu0
  %v712 = vadd.f32 0.0, %v711
  %v713 = vpop.f32.mrb[0].mxu0
  %714 = vmatprep.mubr.bf16.mxu0 0
  %715 = vmatmul.mubr.bf16.gmra.mrb[0].mxu0 %v317
  %v716 = vpop.f32.mrb[0].mxu0
  %v717 = vadd.f32 0.0, %v716
  %v718 = vpop.f32.mrb[0].mxu0
  %v719 = vpop.f32.mrb[0].mxu0
  %v720 = vadd.f32 0.0, %v719
  %v721 = vpop.f32.mrb[0].mxu0
  %722 = vmatprep.mubr.bf16.mxu0 0
  %723 = vmatmul.mubr.bf16.gmra.mrb[0].mxu0 %v318
  %v724 = vpop.f32.mrb[0].mxu0
  %v725 = vadd.f32 0.0, %v724
  %v726 = vpop.f32.mrb[0].mxu0
  %v727 = vpop.f32.mrb[0].mxu0
  %v728 = vadd.f32 0.0, %v727
  %v729 = vpop.f32.mrb[0].mxu0
  %730 = vmatprep.mubr.bf16.mxu0 0
  %731 = vmatmul.mubr.bf16.gmra.mrb[0].mxu0 %v319
  %v732 = vpop.f32.mrb[0].mxu0
  %v733 = vadd.f32 0.0, %v732
  %v734 = vpop.f32.mrb[0].mxu0
  %v735 = vpop.f32.mrb[0].mxu0
  %v736 = vadd.f32 0.0, %v735
  %v737 = vpop.f32.mrb[0].mxu0
  %738 = vmatprep.mubr.bf16.mxu0 0
  %739 = vmatmul.mubr.bf16.gmra.mrb[0].mxu0 %v320
  %v740 = vpop.f32.mrb[0].mxu0
  %v741 = vadd.f32 0.0, %v740
  %v742 = vpop.f32.mrb[0].mxu0
  %v743 = vpop.f32.mrb[0].mxu0
  %v744 = vadd.f32 0.0, %v743
  %v745 = vpop.f32.mrb[0].mxu0
  %746 = vmatprep.mubr.bf16.mxu0 0
  %747 = vmatmul.mubr.bf16.gmra.mrb[0].mxu0 %v321
  %v748 = vpop.f32.mrb[0].mxu0
  %v749 = vadd.f32 0.0, %v748
  %v750 = vpop.f32.mrb[0].mxu0
  %v751 = vpop.f32.mrb[0].mxu0
  %v752 = vadd.f32 0.0, %v751
  %v753 = vpop.f32.mrb[0].mxu0
  %754 = vmatprep.mubr.bf16.mxu0 0
  %755 = vmatmul.mubr.bf16.gmra.mrb[0].mxu0 %v322
  %v756 = vpop.f32.mrb[0].mxu0
  %v757 = vadd.f32 0.0, %v756
  %v758 = vpop.f32.mrb[0].mxu0
  %v759 = vpop.f32.mrb[0].mxu0
  %v760 = vadd.f32 0.0, %v759
  %v761 = vpop.f32.mrb[0].mxu0
  %762 = vmatprep.mubr.bf16.mxu0 0
  %763 = vmatmul.mubr.bf16.gmra.mrb[0].mxu0 %v323
  %v764 = vpop.f32.mrb[0].mxu0
  %v765 = vadd.f32 0.0, %v764
  %v766 = vpop.f32.mrb[0].mxu0
  %v767 = vpop.f32.mrb[0].mxu0
  %v768 = vadd.f32 0.0, %v767
  %v769 = vpop.f32.mrb[0].mxu0
  %770 = vdwg.mxu0
  %s771 = scalar_lea.vmem %s4, 32
  %v772 = vld [vmem:[%s771] sm:$0xff]
  %v773 = vld [vmem:[%s771 + $0x8] sm:$0xff]
  %v774 = vld [vmem:[%s771 + $0x10] sm:$0xff]
  %v775 = vld [vmem:[%s771 + $0x18] sm:$0xff]
  %s776 = scalar_lea.vmem %s5, 1
  %v777 = vld [vmem:[%s776] sm:$0x1]
  %v779 = vlaneseq
  %v780 = vshrl.u32 %v779, 7
  %v781 = vsub.s32 0, %v780
  %v782 = vrot.slane %v777, %v781
  %v785 = vsel %vm440, %v709, 0
  %v788 = vsel %vm440, %v712, 0
  %v791 = vsel %vm440, %v717, 0
  %v794 = vsel %vm440, %v720, 0
  %v797 = vsel %vm440, %v725, 0
  %v800 = vsel %vm440, %v728, 0
  %v803 = vsel %vm440, %v733, 0
  %v806 = vsel %vm440, %v736, 0
  %v809 = vsel %vm440, %v741, 0
  %v812 = vsel %vm440, %v744, 0
  %v815 = vsel %vm440, %v749, 0
  %v818 = vsel %vm440, %v752, 0
  %v821 = vsel %vm440, %v757, 0
  %v824 = vsel %vm440, %v760, 0
  %v827 = vsel %vm440, %v765, 0
  %v830 = vsel %vm440, %v768, 0
  %832 = vmatprep.subr.mxu0 0.0
  %833 = vmatpush1.msra.mxu0 %v772
  %834 = vmatprep.subr.mxu0 0.0
  %835 = vmatpush1.msra.mxu0 %v773
  %836 = vmatprep.subr.mxu0 0.0
  %837 = vmatpush1.msra.mxu0 %v774
  %838 = vmatprep.subr.mxu0 0.0
  %839 = vmatpush1.msra.mxu0 %v775
  %840 = vmatprep.subr.mxu0 0.0
  %841 = vmatpush1.msra.mxu0 0.0
  %842 = vmatprep.subr.mxu0 0.0
  %843 = vmatpush1.msra.mxu0 0.0
  %844 = vmatprep.subr.mxu0 0.0
  %845 = vmatpush1.msra.mxu0 0.0
  %846 = vmatprep.subr.mxu0 0.0
  %847 = vmatpush1.msra.mxu0 0.0
  %848 = vmatprep.subr.mxu0 0.0
  %849 = vmatpush1.msra.mxu0 0.0
  %850 = vmatprep.subr.mxu0 0.0
  %851 = vmatpush1.msra.mxu0 0.0
  %852 = vmatprep.subr.mxu0 0.0
  %853 = vmatpush1.msra.mxu0 0.0
  %854 = vmatprep.subr.mxu0 0.0
  %855 = vmatpush1.msra.mxu0 0.0
  %856 = vmatprep.subr.mxu0 0.0
  %857 = vmatpush1.msra.mxu0 0.0
  %858 = vmatprep.subr.mxu0 0.0
  %859 = vmatpush1.msra.mxu0 0.0
  %860 = vmatprep.subr.mxu0 0.0
  %861 = vmatpush1.msra.mxu0 0.0
  %862 = vmatprep.subr.mxu0 0.0
  %863 = vmatpush1.msra.mxu0 0.0
  %864 = vmatprep.subr.mxu0 0.0
  %865 = vmatpush1.msra.mxu0 0.0
  %866 = vmatprep.subr.mxu0 0.0
  %867 = vmatpush1.msra.mxu0 0.0
  %868 = vmatprep.subr.mxu0 0.0
  %869 = vmatpush1.msra.mxu0 0.0
  %870 = vmatprep.subr.mxu0 0.0
  %871 = vmatpush1.msra.mxu0 0.0
  %872 = vmatprep.subr.mxu0 0.0
  %873 = vmatpush1.msra.mxu0 0.0
  %874 = vmatprep.subr.mxu0 0.0
  %875 = vmatpush1.msra.mxu0 0.0
  %876 = vmatprep.subr.mxu0 0.0
  %877 = vmatpush1.msra.mxu0 0.0
  %878 = vmatprep.subr.mxu0 0.0
  %879 = vmatpush1.msra.mxu0 0.0
  %880 = vmatprep.subr.mxu0 0.0
  %881 = vmatpush1.msra.mxu0 0.0
  %882 = vmatprep.subr.mxu0 0.0
  %883 = vmatpush1.msra.mxu0 0.0
  %884 = vmatprep.subr.mxu0 0.0
  %885 = vmatpush1.msra.mxu0 0.0
  %886 = vmatprep.subr.mxu0 0.0
  %887 = vmatpush1.msra.mxu0 0.0
  %888 = vmatprep.subr.mxu0 0.0
  %889 = vmatpush1.msra.mxu0 0.0
  %890 = vmatprep.subr.mxu0 0.0
  %891 = vmatpush1.msra.mxu0 0.0
  %892 = vmatprep.subr.mxu0 0.0
  %893 = vmatpush1.msra.mxu0 0.0
  %894 = vmatprep.subr.mxu0 0.0
  %895 = vmatpush1.msra.mxu0 0.0
  %896 = vmatprep.mubr.f32.mxu0 0.0
  %897 = vmatmul.mubr.f32.gmra.mrb[0].mxu0 %v785
  %v898 = vpop.f32.mrb[0].mxu0
  %v899 = vadd.f32 %v782, %v898
  %v900 = vpop.f32.mrb[0].mxu0
  %901 = vmatprep.mubr.f32.mxu0 0.0
  %902 = vmatmul.mubr.f32.gmra.mrb[0].mxu0 %v788
  %v903 = vpop.f32.mrb[0].mxu0
  %v904 = vadd.f32 %v782, %v903
  %v905 = vpop.f32.mrb[0].mxu0
  %906 = vmatprep.mubr.f32.mxu0 0.0
  %907 = vmatmul.mubr.f32.gmra.mrb[0].mxu0 %v791
  %v908 = vpop.f32.mrb[0].mxu0
  %v909 = vadd.f32 %v782, %v908
  %v910 = vpop.f32.mrb[0].mxu0
  %911 = vmatprep.mubr.f32.mxu0 0.0
  %912 = vmatmul.mubr.f32.gmra.mrb[0].mxu0 %v794
  %v913 = vpop.f32.mrb[0].mxu0
  %v914 = vadd.f32 %v782, %v913
  %v915 = vpop.f32.mrb[0].mxu0
  %916 = vmatprep.mubr.f32.mxu0 0.0
  %917 = vmatmul.mubr.f32.gmra.mrb[0].mxu0 %v797
  %v918 = vpop.f32.mrb[0].mxu0
  %v919 = vadd.f32 %v782, %v918
  %v920 = vpop.f32.mrb[0].mxu0
  %921 = vmatprep.mubr.f32.mxu0 0.0
  %922 = vmatmul.mubr.f32.gmra.mrb[0].mxu0 %v800
  %v923 = vpop.f32.mrb[0].mxu0
  %v924 = vadd.f32 %v782, %v923
  %v925 = vpop.f32.mrb[0].mxu0
  %926 = vmatprep.mubr.f32.mxu0 0.0
  %927 = vmatmul.mubr.f32.gmra.mrb[0].mxu0 %v803
  %v928 = vpop.f32.mrb[0].mxu0
  %v929 = vadd.f32 %v782, %v928
  %v930 = vpop.f32.mrb[0].mxu0
  %931 = vmatprep.mubr.f32.mxu0 0.0
  %932 = vmatmul.mubr.f32.gmra.mrb[0].mxu0 %v806
  %v933 = vpop.f32.mrb[0].mxu0
  %v934 = vadd.f32 %v782, %v933
  %v935 = vpop.f32.mrb[0].mxu0
  %936 = vmatprep.mubr.f32.mxu0 0.0
  %937 = vmatmul.mubr.f32.gmra.mrb[0].mxu0 %v809
  %v938 = vpop.f32.mrb[0].mxu0
  %v939 = vadd.f32 %v782, %v938
  %v940 = vpop.f32.mrb[0].mxu0
  %941 = vmatprep.mubr.f32.mxu0 0.0
  %942 = vmatmul.mubr.f32.gmra.mrb[0].mxu0 %v812
  %v943 = vpop.f32.mrb[0].mxu0
  %v944 = vadd.f32 %v782, %v943
  %v945 = vpop.f32.mrb[0].mxu0
  %946 = vmatprep.mubr.f32.mxu0 0.0
  %947 = vmatmul.mubr.f32.gmra.mrb[0].mxu0 %v815
  %v948 = vpop.f32.mrb[0].mxu0
  %v949 = vadd.f32 %v782, %v948
  %v950 = vpop.f32.mrb[0].mxu0
  %951 = vmatprep.mubr.f32.mxu0 0.0
  %952 = vmatmul.mubr.f32.gmra.mrb[0].mxu0 %v818
  %v953 = vpop.f32.mrb[0].mxu0
  %v954 = vadd.f32 %v782, %v953
  %v955 = vpop.f32.mrb[0].mxu0
  %956 = vmatprep.mubr.f32.mxu0 0.0
  %957 = vmatmul.mubr.f32.gmra.mrb[0].mxu0 %v821
  %v958 = vpop.f32.mrb[0].mxu0
  %v959 = vadd.f32 %v782, %v958
  %v960 = vpop.f32.mrb[0].mxu0
  %961 = vmatprep.mubr.f32.mxu0 0.0
  %962 = vmatmul.mubr.f32.gmra.mrb[0].mxu0 %v824
  %v963 = vpop.f32.mrb[0].mxu0
  %v964 = vadd.f32 %v782, %v963
  %v965 = vpop.f32.mrb[0].mxu0
  %966 = vmatprep.mubr.f32.mxu0 0.0
  %967 = vmatmul.mubr.f32.gmra.mrb[0].mxu0 %v827
  %v968 = vpop.f32.mrb[0].mxu0
  %v969 = vadd.f32 %v782, %v968
  %v970 = vpop.f32.mrb[0].mxu0
  %971 = vmatprep.mubr.f32.mxu0 0.0
  %972 = vmatmul.mubr.f32.gmra.mrb[0].mxu0 %v830
  %v973 = vpop.f32.mrb[0].mxu0
  %v974 = vadd.f32 %v782, %v973
  %v975 = vpop.f32.mrb[0].mxu0
  %976 = vdwg.mxu0
  %v977 = vmax.f32 %v899, 0.0
  %v978 = vmax.f32 %v904, 0.0
  %v979 = vmax.f32 %v909, 0.0
  %v980 = vmax.f32 %v914, 0.0
  %v981 = vmax.f32 %v919, 0.0
  %v982 = vmax.f32 %v924, 0.0
  %v983 = vmax.f32 %v929, 0.0
  %v984 = vmax.f32 %v934, 0.0
  %v985 = vmax.f32 %v939, 0.0
  %v986 = vmax.f32 %v944, 0.0
  %v987 = vmax.f32 %v949, 0.0
  %v988 = vmax.f32 %v954, 0.0
  %v989 = vmax.f32 %v959, 0.0
  %v990 = vmax.f32 %v964, 0.0
  %v991 = vmax.f32 %v969, 0.0
  %v992 = vmax.f32 %v974, 0.0
  %v993 = vadd.f32 %v650, %v977
  %v994 = vadd.f32 %v651, %v978
  %v995 = vadd.f32 %v652, %v979
  %v996 = vadd.f32 %v653, %v980
  %v997 = vadd.f32 %v654, %v981
  %v998 = vadd.f32 %v655, %v982
  %v999 = vadd.f32 %v656, %v983
  %v1000 = vadd.f32 %v657, %v984
  %v1001 = vadd.f32 %v658, %v985
  %v1002 = vadd.f32 %v659, %v986
  %v1003 = vadd.f32 %v660, %v987
  %v1004 = vadd.f32 %v661, %v988
  %v1005 = vadd.f32 %v662, %v989
  %v1006 = vadd.f32 %v663, %v990
  %v1007 = vadd.f32 %v664, %v991
  %v1008 = vadd.f32 %v665, %v992
  %v1009 = vld [vmem:[%s6] sm:$0xff]
  %v1010 = vld [vmem:[%s6 + $0x8] sm:$0xff]
  %v1011 = vld [vmem:[%s6 + $0x10] sm:$0xff]
  %v1012 = vld [vmem:[%s6 + $0x18] sm:$0xff]
  %v1013 = vld [vmem:[%s7] sm:$0x1]
  %v1015 = vlaneseq
  %v1016 = vshrl.u32 %v1015, 7
  %v1017 = vsub.s32 0, %v1016
  %v1018 = vrot.slane %v1013, %v1017
  %v1021 = vsel %vm440, %v993, 0
  %v1024 = vsel %vm440, %v994, 0
  %v1027 = vsel %vm440, %v995, 0
  %v1030 = vsel %vm440, %v996, 0
  %v1033 = vsel %vm440, %v997, 0
  %v1036 = vsel %vm440, %v998, 0
  %v1039 = vsel %vm440, %v999, 0
  %v1042 = vsel %vm440, %v1000, 0
  %v1045 = vsel %vm440, %v1001, 0
  %v1048 = vsel %vm440, %v1002, 0
  %v1051 = vsel %vm440, %v1003, 0
  %v1054 = vsel %vm440, %v1004, 0
  %v1057 = vsel %vm440, %v1005, 0
  %v1060 = vsel %vm440, %v1006, 0
  %v1063 = vsel %vm440, %v1007, 0
  %v1066 = vsel %vm440, %v1008, 0
  %1068 = vmatprep.subr.mxu0 0.0
  %1069 = vmatpush1.msra.mxu0 %v1009
  %1070 = vmatprep.subr.mxu0 0.0
  %1071 = vmatpush1.msra.mxu0 %v1010
  %1072 = vmatprep.subr.mxu0 0.0
  %1073 = vmatpush1.msra.mxu0 %v1011
  %1074 = vmatprep.subr.mxu0 0.0
  %1075 = vmatpush1.msra.mxu0 %v1012
  %1076 = vmatprep.subr.mxu0 0.0
  %1077 = vmatpush1.msra.mxu0 0.0
  %1078 = vmatprep.subr.mxu0 0.0
  %1079 = vmatpush1.msra.mxu0 0.0
  %1080 = vmatprep.subr.mxu0 0.0
  %1081 = vmatpush1.msra.mxu0 0.0
  %1082 = vmatprep.subr.mxu0 0.0
  %1083 = vmatpush1.msra.mxu0 0.0
  %1084 = vmatprep.subr.mxu0 0.0
  %1085 = vmatpush1.msra.mxu0 0.0
  %1086 = vmatprep.subr.mxu0 0.0
  %1087 = vmatpush1.msra.mxu0 0.0
  %1088 = vmatprep.subr.mxu0 0.0
  %1089 = vmatpush1.msra.mxu0 0.0
  %1090 = vmatprep.subr.mxu0 0.0
  %1091 = vmatpush1.msra.mxu0 0.0
  %1092 = vmatprep.subr.mxu0 0.0
  %1093 = vmatpush1.msra.mxu0 0.0
  %1094 = vmatprep.subr.mxu0 0.0
  %1095 = vmatpush1.msra.mxu0 0.0
  %1096 = vmatprep.subr.mxu0 0.0
  %1097 = vmatpush1.msra.mxu0 0.0
  %1098 = vmatprep.subr.mxu0 0.0
  %1099 = vmatpush1.msra.mxu0 0.0
  %1100 = vmatprep.subr.mxu0 0.0
  %1101 = vmatpush1.msra.mxu0 0.0
  %1102 = vmatprep.subr.mxu0 0.0
  %1103 = vmatpush1.msra.mxu0 0.0
  %1104 = vmatprep.subr.mxu0 0.0
  %1105 = vmatpush1.msra.mxu0 0.0
  %1106 = vmatprep.subr.mxu0 0.0
  %1107 = vmatpush1.msra.mxu0 0.0
  %1108 = vmatprep.subr.mxu0 0.0
  %1109 = vmatpush1.msra.mxu0 0.0
  %1110 = vmatprep.subr.mxu0 0.0
  %1111 = vmatpush1.msra.mxu0 0.0
  %1112 = vmatprep.subr.mxu0 0.0
  %1113 = vmatpush1.msra.mxu0 0.0
  %1114 = vmatprep.subr.mxu0 0.0
  %1115 = vmatpush1.msra.mxu0 0.0
  %1116 = vmatprep.subr.mxu0 0.0
  %1117 = vmatpush1.msra.mxu0 0.0
  %1118 = vmatprep.subr.mxu0 0.0
  %1119 = vmatpush1.msra.mxu0 0.0
  %1120 = vmatprep.subr.mxu0 0.0
  %1121 = vmatpush1.msra.mxu0 0.0
  %1122 = vmatprep.subr.mxu0 0.0
  %1123 = vmatpush1.msra.mxu0 0.0
  %1124 = vmatprep.subr.mxu0 0.0
  %1125 = vmatpush1.msra.mxu0 0.0
  %1126 = vmatprep.subr.mxu0 0.0
  %1127 = vmatpush1.msra.mxu0 0.0
  %1128 = vmatprep.subr.mxu0 0.0
  %1129 = vmatpush1.msra.mxu0 0.0
  %1130 = vmatprep.subr.mxu0 0.0
  %1131 = vmatpush1.msra.mxu0 0.0
  %1132 = vmatprep.mubr.f32.mxu0 0.0
  %1133 = vmatmul.mubr.f32.gmra.mrb[0].mxu0 %v1021
  %v1134 = vpop.f32.mrb[0].mxu0
  %v1135 = vadd.f32 %v1018, %v1134
  %v1136 = vpop.f32.mrb[0].mxu0
  %1137 = vmatprep.mubr.f32.mxu0 0.0
  %1138 = vmatmul.mubr.f32.gmra.mrb[0].mxu0 %v1024
  %v1139 = vpop.f32.mrb[0].mxu0
  %v1140 = vadd.f32 %v1018, %v1139
  %v1141 = vpop.f32.mrb[0].mxu0
  %1142 = vmatprep.mubr.f32.mxu0 0.0
  %1143 = vmatmul.mubr.f32.gmra.mrb[0].mxu0 %v1027
  %v1144 = vpop.f32.mrb[0].mxu0
  %v1145 = vadd.f32 %v1018, %v1144
  %v1146 = vpop.f32.mrb[0].mxu0
  %1147 = vmatprep.mubr.f32.mxu0 0.0
  %1148 = vmatmul.mubr.f32.gmra.mrb[0].mxu0 %v1030
  %v1149 = vpop.f32.mrb[0].mxu0
  %v1150 = vadd.f32 %v1018, %v1149
  %v1151 = vpop.f32.mrb[0].mxu0
  %1152 = vmatprep.mubr.f32.mxu0 0.0
  %1153 = vmatmul.mubr.f32.gmra.mrb[0].mxu0 %v1033
  %v1154 = vpop.f32.mrb[0].mxu0
  %v1155 = vadd.f32 %v1018, %v1154
  %v1156 = vpop.f32.mrb[0].mxu0
  %1157 = vmatprep.mubr.f32.mxu0 0.0
  %1158 = vmatmul.mubr.f32.gmra.mrb[0].mxu0 %v1036
  %v1159 = vpop.f32.mrb[0].mxu0
  %v1160 = vadd.f32 %v1018, %v1159
  %v1161 = vpop.f32.mrb[0].mxu0
  %1162 = vmatprep.mubr.f32.mxu0 0.0
  %1163 = vmatmul.mubr.f32.gmra.mrb[0].mxu0 %v1039
  %v1164 = vpop.f32.mrb[0].mxu0
  %v1165 = vadd.f32 %v1018, %v1164
  %v1166 = vpop.f32.mrb[0].mxu0
  %1167 = vmatprep.mubr.f32.mxu0 0.0
  %1168 = vmatmul.mubr.f32.gmra.mrb[0].mxu0 %v1042
  %v1169 = vpop.f32.mrb[0].mxu0
  %v1170 = vadd.f32 %v1018, %v1169
  %v1171 = vpop.f32.mrb[0].mxu0
  %1172 = vmatprep.mubr.f32.mxu0 0.0
  %1173 = vmatmul.mubr.f32.gmra.mrb[0].mxu0 %v1045
  %v1174 = vpop.f32.mrb[0].mxu0
  %v1175 = vadd.f32 %v1018, %v1174
  %v1176 = vpop.f32.mrb[0].mxu0
  %1177 = vmatprep.mubr.f32.mxu0 0.0
  %1178 = vmatmul.mubr.f32.gmra.mrb[0].mxu0 %v1048
  %v1179 = vpop.f32.mrb[0].mxu0
  %v1180 = vadd.f32 %v1018, %v1179
  %v1181 = vpop.f32.mrb[0].mxu0
  %1182 = vmatprep.mubr.f32.mxu0 0.0
  %1183 = vmatmul.mubr.f32.gmra.mrb[0].mxu0 %v1051
  %v1184 = vpop.f32.mrb[0].mxu0
  %v1185 = vadd.f32 %v1018, %v1184
  %v1186 = vpop.f32.mrb[0].mxu0
  %1187 = vmatprep.mubr.f32.mxu0 0.0
  %1188 = vmatmul.mubr.f32.gmra.mrb[0].mxu0 %v1054
  %v1189 = vpop.f32.mrb[0].mxu0
  %v1190 = vadd.f32 %v1018, %v1189
  %v1191 = vpop.f32.mrb[0].mxu0
  %1192 = vmatprep.mubr.f32.mxu0 0.0
  %1193 = vmatmul.mubr.f32.gmra.mrb[0].mxu0 %v1057
  %v1194 = vpop.f32.mrb[0].mxu0
  %v1195 = vadd.f32 %v1018, %v1194
  %v1196 = vpop.f32.mrb[0].mxu0
  %1197 = vmatprep.mubr.f32.mxu0 0.0
  %1198 = vmatmul.mubr.f32.gmra.mrb[0].mxu0 %v1060
  %v1199 = vpop.f32.mrb[0].mxu0
  %v1200 = vadd.f32 %v1018, %v1199
  %v1201 = vpop.f32.mrb[0].mxu0
  %1202 = vmatprep.mubr.f32.mxu0 0.0
  %1203 = vmatmul.mubr.f32.gmra.mrb[0].mxu0 %v1063
  %v1204 = vpop.f32.mrb[0].mxu0
  %v1205 = vadd.f32 %v1018, %v1204
  %v1206 = vpop.f32.mrb[0].mxu0
  %1207 = vmatprep.mubr.f32.mxu0 0.0
  %1208 = vmatmul.mubr.f32.gmra.mrb[0].mxu0 %v1066
  %v1209 = vpop.f32.mrb[0].mxu0
  %v1210 = vadd.f32 %v1018, %v1209
  %v1211 = vpop.f32.mrb[0].mxu0
  %1212 = vdwg.mxu0
  %v1213 = vmax.f32 %v1135, 0.0
  %v1214 = vmax.f32 %v1140, 0.0
  %v1215 = vmax.f32 %v1145, 0.0
  %v1216 = vmax.f32 %v1150, 0.0
  %v1217 = vmax.f32 %v1155, 0.0
  %v1218 = vmax.f32 %v1160, 0.0
  %v1219 = vmax.f32 %v1165, 0.0
  %v1220 = vmax.f32 %v1170, 0.0
  %v1221 = vmax.f32 %v1175, 0.0
  %v1222 = vmax.f32 %v1180, 0.0
  %v1223 = vmax.f32 %v1185, 0.0
  %v1224 = vmax.f32 %v1190, 0.0
  %v1225 = vmax.f32 %v1195, 0.0
  %v1226 = vmax.f32 %v1200, 0.0
  %v1227 = vmax.f32 %v1205, 0.0
  %v1228 = vmax.f32 %v1210, 0.0
  %v1229 = vld [vmem:[%s8] sm:$0xff]
  %v1230 = vld [vmem:[%s8 + $0x8] sm:$0xff]
  %v1231 = vld [vmem:[%s9] sm:$0x1]
  %v1233 = vlaneseq
  %v1234 = vshrl.u32 %v1233, 7
  %v1235 = vsub.s32 0, %v1234
  %v1236 = vrot.slane %v1231, %v1235
  %vm1238 = vcmask 130048
  %v1240 = vsel %vm1238, %v1213, 0
  %v1243 = vsel %vm1238, %v1214, 0
  %v1246 = vsel %vm1238, %v1215, 0
  %v1249 = vsel %vm1238, %v1216, 0
  %v1252 = vsel %vm1238, %v1217, 0
  %v1255 = vsel %vm1238, %v1218, 0
  %v1258 = vsel %vm1238, %v1219, 0
  %v1261 = vsel %vm1238, %v1220, 0
  %v1264 = vsel %vm1238, %v1221, 0
  %v1267 = vsel %vm1238, %v1222, 0
  %v1270 = vsel %vm1238, %v1223, 0
  %v1273 = vsel %vm1238, %v1224, 0
  %v1276 = vsel %vm1238, %v1225, 0
  %v1279 = vsel %vm1238, %v1226, 0
  %v1282 = vsel %vm1238, %v1227, 0
  %v1285 = vsel %vm1238, %v1228, 0
  %1287 = vmatprep.subr.mxu0 0.0
  %1288 = vmatpush1.msra.mxu0 %v1229
  %1289 = vmatprep.subr.mxu0 0.0
  %1290 = vmatpush1.msra.mxu0 %v1230
  %1291 = vmatprep.subr.mxu0 0.0
  %1292 = vmatpush1.msra.mxu0 0.0
  %1293 = vmatprep.subr.mxu0 0.0
  %1294 = vmatpush1.msra.mxu0 0.0
  %1295 = vmatprep.subr.mxu0 0.0
  %1296 = vmatpush1.msra.mxu0 0.0
  %1297 = vmatprep.subr.mxu0 0.0
  %1298 = vmatpush1.msra.mxu0 0.0
  %1299 = vmatprep.subr.mxu0 0.0
  %1300 = vmatpush1.msra.mxu0 0.0
  %1301 = vmatprep.subr.mxu0 0.0
  %1302 = vmatpush1.msra.mxu0 0.0
  %1303 = vmatprep.subr.mxu0 0.0
  %1304 = vmatpush1.msra.mxu0 0.0
  %1305 = vmatprep.subr.mxu0 0.0
  %1306 = vmatpush1.msra.mxu0 0.0
  %1307 = vmatprep.subr.mxu0 0.0
  %1308 = vmatpush1.msra.mxu0 0.0
  %1309 = vmatprep.subr.mxu0 0.0
  %1310 = vmatpush1.msra.mxu0 0.0
  %1311 = vmatprep.subr.mxu0 0.0
  %1312 = vmatpush1.msra.mxu0 0.0
  %1313 = vmatprep.subr.mxu0 0.0
  %1314 = vmatpush1.msra.mxu0 0.0
  %1315 = vmatprep.subr.mxu0 0.0
  %1316 = vmatpush1.msra.mxu0 0.0
  %1317 = vmatprep.subr.mxu0 0.0
  %1318 = vmatpush1.msra.mxu0 0.0
  %1319 = vmatprep.subr.mxu0 0.0
  %1320 = vmatpush1.msra.mxu0 0.0
  %1321 = vmatprep.subr.mxu0 0.0
  %1322 = vmatpush1.msra.mxu0 0.0
  %1323 = vmatprep.subr.mxu0 0.0
  %1324 = vmatpush1.msra.mxu0 0.0
  %1325 = vmatprep.subr.mxu0 0.0
  %1326 = vmatpush1.msra.mxu0 0.0
  %1327 = vmatprep.subr.mxu0 0.0
  %1328 = vmatpush1.msra.mxu0 0.0
  %1329 = vmatprep.subr.mxu0 0.0
  %1330 = vmatpush1.msra.mxu0 0.0
  %1331 = vmatprep.subr.mxu0 0.0
  %1332 = vmatpush1.msra.mxu0 0.0
  %1333 = vmatprep.subr.mxu0 0.0
  %1334 = vmatpush1.msra.mxu0 0.0
  %1335 = vmatprep.subr.mxu0 0.0
  %1336 = vmatpush1.msra.mxu0 0.0
  %1337 = vmatprep.subr.mxu0 0.0
  %1338 = vmatpush1.msra.mxu0 0.0
  %1339 = vmatprep.subr.mxu0 0.0
  %1340 = vmatpush1.msra.mxu0 0.0
  %1341 = vmatprep.subr.mxu0 0.0
  %1342 = vmatpush1.msra.mxu0 0.0
  %1343 = vmatprep.subr.mxu0 0.0
  %1344 = vmatpush1.msra.mxu0 0.0
  %1345 = vmatprep.subr.mxu0 0.0
  %1346 = vmatpush1.msra.mxu0 0.0
  %1347 = vmatprep.subr.mxu0 0.0
  %1348 = vmatpush1.msra.mxu0 0.0
  %1349 = vmatprep.subr.mxu0 0.0
  %1350 = vmatpush1.msra.mxu0 0.0
  %1351 = vmatprep.mubr.f32.mxu0 0.0
  %1352 = vmatmul.mubr.f32.gmra.mrb[0].mxu0 %v1240
  %v1353 = vpop.f32.mrb[0].mxu0
  %v1354 = vadd.f32 %v1236, %v1353
  %v1355 = vpop.f32.mrb[0].mxu0
  %1356 = vmatprep.mubr.f32.mxu0 0.0
  %1357 = vmatmul.mubr.f32.gmra.mrb[0].mxu0 %v1243
  %v1358 = vpop.f32.mrb[0].mxu0
  %v1359 = vadd.f32 %v1236, %v1358
  %v1360 = vpop.f32.mrb[0].mxu0
  %1361 = vmatprep.mubr.f32.mxu0 0.0
  %1362 = vmatmul.mubr.f32.gmra.mrb[0].mxu0 %v1246
  %v1363 = vpop.f32.mrb[0].mxu0
  %v1364 = vadd.f32 %v1236, %v1363
  %v1365 = vpop.f32.mrb[0].mxu0
  %1366 = vmatprep.mubr.f32.mxu0 0.0
  %1367 = vmatmul.mubr.f32.gmra.mrb[0].mxu0 %v1249
  %v1368 = vpop.f32.mrb[0].mxu0
  %v1369 = vadd.f32 %v1236, %v1368
  %v1370 = vpop.f32.mrb[0].mxu0
  %1371 = vmatprep.mubr.f32.mxu0 0.0
  %1372 = vmatmul.mubr.f32.gmra.mrb[0].mxu0 %v1252
  %v1373 = vpop.f32.mrb[0].mxu0
  %v1374 = vadd.f32 %v1236, %v1373
  %v1375 = vpop.f32.mrb[0].mxu0
  %1376 = vmatprep.mubr.f32.mxu0 0.0
  %1377 = vmatmul.mubr.f32.gmra.mrb[0].mxu0 %v1255
  %v1378 = vpop.f32.mrb[0].mxu0
  %v1379 = vadd.f32 %v1236, %v1378
  %v1380 = vpop.f32.mrb[0].mxu0
  %1381 = vmatprep.mubr.f32.mxu0 0.0
  %1382 = vmatmul.mubr.f32.gmra.mrb[0].mxu0 %v1258
  %v1383 = vpop.f32.mrb[0].mxu0
  %v1384 = vadd.f32 %v1236, %v1383
  %v1385 = vpop.f32.mrb[0].mxu0
  %1386 = vmatprep.mubr.f32.mxu0 0.0
  %1387 = vmatmul.mubr.f32.gmra.mrb[0].mxu0 %v1261
  %v1388 = vpop.f32.mrb[0].mxu0
  %v1389 = vadd.f32 %v1236, %v1388
  %v1390 = vpop.f32.mrb[0].mxu0
  %1391 = vmatprep.mubr.f32.mxu0 0.0
  %1392 = vmatmul.mubr.f32.gmra.mrb[0].mxu0 %v1264
  %v1393 = vpop.f32.mrb[0].mxu0
  %v1394 = vadd.f32 %v1236, %v1393
  %v1395 = vpop.f32.mrb[0].mxu0
  %1396 = vmatprep.mubr.f32.mxu0 0.0
  %1397 = vmatmul.mubr.f32.gmra.mrb[0].mxu0 %v1267
  %v1398 = vpop.f32.mrb[0].mxu0
  %v1399 = vadd.f32 %v1236, %v1398
  %v1400 = vpop.f32.mrb[0].mxu0
  %1401 = vmatprep.mubr.f32.mxu0 0.0
  %1402 = vmatmul.mubr.f32.gmra.mrb[0].mxu0 %v1270
  %v1403 = vpop.f32.mrb[0].mxu0
  %v1404 = vadd.f32 %v1236, %v1403
  %v1405 = vpop.f32.mrb[0].mxu0
  %1406 = vmatprep.mubr.f32.mxu0 0.0
  %1407 = vmatmul.mubr.f32.gmra.mrb[0].mxu0 %v1273
  %v1408 = vpop.f32.mrb[0].mxu0
  %v1409 = vadd.f32 %v1236, %v1408
  %v1410 = vpop.f32.mrb[0].mxu0
  %1411 = vmatprep.mubr.f32.mxu0 0.0
  %1412 = vmatmul.mubr.f32.gmra.mrb[0].mxu0 %v1276
  %v1413 = vpop.f32.mrb[0].mxu0
  %v1414 = vadd.f32 %v1236, %v1413
  %v1415 = vpop.f32.mrb[0].mxu0
  %1416 = vmatprep.mubr.f32.mxu0 0.0
  %1417 = vmatmul.mubr.f32.gmra.mrb[0].mxu0 %v1279
  %v1418 = vpop.f32.mrb[0].mxu0
  %v1419 = vadd.f32 %v1236, %v1418
  %v1420 = vpop.f32.mrb[0].mxu0
  %1421 = vmatprep.mubr.f32.mxu0 0.0
  %1422 = vmatmul.mubr.f32.gmra.mrb[0].mxu0 %v1282
  %v1423 = vpop.f32.mrb[0].mxu0
  %v1424 = vadd.f32 %v1236, %v1423
  %v1425 = vpop.f32.mrb[0].mxu0
  %1426 = vmatprep.mubr.f32.mxu0 0.0
  %1427 = vmatmul.mubr.f32.gmra.mrb[0].mxu0 %v1285
  %v1428 = vpop.f32.mrb[0].mxu0
  %v1429 = vadd.f32 %v1236, %v1428
  %v1430 = vpop.f32.mrb[0].mxu0
  %1431 = vdwg.mxu0
  %v1432 = vmax.f32 %v1354, 0.0
  %v1433 = vmax.f32 %v1359, 0.0
  %v1434 = vmax.f32 %v1364, 0.0
  %v1435 = vmax.f32 %v1369, 0.0
  %v1436 = vmax.f32 %v1374, 0.0
  %v1437 = vmax.f32 %v1379, 0.0
  %v1438 = vmax.f32 %v1384, 0.0
  %v1439 = vmax.f32 %v1389, 0.0
  %v1440 = vmax.f32 %v1394, 0.0
  %v1441 = vmax.f32 %v1399, 0.0
  %v1442 = vmax.f32 %v1404, 0.0
  %v1443 = vmax.f32 %v1409, 0.0
  %v1444 = vmax.f32 %v1414, 0.0
  %v1445 = vmax.f32 %v1419, 0.0
  %v1446 = vmax.f32 %v1424, 0.0
  %v1447 = vmax.f32 %v1429, 0.0
  %v1448 = vld [vmem:[%s10] sm:$0xff]
  %v1449 = vld [vmem:[%s11] sm:$0x1]
  %v1451 = vlaneseq
  %v1452 = vshrl.u32 %v1451, 7
  %v1453 = vsub.s32 0, %v1452
  %v1454 = vrot.slane %v1449, %v1453
  %v1457 = vsel %vm66, %v1432, 0
  %v1460 = vsel %vm66, %v1433, 0
  %v1463 = vsel %vm66, %v1434, 0
  %v1466 = vsel %vm66, %v1435, 0
  %v1469 = vsel %vm66, %v1436, 0
  %v1472 = vsel %vm66, %v1437, 0
  %v1475 = vsel %vm66, %v1438, 0
  %v1478 = vsel %vm66, %v1439, 0
  %v1481 = vsel %vm66, %v1440, 0
  %v1484 = vsel %vm66, %v1441, 0
  %v1487 = vsel %vm66, %v1442, 0
  %v1490 = vsel %vm66, %v1443, 0
  %v1493 = vsel %vm66, %v1444, 0
  %v1496 = vsel %vm66, %v1445, 0
  %v1499 = vsel %vm66, %v1446, 0
  %v1502 = vsel %vm66, %v1447, 0
  %1504 = vmatprep.subr.mxu0 0.0
  %1505 = vmatpush1.msra.mxu0 %v1448
  %1506 = vmatprep.subr.mxu0 0.0
  %1507 = vmatpush1.msra.mxu0 0.0
  %1508 = vmatprep.subr.mxu0 0.0
  %1509 = vmatpush1.msra.mxu0 0.0
  %1510 = vmatprep.subr.mxu0 0.0
  %1511 = vmatpush1.msra.mxu0 0.0
  %1512 = vmatprep.subr.mxu0 0.0
  %1513 = vmatpush1.msra.mxu0 0.0
  %1514 = vmatprep.subr.mxu0 0.0
  %1515 = vmatpush1.msra.mxu0 0.0
  %1516 = vmatprep.subr.mxu0 0.0
  %1517 = vmatpush1.msra.mxu0 0.0
  %1518 = vmatprep.subr.mxu0 0.0
  %1519 = vmatpush1.msra.mxu0 0.0
  %1520 = vmatprep.subr.mxu0 0.0
  %1521 = vmatpush1.msra.mxu0 0.0
  %1522 = vmatprep.subr.mxu0 0.0
  %1523 = vmatpush1.msra.mxu0 0.0
  %1524 = vmatprep.subr.mxu0 0.0
  %1525 = vmatpush1.msra.mxu0 0.0
  %1526 = vmatprep.subr.mxu0 0.0
  %1527 = vmatpush1.msra.mxu0 0.0
  %1528 = vmatprep.subr.mxu0 0.0
  %1529 = vmatpush1.msra.mxu0 0.0
  %1530 = vmatprep.subr.mxu0 0.0
  %1531 = vmatpush1.msra.mxu0 0.0
  %1532 = vmatprep.subr.mxu0 0.0
  %1533 = vmatpush1.msra.mxu0 0.0
  %1534 = vmatprep.subr.mxu0 0.0
  %1535 = vmatpush1.msra.mxu0 0.0
  %1536 = vmatprep.subr.mxu0 0.0
  %1537 = vmatpush1.msra.mxu0 0.0
  %1538 = vmatprep.subr.mxu0 0.0
  %1539 = vmatpush1.msra.mxu0 0.0
  %1540 = vmatprep.subr.mxu0 0.0
  %1541 = vmatpush1.msra.mxu0 0.0
  %1542 = vmatprep.subr.mxu0 0.0
  %1543 = vmatpush1.msra.mxu0 0.0
  %1544 = vmatprep.subr.mxu0 0.0
  %1545 = vmatpush1.msra.mxu0 0.0
  %1546 = vmatprep.subr.mxu0 0.0
  %1547 = vmatpush1.msra.mxu0 0.0
  %1548 = vmatprep.subr.mxu0 0.0
  %1549 = vmatpush1.msra.mxu0 0.0
  %1550 = vmatprep.subr.mxu0 0.0
  %1551 = vmatpush1.msra.mxu0 0.0
  %1552 = vmatprep.subr.mxu0 0.0
  %1553 = vmatpush1.msra.mxu0 0.0
  %1554 = vmatprep.subr.mxu0 0.0
  %1555 = vmatpush1.msra.mxu0 0.0
  %1556 = vmatprep.subr.mxu0 0.0
  %1557 = vmatpush1.msra.mxu0 0.0
  %1558 = vmatprep.subr.mxu0 0.0
  %1559 = vmatpush1.msra.mxu0 0.0
  %1560 = vmatprep.subr.mxu0 0.0
  %1561 = vmatpush1.msra.mxu0 0.0
  %1562 = vmatprep.subr.mxu0 0.0
  %1563 = vmatpush1.msra.mxu0 0.0
  %1564 = vmatprep.subr.mxu0 0.0
  %1565 = vmatpush1.msra.mxu0 0.0
  %1566 = vmatprep.subr.mxu0 0.0
  %1567 = vmatpush1.msra.mxu0 0.0
  %1568 = vmatprep.mubr.f32.mxu0 0.0
  %1569 = vmatmul.mubr.f32.gmra.mrb[0].mxu0 %v1457
  %v1570 = vpop.f32.mrb[0].mxu0
  %v1571 = vadd.f32 %v1454, %v1570
  %v1572 = vpop.f32.mrb[0].mxu0
  %1573 = vmatprep.mubr.f32.mxu0 0.0
  %1574 = vmatmul.mubr.f32.gmra.mrb[0].mxu0 %v1460
  %v1575 = vpop.f32.mrb[0].mxu0
  %v1576 = vadd.f32 %v1454, %v1575
  %v1577 = vpop.f32.mrb[0].mxu0
  %1578 = vmatprep.mubr.f32.mxu0 0.0
  %1579 = vmatmul.mubr.f32.gmra.mrb[0].mxu0 %v1463
  %v1580 = vpop.f32.mrb[0].mxu0
  %v1581 = vadd.f32 %v1454, %v1580
  %v1582 = vpop.f32.mrb[0].mxu0
  %1583 = vmatprep.mubr.f32.mxu0 0.0
  %1584 = vmatmul.mubr.f32.gmra.mrb[0].mxu0 %v1466
  %v1585 = vpop.f32.mrb[0].mxu0
  %v1586 = vadd.f32 %v1454, %v1585
  %v1587 = vpop.f32.mrb[0].mxu0
  %1588 = vmatprep.mubr.f32.mxu0 0.0
  %1589 = vmatmul.mubr.f32.gmra.mrb[0].mxu0 %v1469
  %v1590 = vpop.f32.mrb[0].mxu0
  %v1591 = vadd.f32 %v1454, %v1590
  %v1592 = vpop.f32.mrb[0].mxu0
  %1593 = vmatprep.mubr.f32.mxu0 0.0
  %1594 = vmatmul.mubr.f32.gmra.mrb[0].mxu0 %v1472
  %v1595 = vpop.f32.mrb[0].mxu0
  %v1596 = vadd.f32 %v1454, %v1595
  %v1597 = vpop.f32.mrb[0].mxu0
  %1598 = vmatprep.mubr.f32.mxu0 0.0
  %1599 = vmatmul.mubr.f32.gmra.mrb[0].mxu0 %v1475
  %v1600 = vpop.f32.mrb[0].mxu0
  %v1601 = vadd.f32 %v1454, %v1600
  %v1602 = vpop.f32.mrb[0].mxu0
  %1603 = vmatprep.mubr.f32.mxu0 0.0
  %1604 = vmatmul.mubr.f32.gmra.mrb[0].mxu0 %v1478
  %v1605 = vpop.f32.mrb[0].mxu0
  %v1606 = vadd.f32 %v1454, %v1605
  %v1607 = vpop.f32.mrb[0].mxu0
  %1608 = vmatprep.mubr.f32.mxu0 0.0
  %1609 = vmatmul.mubr.f32.gmra.mrb[0].mxu0 %v1481
  %v1610 = vpop.f32.mrb[0].mxu0
  %v1611 = vadd.f32 %v1454, %v1610
  %v1612 = vpop.f32.mrb[0].mxu0
  %1613 = vmatprep.mubr.f32.mxu0 0.0
  %1614 = vmatmul.mubr.f32.gmra.mrb[0].mxu0 %v1484
  %v1615 = vpop.f32.mrb[0].mxu0
  %v1616 = vadd.f32 %v1454, %v1615
  %v1617 = vpop.f32.mrb[0].mxu0
  %1618 = vmatprep.mubr.f32.mxu0 0.0
  %1619 = vmatmul.mubr.f32.gmra.mrb[0].mxu0 %v1487
  %v1620 = vpop.f32.mrb[0].mxu0
  %v1621 = vadd.f32 %v1454, %v1620
  %v1622 = vpop.f32.mrb[0].mxu0
  %1623 = vmatprep.mubr.f32.mxu0 0.0
  %1624 = vmatmul.mubr.f32.gmra.mrb[0].mxu0 %v1490
  %v1625 = vpop.f32.mrb[0].mxu0
  %v1626 = vadd.f32 %v1454, %v1625
  %v1627 = vpop.f32.mrb[0].mxu0
  %1628 = vmatprep.mubr.f32.mxu0 0.0
  %1629 = vmatmul.mubr.f32.gmra.mrb[0].mxu0 %v1493
  %v1630 = vpop.f32.mrb[0].mxu0
  %v1631 = vadd.f32 %v1454, %v1630
  %v1632 = vpop.f32.mrb[0].mxu0
  %1633 = vmatprep.mubr.f32.mxu0 0.0
  %1634 = vmatmul.mubr.f32.gmra.mrb[0].mxu0 %v1496
  %v1635 = vpop.f32.mrb[0].mxu0
  %v1636 = vadd.f32 %v1454, %v1635
  %v1637 = vpop.f32.mrb[0].mxu0
  %1638 = vmatprep.mubr.f32.mxu0 0.0
  %1639 = vmatmul.mubr.f32.gmra.mrb[0].mxu0 %v1499
  %v1640 = vpop.f32.mrb[0].mxu0
  %v1641 = vadd.f32 %v1454, %v1640
  %v1642 = vpop.f32.mrb[0].mxu0
  %1643 = vmatprep.mubr.f32.mxu0 0.0
  %1644 = vmatmul.mubr.f32.gmra.mrb[0].mxu0 %v1502
  %v1645 = vpop.f32.mrb[0].mxu0
  %v1646 = vadd.f32 %v1454, %v1645
  %v1647 = vpop.f32.mrb[0].mxu0
  %1648 = vdwg.mxu0
  %v1649 = vpack.c.bf16 %v994, %v993
  %v1650 = vpack.c.bf16 %v996, %v995
  %v1651 = vpack.c.bf16 %v998, %v997
  %v1652 = vpack.c.bf16 %v1000, %v999
  %v1653 = vpack.c.bf16 %v1002, %v1001
  %v1654 = vpack.c.bf16 %v1004, %v1003
  %v1655 = vpack.c.bf16 %v1006, %v1005
  %v1656 = vpack.c.bf16 %v1008, %v1007
  %v1665 = vunpack.c.l.b16 %v1649
  %v1666 = vunpack.c.h.b16 %v1649
  %v1667 = vunpack.c.l.b16 %v1650
  %v1668 = vunpack.c.h.b16 %v1650
  %v1669 = vunpack.c.l.b16 %v1651
  %v1670 = vunpack.c.h.b16 %v1651
  %v1671 = vunpack.c.l.b16 %v1652
  %v1672 = vunpack.c.h.b16 %v1652
  %v1673 = vunpack.c.l.b16 %v1653
  %v1674 = vunpack.c.h.b16 %v1653
  %v1675 = vunpack.c.l.b16 %v1654
  %v1676 = vunpack.c.h.b16 %v1654
  %v1677 = vunpack.c.l.b16 %v1655
  %v1678 = vunpack.c.h.b16 %v1655
  %v1679 = vunpack.c.l.b16 %v1656
  %v1680 = vunpack.c.h.b16 %v1656
  %v1681 = vpack.c.b16 %v1665, %v1665
  %v1682 = vpack.c.b16 %v1666, %v1666
  %v1683 = vpack.c.b16 %v1667, %v1667
  %v1684 = vpack.c.b16 %v1668, %v1668
  %v1685 = vpack.c.b16 %v1669, %v1669
  %v1686 = vpack.c.b16 %v1670, %v1670
  %v1687 = vpack.c.b16 %v1671, %v1671
  %v1688 = vpack.c.b16 %v1672, %v1672
  %v1689 = vpack.c.b16 %v1673, %v1673
  %v1690 = vpack.c.b16 %v1674, %v1674
  %v1691 = vpack.c.b16 %v1675, %v1675
  %v1692 = vpack.c.b16 %v1676, %v1676
  %v1693 = vpack.c.b16 %v1677, %v1677
  %v1694 = vpack.c.b16 %v1678, %v1678
  %v1695 = vpack.c.b16 %v1679, %v1679
  %v1696 = vpack.c.b16 %v1680, %v1680
  %vm1713 = vcmask 257024
  %1714 = vst.msk [vmem:[%s12] sm:$0xf] %vm1713, %v1681
  %1715 = vst.msk [vmem:[%s12 + $0x4] sm:$0xf] %vm1713, %v1682
  %1716 = vst.msk [vmem:[%s12 + $0x8] sm:$0xf] %vm1713, %v1683
  %1717 = vst.msk [vmem:[%s12 + $0xc] sm:$0xf] %vm1713, %v1684
  %1718 = vst.msk [vmem:[%s12 + $0x10] sm:$0xf] %vm1713, %v1685
  %1719 = vst.msk [vmem:[%s12 + $0x14] sm:$0xf] %vm1713, %v1686
  %1720 = vst.msk [vmem:[%s12 + $0x18] sm:$0xf] %vm1713, %v1687
  %1721 = vst.msk [vmem:[%s12 + $0x1c] sm:$0xf] %vm1713, %v1688
  %1722 = vst.msk [vmem:[%s12 + $0x20] sm:$0xf] %vm1713, %v1689
  %1723 = vst.msk [vmem:[%s12 + $0x24] sm:$0xf] %vm1713, %v1690
  %1724 = vst.msk [vmem:[%s12 + $0x28] sm:$0xf] %vm1713, %v1691
  %1725 = vst.msk [vmem:[%s12 + $0x2c] sm:$0xf] %vm1713, %v1692
  %1726 = vst.msk [vmem:[%s12 + $0x30] sm:$0xf] %vm1713, %v1693
  %1727 = vst.msk [vmem:[%s12 + $0x34] sm:$0xf] %vm1713, %v1694
  %1728 = vst.msk [vmem:[%s12 + $0x38] sm:$0xf] %vm1713, %v1695
  %1729 = vst.msk [vmem:[%s12 + $0x3c] sm:$0xf] %vm1713, %v1696
  %v1730 = vpack.c.bf16 %v1576, %v1571
  %v1731 = vpack.c.bf16 %v1586, %v1581
  %v1732 = vpack.c.bf16 %v1596, %v1591
  %v1733 = vpack.c.bf16 %v1606, %v1601
  %v1734 = vpack.c.bf16 %v1616, %v1611
  %v1735 = vpack.c.bf16 %v1626, %v1621
  %v1736 = vpack.c.bf16 %v1636, %v1631
  %v1737 = vpack.c.bf16 %v1646, %v1641
  %v1746 = vunpack.c.l.b16 %v1730
  %v1747 = vunpack.c.h.b16 %v1730
  %v1748 = vunpack.c.l.b16 %v1731
  %v1749 = vunpack.c.h.b16 %v1731
  %v1750 = vunpack.c.l.b16 %v1732
  %v1751 = vunpack.c.h.b16 %v1732
  %v1752 = vunpack.c.l.b16 %v1733
  %v1753 = vunpack.c.h.b16 %v1733
  %v1754 = vunpack.c.l.b16 %v1734
  %v1755 = vunpack.c.h.b16 %v1734
  %v1756 = vunpack.c.l.b16 %v1735
  %v1757 = vunpack.c.h.b16 %v1735
  %v1758 = vunpack.c.l.b16 %v1736
  %v1759 = vunpack.c.h.b16 %v1736
  %v1760 = vunpack.c.l.b16 %v1737
  %v1761 = vunpack.c.h.b16 %v1737
  %v1762 = vpack.c.b16 %v1746, %v1746
  %v1763 = vpack.c.b16 %v1747, %v1747
  %v1764 = vpack.c.b16 %v1748, %v1748
  %v1765 = vpack.c.b16 %v1749, %v1749
  %v1766 = vpack.c.b16 %v1750, %v1750
  %v1767 = vpack.c.b16 %v1751, %v1751
  %v1768 = vpack.c.b16 %v1752, %v1752
  %v1769 = vpack.c.b16 %v1753, %v1753
  %v1770 = vpack.c.b16 %v1754, %v1754
  %v1771 = vpack.c.b16 %v1755, %v1755
  %v1772 = vpack.c.b16 %v1756, %v1756
  %v1773 = vpack.c.b16 %v1757, %v1757
  %v1774 = vpack.c.b16 %v1758, %v1758
  %v1775 = vpack.c.b16 %v1759, %v1759
  %v1776 = vpack.c.b16 %v1760, %v1760
  %v1777 = vpack.c.b16 %v1761, %v1761
  %1778 = vrot.lane.b32.xlu0 %v1762, 32
  %v1779 = vpop.permute.xlu0 %1778
  %1780 = vrot.lane.b32.xlu0 %v1763, 32
  %v1781 = vpop.permute.xlu0 %1780
  %1782 = vrot.lane.b32.xlu0 %v1764, 32
  %v1783 = vpop.permute.xlu0 %1782
  %1784 = vrot.lane.b32.xlu0 %v1765, 32
  %v1785 = vpop.permute.xlu0 %1784
  %1786 = vrot.lane.b32.xlu0 %v1766, 32
  %v1787 = vpop.permute.xlu0 %1786
  %1788 = vrot.lane.b32.xlu0 %v1767, 32
  %v1789 = vpop.permute.xlu0 %1788
  %1790 = vrot.lane.b32.xlu0 %v1768, 32
  %v1791 = vpop.permute.xlu0 %1790
  %1792 = vrot.lane.b32.xlu0 %v1769, 32
  %v1793 = vpop.permute.xlu0 %1792
  %1794 = vrot.lane.b32.xlu0 %v1770, 32
  %v1795 = vpop.permute.xlu0 %1794
  %1796 = vrot.lane.b32.xlu0 %v1771, 32
  %v1797 = vpop.permute.xlu0 %1796
  %1798 = vrot.lane.b32.xlu0 %v1772, 32
  %v1799 = vpop.permute.xlu0 %1798
  %1800 = vrot.lane.b32.xlu0 %v1773, 32
  %v1801 = vpop.permute.xlu0 %1800
  %1802 = vrot.lane.b32.xlu0 %v1774, 32
  %v1803 = vpop.permute.xlu0 %1802
  %1804 = vrot.lane.b32.xlu0 %v1775, 32
  %v1805 = vpop.permute.xlu0 %1804
  %1806 = vrot.lane.b32.xlu0 %v1776, 32
  %v1807 = vpop.permute.xlu0 %1806
  %1808 = vrot.lane.b32.xlu0 %v1777, 32
  %v1809 = vpop.permute.xlu0 %1808
  %vm1826 = vcmask 1043712
  %1827 = vst.msk [vmem:[%s12] sm:$0xf] %vm1826, %v1779
  %1828 = vst.msk [vmem:[%s12 + $0x4] sm:$0xf] %vm1826, %v1781
  %1829 = vst.msk [vmem:[%s12 + $0x8] sm:$0xf] %vm1826, %v1783
  %1830 = vst.msk [vmem:[%s12 + $0xc] sm:$0xf] %vm1826, %v1785
  %1831 = vst.msk [vmem:[%s12 + $0x10] sm:$0xf] %vm1826, %v1787
  %1832 = vst.msk [vmem:[%s12 + $0x14] sm:$0xf] %vm1826, %v1789
  %1833 = vst.msk [vmem:[%s12 + $0x18] sm:$0xf] %vm1826, %v1791
  %1834 = vst.msk [vmem:[%s12 + $0x1c] sm:$0xf] %vm1826, %v1793
  %1835 = vst.msk [vmem:[%s12 + $0x20] sm:$0xf] %vm1826, %v1795
  %1836 = vst.msk [vmem:[%s12 + $0x24] sm:$0xf] %vm1826, %v1797
  %1837 = vst.msk [vmem:[%s12 + $0x28] sm:$0xf] %vm1826, %v1799
  %1838 = vst.msk [vmem:[%s12 + $0x2c] sm:$0xf] %vm1826, %v1801
  %1839 = vst.msk [vmem:[%s12 + $0x30] sm:$0xf] %vm1826, %v1803
  %1840 = vst.msk [vmem:[%s12 + $0x34] sm:$0xf] %vm1826, %v1805
  %1841 = vst.msk [vmem:[%s12 + $0x38] sm:$0xf] %vm1826, %v1807
  %1842 = vst.msk [vmem:[%s12 + $0x3c] sm:$0xf] %vm1826, %v1809
  // Predicated region
  $region50: #{gcn_net_forward.2} parent=0 // pred_check
    _
  $region51: #{gcn_net_forward.2} parent=0 // pred_check_branch
    %1844 = sbr.rel (0) target = $region53
  $region52: #{gcn_net_forward.2} parent=0 // pred_region
    _
  $region53: #{gcn_net_forward.2} parent=0 // pred_fallthru
    _
  // Predicated region
  $region54: #{gcn_net_forward.2} parent=0 // pred_check
    _
  $region55: #{gcn_net_forward.2} parent=0 // pred_check_branch
    %1846 = sbr.rel (0) target = $region57
  $region56: #{gcn_net_forward.2} parent=0 // pred_region
    _
  $region57: #{gcn_net_forward.2} parent=0 // pred_fallthru
    _

</llo_original>
